<compile_context>
chip_gen: v7x
topology: tpu7x:2x2x1
jax: 0.10.0
libtpu: 0.0.40
codegen_flags: <defaults>
</compile_context>

<pallas_src>
import functools

import jax
import jax.numpy as jnp
from jax.experimental import pallas as pl
from jax.experimental.pallas import tpu as pltpu


def _round_up(n, m):
    return ((n + m - 1) // m) * m


# ----------------------------------------------------------------------------
# Generic fused matmul + bias + activation (used for the synthetic base model)
# ----------------------------------------------------------------------------
def _linear_act_kernel(x_ref, w_ref, b_ref, o_ref, *, act):
    y = jnp.dot(x_ref[...], w_ref[...], preferred_element_type=jnp.float32)
    y = y + b_ref[...]
    if act == "relu":
        y = jnp.maximum(y, 0.0)
    elif act == "leaky":
        y = jnp.where(y >= 0.0, y, 0.2 * y)
    o_ref[...] = y.astype(o_ref.dtype)


def linear_act(x, w, b, act="none", block_rows=256):
    M, K = x.shape
    N = w.shape[1]
    rb = min(block_rows, _round_up(M, 8))
    Mp = _round_up(M, rb)
    xp = x.astype(jnp.bfloat16)
    if Mp != M:
        xp = jnp.pad(xp, ((0, Mp - M), (0, 0)))

    out = pl.pallas_call(
        functools.partial(_linear_act_kernel, act=act),
        out_shape=jax.ShapeDtypeStruct((Mp, N), jnp.float32),
        grid=(Mp // rb,),
        in_specs=[
            pl.BlockSpec((rb, K), lambda i: (i, 0)),
            pl.BlockSpec((K, N), lambda i: (0, 0)),
            pl.BlockSpec((1, N), lambda i: (0, 0)),
        ],
        out_specs=pl.BlockSpec((rb, N), lambda i: (i, 0)),
        compiler_params=pltpu.CompilerParams(dimension_semantics=("parallel",)),
    )(xp, w.astype(jnp.bfloat16), b.reshape(1, N).astype(jnp.float32))
    return out[:M]


# ----------------------------------------------------------------------------
# Fused: increase_dim -> LeakyReLU -> Conv -> max over points -> @ W_red[gf]
# ----------------------------------------------------------------------------
def _global_feat_reduce_kernel(q_ref, w1_ref, b1_ref, w2_ref, b2_ref, wg_ref, o_ref):
    x = q_ref[0]                                                       # (M, C) bf16
    h = jnp.dot(x, w1_ref[...], preferred_element_type=jnp.float32) + b1_ref[...]
    h = jnp.where(h >= 0.0, h, 0.2 * h)                                # LeakyReLU(0.2)
    y = jnp.dot(h.astype(jnp.bfloat16), w2_ref[...],
                preferred_element_type=jnp.float32) + b2_ref[...]      # (M, 1024)
    gf = jnp.max(y, axis=0, keepdims=True)                             # (1, 1024)
    gfr = jnp.dot(gf.astype(jnp.bfloat16), wg_ref[...],
                  preferred_element_type=jnp.float32)                  # (1, C)
    o_ref[...] = gfr[None]


def global_feature_reduce(q3d, p):
    """q3d: (B, M, C) -> (B, 1, C): (max_M increase_dim(q)) @ W_red[gf rows]."""
    B, M, C = q3d.shape
    inc = p["inc_w1"].shape[1]
    f32, bf16 = jnp.float32, jnp.bfloat16
    w1 = (p["inc_w1"].astype(f32) * p["inc_s1"][None, :]).astype(bf16)
    b1 = (p["inc_b1"] * p["inc_s1"] + p["inc_t1"]).reshape(1, inc).astype(f32)
    w2 = p["inc_w2"].astype(bf16)
    b2 = p["inc_b2"].reshape(1, inc).astype(f32)
    wg = p["red_w"][:inc].astype(bf16)          # gf rows of reduce_map weight

    return pl.pallas_call(
        _global_feat_reduce_kernel,
        out_shape=jax.ShapeDtypeStruct((B, 1, C), f32),
        grid=(B,),
        in_specs=[
            pl.BlockSpec((1, M, C), lambda b: (b, 0, 0)),
            pl.BlockSpec((C, inc), lambda b: (0, 0)),
            pl.BlockSpec((1, inc), lambda b: (0, 0)),
            pl.BlockSpec((inc, inc), lambda b: (0, 0)),
            pl.BlockSpec((1, inc), lambda b: (0, 0)),
            pl.BlockSpec((inc, C), lambda b: (0, 0)),
        ],
        out_specs=pl.BlockSpec((1, 1, C), lambda b: (b, 0, 0)),
        compiler_params=pltpu.CompilerParams(dimension_semantics=("parallel",)),
    )(q3d.astype(bf16), w1, b1, w2, b2, wg)


# ----------------------------------------------------------------------------
# Fused reduce_map: rf = q @ Wq + coarse @ Wc + gf_red + b   (per batch)
# ----------------------------------------------------------------------------
def _reduce_map_kernel(q_ref, c_ref, gfr_ref, wq_ref, wc_ref, b_ref, o_ref):
    y = jnp.dot(q_ref[0], wq_ref[...], preferred_element_type=jnp.float32)
    y = y + jnp.dot(c_ref[0], wc_ref[...], preferred_element_type=jnp.float32)
    y = y + gfr_ref[0] + b_ref[...]
    o_ref[...] = y[None].astype(o_ref.dtype)


def reduce_map(q3d, coarse, gfr, p):
    """(B,M,C),(B,M,3),(B,1,C) -> rf (B*M, C) bf16. No big concat materialized."""
    B, M, C = q3d.shape
    inc = p["inc_w1"].shape[1]
    f32, bf16 = jnp.float32, jnp.bfloat16
    wq = p["red_w"][inc:inc + C].astype(bf16)   # (C, C)
    wc = p["red_w"][inc + C:].astype(bf16)      # (3, C)
    bias = p["red_b"].reshape(1, C).astype(f32)

    out = pl.pallas_call(
        _reduce_map_kernel,
        out_shape=jax.ShapeDtypeStruct((B, M, C), bf16),
        grid=(B,),
        in_specs=[
            pl.BlockSpec((1, M, C), lambda b: (b, 0, 0)),
            pl.BlockSpec((1, M, 3), lambda b: (b, 0, 0)),
            pl.BlockSpec((1, 1, C), lambda b: (b, 0, 0)),
            pl.BlockSpec((C, C), lambda b: (0, 0)),
            pl.BlockSpec((3, C), lambda b: (0, 0)),
            pl.BlockSpec((1, C), lambda b: (0, 0)),
        ],
        out_specs=pl.BlockSpec((1, M, C), lambda b: (b, 0, 0)),
        compiler_params=pltpu.CompilerParams(dimension_semantics=("parallel",)),
    )(q3d.astype(bf16), coarse.astype(bf16), gfr, wq, wc, bias)
    return out.reshape(B * M, C)


# ----------------------------------------------------------------------------
# Fold (both stages fused) + coarse offset, sample loop inside the kernel
# ----------------------------------------------------------------------------
def _fold_kernel(feat_ref, coarse_ref, seedh_ref,
                 w1f_ref, b1_ref, w2_ref, b2_ref, w3_ref, b3_ref,
                 w4f_ref, w4d_ref, b4_ref, w5_ref, b5_ref, w6_ref, b6_ref,
                 o_ref):
    bf16 = jnp.bfloat16
    feat = feat_ref[...]                                   # (rb, C) bf16
    coarse = coarse_ref[...]                               # (rb, 3) f32
    # Per-point partial products of the first layer of each folding stage
    # (bias folded in; the per-sample seed / fd1 part is added inside the loop).
    fp1 = jnp.dot(feat, w1f_ref[...], preferred_element_type=jnp.float32) + b1_ref[...]
    fp2 = jnp.dot(feat, w4f_ref[...], preferred_element_type=jnp.float32) + b4_ref[...]
    w2, b2 = w2_ref[...], b2_ref[...]
    w3, b3 = w3_ref[...], b3_ref[...]
    w4d = w4d_ref[...]
    w5, b5 = w5_ref[...], b5_ref[...]
    w6, b6 = w6_ref[...], b6_ref[...]
    ns = o_ref.shape[0]

    def body(s, carry):
        # folding1
        h1 = jnp.maximum(fp1 + seedh_ref[pl.ds(s, 1), :], 0.0)
        h2 = jnp.maximum(
            jnp.dot(h1.astype(bf16), w2, preferred_element_type=jnp.float32) + b2, 0.0)
        fd1 = jnp.dot(h2.astype(bf16), w3,
                      preferred_element_type=jnp.float32) + b3          # (rb, 3)
        # folding2
        g1 = jnp.maximum(
            fp2 + jnp.dot(fd1.astype(bf16), w4d, preferred_element_type=jnp.float32),
            0.0)
        g2 = jnp.maximum(
            jnp.dot(g1.astype(bf16), w5, preferred_element_type=jnp.float32) + b5, 0.0)
        fd2 = jnp.dot(g2.astype(bf16), w6,
                      preferred_element_type=jnp.float32) + b6          # (rb, 3)
        o_ref[s] = (fd2 + coarse).astype(o_ref.dtype)                   # fused offset
        return carry

    jax.lax.fori_loop(0, ns, body, 0)


def fold_rebuild(rf, coarse2d, p, step, block_rows=256):
    """Fold(rf) + coarse offset. rf: (BM, C), coarse2d: (BM, 3) -> (BM, Ns, 3)."""
    BM, C = rf.shape
    Ns = step * step
    h = p["f1_w1"].shape[1]
    h2 = p["f1_w2"].shape[1]
    f32, bf16 = jnp.float32, jnp.bfloat16

    # BN-folded weights
    w1 = p["f1_w1"].astype(f32) * p["f1_s1"][None, :]
    b1 = p["f1_b1"] * p["f1_s1"] + p["f1_t1"]
    w2 = p["f1_w2"].astype(f32) * p["f1_s2"][None, :]
    b2 = p["f1_b2"] * p["f1_s2"] + p["f1_t2"]
    w3, b3 = p["f1_w3"].astype(f32), p["f1_b3"].astype(f32)
    w4 = p["f2_w1"].astype(f32) * p["f2_s1"][None, :]
    b4 = p["f2_b1"] * p["f2_s1"] + p["f2_t1"]
    w5 = p["f2_w2"].astype(f32) * p["f2_s2"][None, :]
    b5 = p["f2_b2"] * p["f2_s2"] + p["f2_t2"]
    w6, b6 = p["f2_w3"].astype(f32), p["f2_b3"].astype(f32)

    # seed grid (Ns, 2): seed[s] = (lin[s % step], lin[s // step])
    lin = jnp.linspace(-1.0, 1.0, step, dtype=f32)
    seed = jnp.stack([jnp.tile(lin, step), jnp.repeat(lin, step)], axis=-1)

    # split first layers: folding1 input = [seed(2), feat(C)], folding2 = [fd1(3), feat(C)]
    seedh = seed @ w1[:2]        # (Ns, h): BN-scaled seed contribution
    w1f = w1[2:]                 # (C, h)
    w4d = w4[:3]                 # (3, h)
    w4f = w4[3:]                 # (C, h)

    rb = min(block_rows, _round_up(BM, 8))
    BMp = _round_up(BM, rb)
    feat = rf.astype(bf16)
    coarse = coarse2d.astype(f32)
    if BMp != BM:
        feat = jnp.pad(feat, ((0, BMp - BM), (0, 0)))
        coarse = jnp.pad(coarse, ((0, BMp - BM), (0, 0)))

    row = lambda v: v.reshape(1, -1).astype(f32)

    out = pl.pallas_call(
        _fold_kernel,
        out_shape=jax.ShapeDtypeStruct((Ns, BMp, 3), f32),
        grid=(BMp // rb,),
        in_specs=[
            pl.BlockSpec((rb, C), lambda i: (i, 0)),     # feat
            pl.BlockSpec((rb, 3), lambda i: (i, 0)),     # coarse
            pl.BlockSpec((Ns, h), lambda i: (0, 0)),     # seedh
            pl.BlockSpec((C, h), lambda i: (0, 0)),      # w1 (feat part)
            pl.BlockSpec((1, h), lambda i: (0, 0)),      # b1
            pl.BlockSpec((h, h2), lambda i: (0, 0)),     # w2
            pl.BlockSpec((1, h2), lambda i: (0, 0)),     # b2
            pl.BlockSpec((h2, 3), lambda i: (0, 0)),     # w3
            pl.BlockSpec((1, 3), lambda i: (0, 0)),      # b3
            pl.BlockSpec((C, h), lambda i: (0, 0)),      # w4 (feat part)
            pl.BlockSpec((3, h), lambda i: (0, 0)),      # w4 (fd1 part)
            pl.BlockSpec((1, h), lambda i: (0, 0)),      # b4
            pl.BlockSpec((h, h2), lambda i: (0, 0)),     # w5
            pl.BlockSpec((1, h2), lambda i: (0, 0)),     # b5
            pl.BlockSpec((h2, 3), lambda i: (0, 0)),     # w6
            pl.BlockSpec((1, 3), lambda i: (0, 0)),      # b6
        ],
        out_specs=pl.BlockSpec((Ns, rb, 3), lambda i: (0, i, 0)),
        compiler_params=pltpu.CompilerParams(dimension_semantics=("parallel",)),
    )(feat, coarse, seedh.astype(f32),
      w1f.astype(bf16), row(b1), w2.astype(bf16), row(b2), w3.astype(bf16), row(b3),
      w4f.astype(bf16), w4d.astype(bf16), row(b4), w5.astype(bf16), row(b5),
      w6.astype(bf16), row(b6))

    out = out[:, :BM]                       # (Ns, BM, 3)
    return jnp.transpose(out, (1, 0, 2))    # (BM, Ns, 3), sample-minor like torch


# ----------------------------------------------------------------------------
# Plain-JAX glue: FPS and the full forward
# ----------------------------------------------------------------------------
def fps_jax(pc, num):
    """Furthest point sampling (deterministic, starts at index 0). pc: (B,N,3)."""
    # TODO(synk): CUDA pointnet2 furthest_point_sample has no clean Pallas mapping;
    # sequential fori_loop in plain JAX instead.
    B, N, _ = pc.shape

    def one(pts):
        def body(i, state):
            dists, idxs, last = state
            d = jnp.sum((pts - pts[last]) ** 2, axis=-1)
            dists = jnp.minimum(dists, d)
            nxt = jnp.argmax(dists).astype(jnp.int32)
            idxs = idxs.at[i].set(nxt)
            return dists, idxs, nxt

        dists = jnp.full((N,), jnp.inf, jnp.float32)
        idxs = jnp.zeros((num,), jnp.int32)
        dists, idxs, _ = jax.lax.fori_loop(1, num, body, (dists, idxs, jnp.int32(0)))
        return pts[idxs]

    return jax.vmap(one)(pc)


def pointr_forward(xyz, p, trans_dim, num_query, fold_step):
    B = xyz.shape[0]
    M, C = num_query, trans_dim
    Ns = fold_step * fold_step

    # --- synthetic base model (see TODO(synk) at top) ---
    coarse = fps_jax(xyz, num_query)                                   # (B, M, 3)
    q = linear_act(coarse.reshape(B * M, 3), p["base_w"], p["base_b"], act="relu")
    q3d = q.reshape(B, M, C)

    # fused global_feature + its reduce_map contribution, per batch
    gfr = global_feature_reduce(q3d, p)                                # (B, 1, C)

    # fused reduce_map on [gf, q, coarse] without materializing the concat
    rf = reduce_map(q3d, coarse, gfr, p)                               # (B*M, C) bf16

    # fused Fold (both stages) + coarse offset
    rebuild_points = fold_rebuild(rf, coarse.reshape(B * M, 3), p, fold_step)
    rebuild_points = rebuild_points.reshape(B, M * Ns, 3)

    # inp_sparse = fps(xyz, num_query); identical to `coarse` in the stand-in,
    # so reuse it instead of running the sequential FPS twice.
    inp_sparse = coarse
    coarse_out = jnp.concatenate([coarse, inp_sparse], axis=1)
    rebuild_points = jnp.concatenate([rebuild_points, xyz], axis=1)
    return coarse_out, rebuild_points


# ----------------------------------------------------------------------------
# Deterministic parameter init (BN in eval mode: mean=0, var=1, gamma=1, beta=0)
# ----------------------------------------------------------------------------
def init_params(key, C, hidden_fold=256, inc_dim=1024):
    keys = jax.random.split(key, 16)
    w = lambda k, shape: 0.05 * jax.random.normal(k, shape, jnp.float32)
    zeros = lambda n: jnp.zeros((n,), jnp.float32)
    bn_s = lambda n: jnp.full((n,), 1.0 / jnp.sqrt(1.0 + 1e-5), jnp.float32)
    h = hidden_fold
    p = {
        # synthetic base model projection 3 -> C
        "base_w": w(keys[0], (3, C)), "base_b": zeros(C),
        # increase_dim: Conv1d(C,1024), BN(1024), LeakyReLU(0.2), Conv1d(1024,1024)
        "inc_w1": w(keys[1], (C, inc_dim)), "inc_b1": zeros(inc_dim),
        "inc_s1": bn_s(inc_dim), "inc_t1": zeros(inc_dim),
        "inc_w2": w(keys[2], (inc_dim, inc_dim)), "inc_b2": zeros(inc_dim),
        # reduce_map: Linear(1024 + C + 3, C), inputs ordered [gf, q, coarse]
        "red_w": w(keys[3], (inc_dim + C + 3, C)), "red_b": zeros(C),
        # folding1: Conv(C+2,h) BN ReLU Conv(h,h/2) BN ReLU Conv(h/2,3)  rows=[seed, feat]
        "f1_w1": w(keys[4], (C + 2, h)), "f1_b1": zeros(h),
        "f1_s1": bn_s(h), "f1_t1": zeros(h),
        "f1_w2": w(keys[5], (h, h // 2)), "f1_b2": zeros(h // 2),
        "f1_s2": bn_s(h // 2), "f1_t2": zeros(h // 2),
        "f1_w3": w(keys[6], (h // 2, 3)), "f1_b3": zeros(3),
        # folding2: Conv(C+3,h) BN ReLU Conv(h,h/2) BN ReLU Conv(h/2,3)  rows=[fd1, feat]
        "f2_w1": w(keys[7], (C + 3, h)), "f2_b1": zeros(h),
        "f2_s1": bn_s(h), "f2_t1": zeros(h),
        "f2_w2": w(keys[8], (h, h // 2)), "f2_b2": zeros(h // 2),
        "f2_s2": bn_s(h // 2), "f2_t2": zeros(h // 2),
        "f2_w3": w(keys[9], (h // 2, 3)), "f2_b3": zeros(3),
    }
    return p


if __name__ == "__main__":
    # small config: trans_dim=32, num_query=8, num_pred=32 -> fold_step=2
    B, N_in = 2, 16
    trans_dim, num_query, num_pred = 32, 8, 32
    fold_step = int((num_pred // num_query) ** 0.5 + 0.5)

    xyz = jax.random.normal(jax.random.PRNGKey(0), (B, N_in, 3), jnp.float32)
    params = init_params(jax.random.PRNGKey(1), trans_dim, hidden_fold=256)

    fwd = jax.jit(functools.partial(pointr_forward, trans_dim=trans_dim,
                                    num_query=num_query, fold_step=fold_step))
    coarse, rebuild = fwd(xyz, params)
    jax.block_until_ready((coarse, rebuild))

    assert coarse.shape == (B, 2 * num_query, 3), coarse.shape
    assert rebuild.shape == (B, num_pred + N_in, 3), rebuild.shape
    assert bool(jnp.all(jnp.isfinite(coarse))) and bool(jnp.all(jnp.isfinite(rebuild)))
    print("KERNEL_OK")
</pallas_src>

<mosaic_0001>
module attributes {stable_mosaic.version = 11 : i64} {
  func.func @_linear_act_kernel(%arg0: i32, %arg1: memref<16x3xbf16, #tpu.memory_space<vmem>>, %arg2: memref<3x32xbf16, #tpu.memory_space<vmem>>, %arg3: memref<1x32xf32, #tpu.memory_space<vmem>>, %arg4: memref<16x32xf32, #tpu.memory_space<vmem>>) attributes {dimension_semantics = [#tpu.dimension_semantics<parallel>], iteration_bounds = array<i64: 1>, scalar_prefetch = 0 : i64, scratch_operands = 0 : i64, tpu.core_type = #tpu.core_type<tc>, window_params = [{transform_indices = @transform_0, window_bounds = array<i64: 16, 3>}, {pipeline_mode = #tpu.pipeline_mode<synchronous>, transform_indices = @transform_1, window_bounds = array<i64: 3, 32>}, {pipeline_mode = #tpu.pipeline_mode<synchronous>, transform_indices = @transform_2, window_bounds = array<i64: 1, 32>}, {transform_indices = @transform_3, window_bounds = array<i64: 16, 32>}]} {
    %c0 = arith.constant 0 : index
    %c0_0 = arith.constant 0 : index
    %0 = vector.load %arg1[%c0, %c0_0] : memref<16x3xbf16, #tpu.memory_space<vmem>>, vector<16x3xbf16>
    %c0_1 = arith.constant 0 : index
    %c0_2 = arith.constant 0 : index
    %1 = vector.load %arg2[%c0_1, %c0_2] : memref<3x32xbf16, #tpu.memory_space<vmem>>, vector<3x32xbf16>
    %cst = arith.constant dense<0.000000e+00> : vector<16x32xf32>
    %2 = tpu.matmul %0, %1, %cst {dimension_numbers = #tpu.dot_dimension_numbers<[1], [0], [0], [1], [0, 0, 1, 1], [], []>} : vector<16x3xbf16>, vector<3x32xbf16>, vector<16x32xf32> -> vector<16x32xf32>
    %c0_3 = arith.constant 0 : index
    %c0_4 = arith.constant 0 : index
    %3 = vector.load %arg3[%c0_3, %c0_4] : memref<1x32xf32, #tpu.memory_space<vmem>>, vector<1x32xf32>
    %4 = vector.broadcast %3 : vector<1x32xf32> to vector<16x32xf32>
    %5 = arith.addf %2, %4 : vector<16x32xf32>
    %cst_5 = arith.constant 0.000000e+00 : f32
    %6 = vector.broadcast %cst_5 : f32 to vector<16x32xf32>
    %7 = arith.maximumf %5, %6 : vector<16x32xf32>
    %c0_6 = arith.constant 0 : index
    %c0_7 = arith.constant 0 : index
    %8 = vector.load %arg4[%c0_6, %c0_7] : memref<16x32xf32, #tpu.memory_space<vmem>>, vector<16x32xf32>
    tpu.vector_store %arg4[%c0_6, %c0_7], %7 {strides = array<i32>} : memref<16x32xf32, #tpu.memory_space<vmem>>, vector<16x32xf32>,
    return
  }
  func.func @transform_0(%arg0: i32) -> (i32, i32) {
    %c0_i32 = arith.constant 0 : i32
    %c0_i32_0 = arith.constant 0 : i32
    return %arg0, %c0_i32 : i32, i32
  }
  func.func @transform_1(%arg0: i32) -> (i32, i32) {
    %c0_i32 = arith.constant 0 : i32
    %c0_i32_0 = arith.constant 0 : i32
    %c0_i32_1 = arith.constant 0 : i32
    return %c0_i32, %c0_i32_0 : i32, i32
  }
  func.func @transform_2(%arg0: i32) -> (i32, i32) {
    %c0_i32 = arith.constant 0 : i32
    %c0_i32_0 = arith.constant 0 : i32
    %c0_i32_1 = arith.constant 0 : i32
    return %c0_i32, %c0_i32_0 : i32, i32
  }
  func.func @transform_3(%arg0: i32) -> (i32, i32) {
    %c0_i32 = arith.constant 0 : i32
    %c0_i32_0 = arith.constant 0 : i32
    return %arg0, %c0_i32 : i32, i32
  }
}

module attributes {stable_mosaic.version = 11 : i64} {
  func.func @_global_feat_reduce_kernel(%arg0: i32, %arg1: memref<1x8x32xbf16, #tpu.memory_space<vmem>>, %arg2: memref<32x1024xbf16, #tpu.memory_space<vmem>>, %arg3: memref<1x1024xf32, #tpu.memory_space<vmem>>, %arg4: memref<1024x1024xbf16, #tpu.memory_space<vmem>>, %arg5: memref<1x1024xf32, #tpu.memory_space<vmem>>, %arg6: memref<1024x32xbf16, #tpu.memory_space<vmem>>, %arg7: memref<1x1x32xf32, #tpu.memory_space<vmem>>) attributes {dimension_semantics = [#tpu.dimension_semantics<parallel>], iteration_bounds = array<i64: 2>, scalar_prefetch = 0 : i64, scratch_operands = 0 : i64, tpu.core_type = #tpu.core_type<tc>, window_params = [{transform_indices = @transform_0, window_bounds = array<i64: 1, 8, 32>}, {pipeline_mode = #tpu.pipeline_mode<synchronous>, transform_indices = @transform_1, window_bounds = array<i64: 32, 1024>}, {pipeline_mode = #tpu.pipeline_mode<synchronous>, transform_indices = @transform_2, window_bounds = array<i64: 1, 1024>}, {pipeline_mode = #tpu.pipeline_mode<synchronous>, transform_indices = @transform_3, window_bounds = array<i64: 1024, 1024>}, {pipeline_mode = #tpu.pipeline_mode<synchronous>, transform_indices = @transform_4, window_bounds = array<i64: 1, 1024>}, {pipeline_mode = #tpu.pipeline_mode<synchronous>, transform_indices = @transform_5, window_bounds = array<i64: 1024, 32>}, {transform_indices = @transform_6, window_bounds = array<i64: 1, 1, 32>}]} {
    %c0 = arith.constant 0 : index
    %c0_0 = arith.constant 0 : index
    %c0_1 = arith.constant 0 : index
    %0 = vector.load %arg1[%c0, %c0_0, %c0_1] : memref<1x8x32xbf16, #tpu.memory_space<vmem>>, vector<1x8x32xbf16>
    %1 = vector.shape_cast %0 : vector<1x8x32xbf16> to vector<8x32xbf16>
    %c0_2 = arith.constant 0 : index
    %c0_3 = arith.constant 0 : index
    %2 = vector.load %arg2[%c0_2, %c0_3] : memref<32x1024xbf16, #tpu.memory_space<vmem>>, vector<32x1024xbf16>
    %cst = arith.constant dense<0.000000e+00> : vector<8x1024xf32>
    %3 = tpu.matmul %1, %2, %cst {dimension_numbers = #tpu.dot_dimension_numbers<[1], [0], [0], [1], [0, 0, 1, 1], [], []>} : vector<8x32xbf16>, vector<32x1024xbf16>, vector<8x1024xf32> -> vector<8x1024xf32>
    %c0_4 = arith.constant 0 : index
    %c0_5 = arith.constant 0 : index
    %4 = vector.load %arg3[%c0_4, %c0_5] : memref<1x1024xf32, #tpu.memory_space<vmem>>, vector<1x1024xf32>
    %5 = vector.broadcast %4 : vector<1x1024xf32> to vector<8x1024xf32>
    %6 = arith.addf %3, %5 : vector<8x1024xf32>
    %cst_6 = arith.constant 0.000000e+00 : f32
    %7 = vector.broadcast %cst_6 : f32 to vector<8x1024xf32>
    %8 = arith.cmpf oge, %6, %7 : vector<8x1024xf32>
    %cst_7 = arith.constant 2.000000e-01 : f32
    %9 = vector.broadcast %cst_7 : f32 to vector<8x1024xf32>
    %10 = arith.mulf %9, %6 : vector<8x1024xf32>
    %11 = arith.select %8, %6, %10 : vector<8x1024xi1>, vector<8x1024xf32>
    %12 = arith.truncf %11 : vector<8x1024xf32> to vector<8x1024xbf16>
    %c0_8 = arith.constant 0 : index
    %c0_9 = arith.constant 0 : index
    %13 = vector.load %arg4[%c0_8, %c0_9] : memref<1024x1024xbf16, #tpu.memory_space<vmem>>, vector<1024x1024xbf16>
    %cst_10 = arith.constant dense<0.000000e+00> : vector<8x1024xf32>
    %14 = tpu.matmul %12, %13, %cst_10 {dimension_numbers = #tpu.dot_dimension_numbers<[1], [0], [0], [1], [0, 0, 1, 1], [], []>} : vector<8x1024xbf16>, vector<1024x1024xbf16>, vector<8x1024xf32> -> vector<8x1024xf32>
    %c0_11 = arith.constant 0 : index
    %c0_12 = arith.constant 0 : index
    %15 = vector.load %arg5[%c0_11, %c0_12] : memref<1x1024xf32, #tpu.memory_space<vmem>>, vector<1x1024xf32>
    %16 = vector.broadcast %15 : vector<1x1024xf32> to vector<8x1024xf32>
    %17 = arith.addf %14, %16 : vector<8x1024xf32>
    %cst_13 = arith.constant dense<0xFF800000> : vector<1024xf32>
    %18 = vector.multi_reduction <maximumf>, %17, %cst_13 [0] : vector<8x1024xf32> to vector<1024xf32>
    %19 = vector.shape_cast %18 : vector<1024xf32> to vector<1x1024xf32>
    %20 = arith.truncf %19 : vector<1x1024xf32> to vector<1x1024xbf16>
    %c0_14 = arith.constant 0 : index
    %c0_15 = arith.constant 0 : index
    %21 = vector.load %arg6[%c0_14, %c0_15] : memref<1024x32xbf16, #tpu.memory_space<vmem>>, vector<1024x32xbf16>
    %cst_16 = arith.constant dense<0.000000e+00> : vector<1x32xf32>
    %22 = tpu.matmul %20, %21, %cst_16 {dimension_numbers = #tpu.dot_dimension_numbers<[1], [0], [0], [1], [0, 0, 1, 1], [], []>} : vector<1x1024xbf16>, vector<1024x32xbf16>, vector<1x32xf32> -> vector<1x32xf32>
    %23 = vector.shape_cast %22 : vector<1x32xf32> to vector<1x1x32xf32>
    %c0_17 = arith.constant 0 : index
    %c0_18 = arith.constant 0 : index
    %c0_19 = arith.constant 0 : index
    %24 = vector.load %arg7[%c0_17, %c0_18, %c0_19] : memref<1x1x32xf32, #tpu.memory_space<vmem>>, vector<1x1x32xf32>
    tpu.vector_store %arg7[%c0_17, %c0_18, %c0_19], %23 {strides = array<i32>} : memref<1x1x32xf32, #tpu.memory_space<vmem>>, vector<1x1x32xf32>,
    return
  }
  func.func @transform_0(%arg0: i32) -> (i32, i32, i32) {
    %c0_i32 = arith.constant 0 : i32
    %c0_i32_0 = arith.constant 0 : i32
    %c0_i32_1 = arith.constant 0 : i32
    return %arg0, %c0_i32, %c0_i32_0 : i32, i32, i32
  }
  func.func @transform_1(%arg0: i32) -> (i32, i32) {
    %c0_i32 = arith.constant 0 : i32
    %c0_i32_0 = arith.constant 0 : i32
    %c0_i32_1 = arith.constant 0 : i32
    return %c0_i32, %c0_i32_0 : i32, i32
  }
  func.func @transform_2(%arg0: i32) -> (i32, i32) {
    %c0_i32 = arith.constant 0 : i32
    %c0_i32_0 = arith.constant 0 : i32
    %c0_i32_1 = arith.constant 0 : i32
    return %c0_i32, %c0_i32_0 : i32, i32
  }
  func.func @transform_3(%arg0: i32) -> (i32, i32) {
    %c0_i32 = arith.constant 0 : i32
    %c0_i32_0 = arith.constant 0 : i32
    %c0_i32_1 = arith.constant 0 : i32
    return %c0_i32, %c0_i32_0 : i32, i32
  }
  func.func @transform_4(%arg0: i32) -> (i32, i32) {
    %c0_i32 = arith.constant 0 : i32
    %c0_i32_0 = arith.constant 0 : i32
    %c0_i32_1 = arith.constant 0 : i32
    return %c0_i32, %c0_i32_0 : i32, i32
  }
  func.func @transform_5(%arg0: i32) -> (i32, i32) {
    %c0_i32 = arith.constant 0 : i32
    %c0_i32_0 = arith.constant 0 : i32
    %c0_i32_1 = arith.constant 0 : i32
    return %c0_i32, %c0_i32_0 : i32, i32
  }
  func.func @transform_6(%arg0: i32) -> (i32, i32, i32) {
    %c0_i32 = arith.constant 0 : i32
    %c0_i32_0 = arith.constant 0 : i32
    %c0_i32_1 = arith.constant 0 : i32
    return %arg0, %c0_i32, %c0_i32_0 : i32, i32, i32
  }
}

module attributes {stable_mosaic.version = 11 : i64} {
  func.func @_reduce_map_kernel(%arg0: i32, %arg1: memref<1x8x32xbf16, #tpu.memory_space<vmem>>, %arg2: memref<1x8x3xbf16, #tpu.memory_space<vmem>>, %arg3: memref<1x1x32xf32, #tpu.memory_space<vmem>>, %arg4: memref<32x32xbf16, #tpu.memory_space<vmem>>, %arg5: memref<3x32xbf16, #tpu.memory_space<vmem>>, %arg6: memref<1x32xf32, #tpu.memory_space<vmem>>, %arg7: memref<1x8x32xbf16, #tpu.memory_space<vmem>>) attributes {dimension_semantics = [#tpu.dimension_semantics<parallel>], iteration_bounds = array<i64: 2>, scalar_prefetch = 0 : i64, scratch_operands = 0 : i64, tpu.core_type = #tpu.core_type<tc>, window_params = [{transform_indices = @transform_0, window_bounds = array<i64: 1, 8, 32>}, {transform_indices = @transform_1, window_bounds = array<i64: 1, 8, 3>}, {transform_indices = @transform_2, window_bounds = array<i64: 1, 1, 32>}, {pipeline_mode = #tpu.pipeline_mode<synchronous>, transform_indices = @transform_3, window_bounds = array<i64: 32, 32>}, {pipeline_mode = #tpu.pipeline_mode<synchronous>, transform_indices = @transform_4, window_bounds = array<i64: 3, 32>}, {pipeline_mode = #tpu.pipeline_mode<synchronous>, transform_indices = @transform_5, window_bounds = array<i64: 1, 32>}, {transform_indices = @transform_6, window_bounds = array<i64: 1, 8, 32>}]} {
    %c0 = arith.constant 0 : index
    %c0_0 = arith.constant 0 : index
    %c0_1 = arith.constant 0 : index
    %0 = vector.load %arg1[%c0, %c0_0, %c0_1] : memref<1x8x32xbf16, #tpu.memory_space<vmem>>, vector<1x8x32xbf16>
    %1 = vector.shape_cast %0 : vector<1x8x32xbf16> to vector<8x32xbf16>
    %c0_2 = arith.constant 0 : index
    %c0_3 = arith.constant 0 : index
    %2 = vector.load %arg4[%c0_2, %c0_3] : memref<32x32xbf16, #tpu.memory_space<vmem>>, vector<32x32xbf16>
    %cst = arith.constant dense<0.000000e+00> : vector<8x32xf32>
    %3 = tpu.matmul %1, %2, %cst {dimension_numbers = #tpu.dot_dimension_numbers<[1], [0], [0], [1], [0, 0, 1, 1], [], []>} : vector<8x32xbf16>, vector<32x32xbf16>, vector<8x32xf32> -> vector<8x32xf32>
    %c0_4 = arith.constant 0 : index
    %c0_5 = arith.constant 0 : index
    %c0_6 = arith.constant 0 : index
    %4 = vector.load %arg2[%c0_4, %c0_5, %c0_6] : memref<1x8x3xbf16, #tpu.memory_space<vmem>>, vector<1x8x3xbf16>
    %5 = vector.shape_cast %4 : vector<1x8x3xbf16> to vector<8x3xbf16>
    %c0_7 = arith.constant 0 : index
    %c0_8 = arith.constant 0 : index
    %6 = vector.load %arg5[%c0_7, %c0_8] : memref<3x32xbf16, #tpu.memory_space<vmem>>, vector<3x32xbf16>
    %cst_9 = arith.constant dense<0.000000e+00> : vector<8x32xf32>
    %7 = tpu.matmul %5, %6, %cst_9 {dimension_numbers = #tpu.dot_dimension_numbers<[1], [0], [0], [1], [0, 0, 1, 1], [], []>} : vector<8x3xbf16>, vector<3x32xbf16>, vector<8x32xf32> -> vector<8x32xf32>
    %8 = arith.addf %3, %7 : vector<8x32xf32>
    %c0_10 = arith.constant 0 : index
    %c0_11 = arith.constant 0 : index
    %c0_12 = arith.constant 0 : index
    %9 = vector.load %arg3[%c0_10, %c0_11, %c0_12] : memref<1x1x32xf32, #tpu.memory_space<vmem>>, vector<1x1x32xf32>
    %10 = vector.shape_cast %9 : vector<1x1x32xf32> to vector<1x32xf32>
    %11 = vector.broadcast %10 : vector<1x32xf32> to vector<8x32xf32>
    %12 = arith.addf %8, %11 : vector<8x32xf32>
    %c0_13 = arith.constant 0 : index
    %c0_14 = arith.constant 0 : index
    %13 = vector.load %arg6[%c0_13, %c0_14] : memref<1x32xf32, #tpu.memory_space<vmem>>, vector<1x32xf32>
    %14 = vector.broadcast %13 : vector<1x32xf32> to vector<8x32xf32>
    %15 = arith.addf %12, %14 : vector<8x32xf32>
    %16 = vector.shape_cast %15 : vector<8x32xf32> to vector<1x8x32xf32>
    %17 = arith.truncf %16 : vector<1x8x32xf32> to vector<1x8x32xbf16>
    %c0_15 = arith.constant 0 : index
    %c0_16 = arith.constant 0 : index
    %c0_17 = arith.constant 0 : index
    %18 = vector.load %arg7[%c0_15, %c0_16, %c0_17] : memref<1x8x32xbf16, #tpu.memory_space<vmem>>, vector<1x8x32xbf16>
    tpu.vector_store %arg7[%c0_15, %c0_16, %c0_17], %17 {strides = array<i32>} : memref<1x8x32xbf16, #tpu.memory_space<vmem>>, vector<1x8x32xbf16>,
    return
  }
  func.func @transform_0(%arg0: i32) -> (i32, i32, i32) {
    %c0_i32 = arith.constant 0 : i32
    %c0_i32_0 = arith.constant 0 : i32
    %c0_i32_1 = arith.constant 0 : i32
    return %arg0, %c0_i32, %c0_i32_0 : i32, i32, i32
  }
  func.func @transform_1(%arg0: i32) -> (i32, i32, i32) {
    %c0_i32 = arith.constant 0 : i32
    %c0_i32_0 = arith.constant 0 : i32
    %c0_i32_1 = arith.constant 0 : i32
    return %arg0, %c0_i32, %c0_i32_0 : i32, i32, i32
  }
  func.func @transform_2(%arg0: i32) -> (i32, i32, i32) {
    %c0_i32 = arith.constant 0 : i32
    %c0_i32_0 = arith.constant 0 : i32
    %c0_i32_1 = arith.constant 0 : i32
    return %arg0, %c0_i32, %c0_i32_0 : i32, i32, i32
  }
  func.func @transform_3(%arg0: i32) -> (i32, i32) {
    %c0_i32 = arith.constant 0 : i32
    %c0_i32_0 = arith.constant 0 : i32
    %c0_i32_1 = arith.constant 0 : i32
    return %c0_i32, %c0_i32_0 : i32, i32
  }
  func.func @transform_4(%arg0: i32) -> (i32, i32) {
    %c0_i32 = arith.constant 0 : i32
    %c0_i32_0 = arith.constant 0 : i32
    %c0_i32_1 = arith.constant 0 : i32
    return %c0_i32, %c0_i32_0 : i32, i32
  }
  func.func @transform_5(%arg0: i32) -> (i32, i32) {
    %c0_i32 = arith.constant 0 : i32
    %c0_i32_0 = arith.constant 0 : i32
    %c0_i32_1 = arith.constant 0 : i32
    return %c0_i32, %c0_i32_0 : i32, i32
  }
  func.func @transform_6(%arg0: i32) -> (i32, i32, i32) {
    %c0_i32 = arith.constant 0 : i32
    %c0_i32_0 = arith.constant 0 : i32
    %c0_i32_1 = arith.constant 0 : i32
    return %arg0, %c0_i32, %c0_i32_0 : i32, i32, i32
  }
}

module attributes {stable_mosaic.version = 11 : i64} {
  func.func @_fold_kernel(%arg0: i32, %arg1: memref<16x32xbf16, #tpu.memory_space<vmem>>, %arg2: memref<16x3xf32, #tpu.memory_space<vmem>>, %arg3: memref<4x256xf32, #tpu.memory_space<vmem>>, %arg4: memref<32x256xbf16, #tpu.memory_space<vmem>>, %arg5: memref<1x256xf32, #tpu.memory_space<vmem>>, %arg6: memref<256x128xbf16, #tpu.memory_space<vmem>>, %arg7: memref<1x128xf32, #tpu.memory_space<vmem>>, %arg8: memref<128x3xbf16, #tpu.memory_space<vmem>>, %arg9: memref<1x3xf32, #tpu.memory_space<vmem>>, %arg10: memref<32x256xbf16, #tpu.memory_space<vmem>>, %arg11: memref<3x256xbf16, #tpu.memory_space<vmem>>, %arg12: memref<1x256xf32, #tpu.memory_space<vmem>>, %arg13: memref<256x128xbf16, #tpu.memory_space<vmem>>, %arg14: memref<1x128xf32, #tpu.memory_space<vmem>>, %arg15: memref<128x3xbf16, #tpu.memory_space<vmem>>, %arg16: memref<1x3xf32, #tpu.memory_space<vmem>>, %arg17: memref<4x16x3xf32, #tpu.memory_space<vmem>>) attributes {dimension_semantics = [#tpu.dimension_semantics<parallel>], iteration_bounds = array<i64: 1>, scalar_prefetch = 0 : i64, scratch_operands = 0 : i64, tpu.core_type = #tpu.core_type<tc>, window_params = [{transform_indices = @transform_0, window_bounds = array<i64: 16, 32>}, {transform_indices = @transform_1, window_bounds = array<i64: 16, 3>}, {pipeline_mode = #tpu.pipeline_mode<synchronous>, transform_indices = @transform_2, window_bounds = array<i64: 4, 256>}, {pipeline_mode = #tpu.pipeline_mode<synchronous>, transform_indices = @transform_3, window_bounds = array<i64: 32, 256>}, {pipeline_mode = #tpu.pipeline_mode<synchronous>, transform_indices = @transform_4, window_bounds = array<i64: 1, 256>}, {pipeline_mode = #tpu.pipeline_mode<synchronous>, transform_indices = @transform_5, window_bounds = array<i64: 256, 128>}, {pipeline_mode = #tpu.pipeline_mode<synchronous>, transform_indices = @transform_6, window_bounds = array<i64: 1, 128>}, {pipeline_mode = #tpu.pipeline_mode<synchronous>, transform_indices = @transform_7, window_bounds = array<i64: 128, 3>}, {pipeline_mode = #tpu.pipeline_mode<synchronous>, transform_indices = @transform_8, window_bounds = array<i64: 1, 3>}, {pipeline_mode = #tpu.pipeline_mode<synchronous>, transform_indices = @transform_9, window_bounds = array<i64: 32, 256>}, {pipeline_mode = #tpu.pipeline_mode<synchronous>, transform_indices = @transform_10, window_bounds = array<i64: 3, 256>}, {pipeline_mode = #tpu.pipeline_mode<synchronous>, transform_indices = @transform_11, window_bounds = array<i64: 1, 256>}, {pipeline_mode = #tpu.pipeline_mode<synchronous>, transform_indices = @transform_12, window_bounds = array<i64: 256, 128>}, {pipeline_mode = #tpu.pipeline_mode<synchronous>, transform_indices = @transform_13, window_bounds = array<i64: 1, 128>}, {pipeline_mode = #tpu.pipeline_mode<synchronous>, transform_indices = @transform_14, window_bounds = array<i64: 128, 3>}, {pipeline_mode = #tpu.pipeline_mode<synchronous>, transform_indices = @transform_15, window_bounds = array<i64: 1, 3>}, {transform_indices = @transform_16, window_bounds = array<i64: 4, 16, 3>}]} {
    %c0 = arith.constant 0 : index
    %c0_0 = arith.constant 0 : index
    %0 = vector.load %arg1[%c0, %c0_0] : memref<16x32xbf16, #tpu.memory_space<vmem>>, vector<16x32xbf16>
    %c0_1 = arith.constant 0 : index
    %c0_2 = arith.constant 0 : index
    %1 = vector.load %arg2[%c0_1, %c0_2] : memref<16x3xf32, #tpu.memory_space<vmem>>, vector<16x3xf32>
    %c0_3 = arith.constant 0 : index
    %c0_4 = arith.constant 0 : index
    %2 = vector.load %arg4[%c0_3, %c0_4] : memref<32x256xbf16, #tpu.memory_space<vmem>>, vector<32x256xbf16>
    %cst = arith.constant dense<0.000000e+00> : vector<16x256xf32>
    %3 = tpu.matmul %0, %2, %cst {dimension_numbers = #tpu.dot_dimension_numbers<[1], [0], [0], [1], [0, 0, 1, 1], [], []>} : vector<16x32xbf16>, vector<32x256xbf16>, vector<16x256xf32> -> vector<16x256xf32>
    %c0_5 = arith.constant 0 : index
    %c0_6 = arith.constant 0 : index
    %4 = vector.load %arg5[%c0_5, %c0_6] : memref<1x256xf32, #tpu.memory_space<vmem>>, vector<1x256xf32>
    %5 = vector.broadcast %4 : vector<1x256xf32> to vector<16x256xf32>
    %6 = arith.addf %3, %5 : vector<16x256xf32>
    %c0_7 = arith.constant 0 : index
    %c0_8 = arith.constant 0 : index
    %7 = vector.load %arg10[%c0_7, %c0_8] : memref<32x256xbf16, #tpu.memory_space<vmem>>, vector<32x256xbf16>
    %cst_9 = arith.constant dense<0.000000e+00> : vector<16x256xf32>
    %8 = tpu.matmul %0, %7, %cst_9 {dimension_numbers = #tpu.dot_dimension_numbers<[1], [0], [0], [1], [0, 0, 1, 1], [], []>} : vector<16x32xbf16>, vector<32x256xbf16>, vector<16x256xf32> -> vector<16x256xf32>
    %c0_10 = arith.constant 0 : index
    %c0_11 = arith.constant 0 : index
    %9 = vector.load %arg12[%c0_10, %c0_11] : memref<1x256xf32, #tpu.memory_space<vmem>>, vector<1x256xf32>
    %10 = vector.broadcast %9 : vector<1x256xf32> to vector<16x256xf32>
    %11 = arith.addf %8, %10 : vector<16x256xf32>
    %c0_12 = arith.constant 0 : index
    %c0_13 = arith.constant 0 : index
    %12 = vector.load %arg6[%c0_12, %c0_13] : memref<256x128xbf16, #tpu.memory_space<vmem>>, vector<256x128xbf16>
    %c0_14 = arith.constant 0 : index
    %c0_15 = arith.constant 0 : index
    %13 = vector.load %arg7[%c0_14, %c0_15] : memref<1x128xf32, #tpu.memory_space<vmem>>, vector<1x128xf32>
    %c0_16 = arith.constant 0 : index
    %c0_17 = arith.constant 0 : index
    %14 = vector.load %arg8[%c0_16, %c0_17] : memref<128x3xbf16, #tpu.memory_space<vmem>>, vector<128x3xbf16>
    %c0_18 = arith.constant 0 : index
    %c0_19 = arith.constant 0 : index
    %15 = vector.load %arg9[%c0_18, %c0_19] : memref<1x3xf32, #tpu.memory_space<vmem>>, vector<1x3xf32>
    %c0_20 = arith.constant 0 : index
    %c0_21 = arith.constant 0 : index
    %16 = vector.load %arg11[%c0_20, %c0_21] : memref<3x256xbf16, #tpu.memory_space<vmem>>, vector<3x256xbf16>
    %c0_22 = arith.constant 0 : index
    %c0_23 = arith.constant 0 : index
    %17 = vector.load %arg13[%c0_22, %c0_23] : memref<256x128xbf16, #tpu.memory_space<vmem>>, vector<256x128xbf16>
    %c0_24 = arith.constant 0 : index
    %c0_25 = arith.constant 0 : index
    %18 = vector.load %arg14[%c0_24, %c0_25] : memref<1x128xf32, #tpu.memory_space<vmem>>, vector<1x128xf32>
    %c0_26 = arith.constant 0 : index
    %c0_27 = arith.constant 0 : index
    %19 = vector.load %arg15[%c0_26, %c0_27] : memref<128x3xbf16, #tpu.memory_space<vmem>>, vector<128x3xbf16>
    %c0_28 = arith.constant 0 : index
    %c0_29 = arith.constant 0 : index
    %20 = vector.load %arg16[%c0_28, %c0_29] : memref<1x3xf32, #tpu.memory_space<vmem>>, vector<1x3xf32>
    %c0_i32 = arith.constant 0 : i32
    %c4_i32 = arith.constant 4 : i32
    %21 = arith.addi %c0_i32, %c4_i32 : i32
    %c1_i32 = arith.constant 1 : i32
    scf.for %arg18 = %c0_i32 to %21 step %c1_i32  : i32 {
      %22 = arith.index_cast %arg18 : i32 to index
      %c0_31 = arith.constant 0 : index
      %23 = vector.load %arg3[%22, %c0_31] : memref<4x256xf32, #tpu.memory_space<vmem>>, vector<1x256xf32>
      %24 = vector.broadcast %23 : vector<1x256xf32> to vector<16x256xf32>
      %25 = arith.addf %6, %24 : vector<16x256xf32>
      %cst_32 = arith.constant 0.000000e+00 : f32
      %26 = vector.broadcast %cst_32 : f32 to vector<16x256xf32>
      %27 = arith.maximumf %25, %26 : vector<16x256xf32>
      %28 = arith.truncf %27 : vector<16x256xf32> to vector<16x256xbf16>
      %cst_33 = arith.constant dense<0.000000e+00> : vector<16x128xf32>
      %29 = tpu.matmul %28, %12, %cst_33 {dimension_numbers = #tpu.dot_dimension_numbers<[1], [0], [0], [1], [0, 0, 1, 1], [], []>} : vector<16x256xbf16>, vector<256x128xbf16>, vector<16x128xf32> -> vector<16x128xf32>
      %30 = vector.broadcast %13 : vector<1x128xf32> to vector<16x128xf32>
      %31 = arith.addf %29, %30 : vector<16x128xf32>
      %cst_34 = arith.constant 0.000000e+00 : f32
      %32 = vector.broadcast %cst_34 : f32 to vector<16x128xf32>
      %33 = arith.maximumf %31, %32 : vector<16x128xf32>
      %34 = arith.truncf %33 : vector<16x128xf32> to vector<16x128xbf16>
      %cst_35 = arith.constant dense<0.000000e+00> : vector<16x3xf32>
      %35 = tpu.matmul %34, %14, %cst_35 {dimension_numbers = #tpu.dot_dimension_numbers<[1], [0], [0], [1], [0, 0, 1, 1], [], []>} : vector<16x128xbf16>, vector<128x3xbf16>, vector<16x3xf32> -> vector<16x3xf32>
      %36 = vector.broadcast %15 : vector<1x3xf32> to vector<16x3xf32>
      %37 = arith.addf %35, %36 : vector<16x3xf32>
      %38 = arith.truncf %37 : vector<16x3xf32> to vector<16x3xbf16>
      %cst_36 = arith.constant dense<0.000000e+00> : vector<16x256xf32>
      %39 = tpu.matmul %38, %16, %cst_36 {dimension_numbers = #tpu.dot_dimension_numbers<[1], [0], [0], [1], [0, 0, 1, 1], [], []>} : vector<16x3xbf16>, vector<3x256xbf16>, vector<16x256xf32> -> vector<16x256xf32>
      %40 = arith.addf %11, %39 : vector<16x256xf32>
      %cst_37 = arith.constant 0.000000e+00 : f32
      %41 = vector.broadcast %cst_37 : f32 to vector<16x256xf32>
      %42 = arith.maximumf %40, %41 : vector<16x256xf32>
      %43 = arith.truncf %42 : vector<16x256xf32> to vector<16x256xbf16>
      %cst_38 = arith.constant dense<0.000000e+00> : vector<16x128xf32>
      %44 = tpu.matmul %43, %17, %cst_38 {dimension_numbers = #tpu.dot_dimension_numbers<[1], [0], [0], [1], [0, 0, 1, 1], [], []>} : vector<16x256xbf16>, vector<256x128xbf16>, vector<16x128xf32> -> vector<16x128xf32>
      %45 = vector.broadcast %18 : vector<1x128xf32> to vector<16x128xf32>
      %46 = arith.addf %44, %45 : vector<16x128xf32>
      %cst_39 = arith.constant 0.000000e+00 : f32
      %47 = vector.broadcast %cst_39 : f32 to vector<16x128xf32>
      %48 = arith.maximumf %46, %47 : vector<16x128xf32>
      %49 = arith.truncf %48 : vector<16x128xf32> to vector<16x128xbf16>
      %cst_40 = arith.constant dense<0.000000e+00> : vector<16x3xf32>
      %50 = tpu.matmul %49, %19, %cst_40 {dimension_numbers = #tpu.dot_dimension_numbers<[1], [0], [0], [1], [0, 0, 1, 1], [], []>} : vector<16x128xbf16>, vector<128x3xbf16>, vector<16x3xf32> -> vector<16x3xf32>
      %51 = vector.broadcast %20 : vector<1x3xf32> to vector<16x3xf32>
      %52 = arith.addf %50, %51 : vector<16x3xf32>
      %53 = arith.addf %52, %1 : vector<16x3xf32>
      %54 = arith.index_cast %arg18 : i32 to index
      %c0_41 = arith.constant 0 : index
      %c0_42 = arith.constant 0 : index
      %55 = vector.load %arg17[%54, %c0_41, %c0_42] : memref<4x16x3xf32, #tpu.memory_space<vmem>>, vector<1x16x3xf32>
      %56 = vector.shape_cast %55 : vector<1x16x3xf32> to vector<16x3xf32>
      %57 = vector.shape_cast %53 : vector<16x3xf32> to vector<1x16x3xf32>
      tpu.vector_store %arg17[%54, %c0_41, %c0_42], %57 {strides = array<i32>} : memref<4x16x3xf32, #tpu.memory_space<vmem>>, vector<1x16x3xf32>,
    }
    %c4_i32_30 = arith.constant 4 : i32
    return
  }
  func.func @transform_0(%arg0: i32) -> (i32, i32) {
    %c0_i32 = arith.constant 0 : i32
    %c0_i32_0 = arith.constant 0 : i32
    return %arg0, %c0_i32 : i32, i32
  }
  func.func @transform_1(%arg0: i32) -> (i32, i32) {
    %c0_i32 = arith.constant 0 : i32
    %c0_i32_0 = arith.constant 0 : i32
    return %arg0, %c0_i32 : i32, i32
  }
  func.func @transform_2(%arg0: i32) -> (i32, i32) {
    %c0_i32 = arith.constant 0 : i32
    %c0_i32_0 = arith.constant 0 : i32
    %c0_i32_1 = arith.constant 0 : i32
    return %c0_i32, %c0_i32_0 : i32, i32
  }
  func.func @transform_3(%arg0: i32) -> (i32, i32) {
    %c0_i32 = arith.constant 0 : i32
    %c0_i32_0 = arith.constant 0 : i32
    %c0_i32_1 = arith.constant 0 : i32
    return %c0_i32, %c0_i32_0 : i32, i32
  }
  func.func @transform_4(%arg0: i32) -> (i32, i32) {
    %c0_i32 = arith.constant 0 : i32
    %c0_i32_0 = arith.constant 0 : i32
    %c0_i32_1 = arith.constant 0 : i32
    return %c0_i32, %c0_i32_0 : i32, i32
  }
  func.func @transform_5(%arg0: i32) -> (i32, i32) {
    %c0_i32 = arith.constant 0 : i32
    %c0_i32_0 = arith.constant 0 : i32
    %c0_i32_1 = arith.constant 0 : i32
    return %c0_i32, %c0_i32_0 : i32, i32
  }
  func.func @transform_6(%arg0: i32) -> (i32, i32) {
    %c0_i32 = arith.constant 0 : i32
    %c0_i32_0 = arith.constant 0 : i32
    %c0_i32_1 = arith.constant 0 : i32
    return %c0_i32, %c0_i32_0 : i32, i32
  }
  func.func @transform_7(%arg0: i32) -> (i32, i32) {
    %c0_i32 = arith.constant 0 : i32
    %c0_i32_0 = arith.constant 0 : i32
    %c0_i32_1 = arith.constant 0 : i32
    return %c0_i32, %c0_i32_0 : i32, i32
  }
  func.func @transform_8(%arg0: i32) -> (i32, i32) {
    %c0_i32 = arith.constant 0 : i32
    %c0_i32_0 = arith.constant 0 : i32
    %c0_i32_1 = arith.constant 0 : i32
    return %c0_i32, %c0_i32_0 : i32, i32
  }
  func.func @transform_9(%arg0: i32) -> (i32, i32) {
    %c0_i32 = arith.constant 0 : i32
    %c0_i32_0 = arith.constant 0 : i32
    %c0_i32_1 = arith.constant 0 : i32
    return %c0_i32, %c0_i32_0 : i32, i32
  }
  func.func @transform_10(%arg0: i32) -> (i32, i32) {
    %c0_i32 = arith.constant 0 : i32
    %c0_i32_0 = arith.constant 0 : i32
    %c0_i32_1 = arith.constant 0 : i32
    return %c0_i32, %c0_i32_0 : i32, i32
  }
  func.func @transform_11(%arg0: i32) -> (i32, i32) {
    %c0_i32 = arith.constant 0 : i32
    %c0_i32_0 = arith.constant 0 : i32
    %c0_i32_1 = arith.constant 0 : i32
    return %c0_i32, %c0_i32_0 : i32, i32
  }
  func.func @transform_12(%arg0: i32) -> (i32, i32) {
    %c0_i32 = arith.constant 0 : i32
    %c0_i32_0 = arith.constant 0 : i32
    %c0_i32_1 = arith.constant 0 : i32
    return %c0_i32, %c0_i32_0 : i32, i32
  }
  func.func @transform_13(%arg0: i32) -> (i32, i32) {
    %c0_i32 = arith.constant 0 : i32
    %c0_i32_0 = arith.constant 0 : i32
    %c0_i32_1 = arith.constant 0 : i32
    return %c0_i32, %c0_i32_0 : i32, i32
  }
  func.func @transform_14(%arg0: i32) -> (i32, i32) {
    %c0_i32 = arith.constant 0 : i32
    %c0_i32_0 = arith.constant 0 : i32
    %c0_i32_1 = arith.constant 0 : i32
    return %c0_i32, %c0_i32_0 : i32, i32
  }
  func.func @transform_15(%arg0: i32) -> (i32, i32) {
    %c0_i32 = arith.constant 0 : i32
    %c0_i32_0 = arith.constant 0 : i32
    %c0_i32_1 = arith.constant 0 : i32
    return %c0_i32, %c0_i32_0 : i32, i32
  }
  func.func @transform_16(%arg0: i32) -> (i32, i32, i32) {
    %c0_i32 = arith.constant 0 : i32
    %c0_i32_0 = arith.constant 0 : i32
    %c0_i32_1 = arith.constant 0 : i32
    return %c0_i32, %arg0, %c0_i32_0 : i32, i32, i32
  }
}

</mosaic_0001>

<llo_original>
// kernel: custom-call.4
$region0: #{custom-call.4}
  %s0 = inlined_call_operand.vmem [shape: f32[2,16], index: 0, kind: output, shape index: {}]

// kernel: pointr_forward.4
$region0: #{pointr_forward.4}
  #allocation0 [shape = 'u32[]', space=smem, size = 0x4, offset = 0x4, fixed_abs, tag = 'smem constant byte address 0x4 - core index']
  #allocation1 [shape = 'u32[144,128]{1,0:T(1,128)}', space=vmem, size = 0x12000, scoped, tag = 'internal scratch']
  %s0 = inlined_call_operand.vmem [shape: bf16[16,3], index: 0, kind: input, shape index: {}]
  %s1 = inlined_call_operand.vmem [shape: bf16[3,32], index: 1, kind: input, shape index: {}]
  %s2 = inlined_call_operand.hbm [shape: f32[1,32], index: 2, kind: input, shape index: {}]
  %s3 = inlined_call_operand.vmem [shape: f32[16,32], index: 3, kind: output, shape index: {}]
  %s4 = sld [smem:[#allocation0]]
  $region26: #{pointr_forward.4} parent=0
    _
  %s6 = ssub.s32 1, %s4
  %s7 = scalar_select 0, %s6, %s4
  $region1: #{pointr_forward.4} parent=0
    #allocation2 [shape = 'u8[512]{0}', space=vmem, size = 0x400, scoped, tag = 'input window, operand 2, single buffered']
    #allocation3 [shape = 's32[1]{0}', space=sflag, size = 0x4, scoped, tag = 'scoped memory for pointr_forward.4']
    %8 = vsyncpa [#allocation3], 0
    // Predicated region
    $region2: #{pointr_forward.4} parent=1 // pred_check
      _
    $region3: #{pointr_forward.4} parent=1 // pred_check_branch
      %10 = sbr.rel (0) target = $region5
    $region4: #{pointr_forward.4} parent=1 // pred_region
      _
    $region5: #{pointr_forward.4} parent=1 // pred_fallthru
      _
    // Predicated region
    $region6: #{pointr_forward.4} parent=1 // pred_check
      _
    $region7: #{pointr_forward.4} parent=1 // pred_check_branch
      %12 = sbr.rel (0) target = $region9
    $region8: #{pointr_forward.4} parent=1 // pred_region
      _
    $region9: #{pointr_forward.4} parent=1 // pred_fallthru
      _
    // Predicated region
    $region10: #{pointr_forward.4} parent=1 // pred_check
      _
    $region11: #{pointr_forward.4} parent=1 // pred_check_branch
      %14 = sbr.rel (0) target = $region13
    $region12: #{pointr_forward.4} parent=1 // pred_region
      %s16 = ssub.s32 16, 16
      %17 = vsyncadd [#allocation3], %s16
      %s19 = sshll.u32 [#allocation2], 4
      %s20 = int_to_ptr.vmem [resolvable:$true] %s19
      %22 = dma.hbm_to_vmem [thread:$0]  %s2, 16, %s20, [#allocation3]
    $region13: #{pointr_forward.4} parent=1 // pred_fallthru
      _
    // Predicated region
    $region14: #{pointr_forward.4} parent=1 // pred_check
      _
    $region15: #{pointr_forward.4} parent=1 // pred_check_branch
      %24 = sbr.rel (0) target = $region17
    $region16: #{pointr_forward.4} parent=1 // pred_region
      %25 = dma.done [#allocation3], 16
    $region17: #{pointr_forward.4} parent=1 // pred_fallthru
      _
    %v27 = vld [vmem:[%s0] sm:$0xf]
    %v28 = vld [vmem:[%s0 + $0x4] sm:$0xf]
    %v29 = vld [vmem:[%s1] sm:$0x3]
    %v30 = vld [vmem:[#allocation2] sm:$0x1]
    %v32 = vlaneseq
    %v33 = vshrl.u32 %v32, 7
    %v34 = vsub.s32 0, %v33
    %v35 = vrot.slane %v30, %v34
    %v39 = vunpack.c.l.b16 %v27
    %v40 = vunpack.c.l.b16 %v28
    %v41 = vpack.c.b16 %v40, %v39
    %vm42 = vcmask 23552
    %v44 = vsel %vm42, %v41, 0
    %vm46 = vcmask 1040384
    %vm47 = vcmask 1041408
    %v48 = vsel %vm46, 4294967295, 65535
    %v49 = vsel %vm47, %v48, 0
    %v51 = vand.u32 %v29, %v49
    %53 = vmatprep.subr.bf16.mxu0 0
    %54 = vmatpush1.bf16.msra.mxu0 %v51
    %55 = vmatprep.subr.bf16.mxu0 0
    %56 = vmatpush1.bf16.msra.mxu0 0
    %57 = vmatprep.subr.bf16.mxu0 0
    %58 = vmatpush1.bf16.msra.mxu0 0
    %59 = vmatprep.subr.bf16.mxu0 0
    %60 = vmatpush1.bf16.msra.mxu0 0
    %61 = vmatprep.subr.bf16.mxu0 0
    %62 = vmatpush1.bf16.msra.mxu0 0
    %63 = vmatprep.subr.bf16.mxu0 0
    %64 = vmatpush1.bf16.msra.mxu0 0
    %65 = vmatprep.subr.bf16.mxu0 0
    %66 = vmatpush1.bf16.msra.mxu0 0
    %67 = vmatprep.subr.bf16.mxu0 0
    %68 = vmatpush1.bf16.msra.mxu0 0
    %69 = vmatprep.subr.bf16.mxu0 0
    %70 = vmatpush1.bf16.msra.mxu0 0
    %71 = vmatprep.subr.bf16.mxu0 0
    %72 = vmatpush1.bf16.msra.mxu0 0
    %73 = vmatprep.subr.bf16.mxu0 0
    %74 = vmatpush1.bf16.msra.mxu0 0
    %75 = vmatprep.subr.bf16.mxu0 0
    %76 = vmatpush1.bf16.msra.mxu0 0
    %77 = vmatprep.subr.bf16.mxu0 0
    %78 = vmatpush1.bf16.msra.mxu0 0
    %79 = vmatprep.subr.bf16.mxu0 0
    %80 = vmatpush1.bf16.msra.mxu0 0
    %81 = vmatprep.subr.bf16.mxu0 0
    %82 = vmatpush1.bf16.msra.mxu0 0
    %83 = vmatprep.subr.bf16.mxu0 0
    %84 = vmatpush1.bf16.msra.mxu0 0
    %85 = vmatprep.mubr.bf16.mxu0 0
    %86 = vmatmul.mubr.bf16.gmra.mrb[0].mxu0 %v44
    %v87 = vpop.f32.mrb[0].mxu0
    %v88 = vadd.f32 %v35, %v87
    %v89 = vpop.f32.mrb[0].mxu0
    %v90 = vpop.f32.mrb[0].mxu0
    %v91 = vadd.f32 %v35, %v90
    %v92 = vpop.f32.mrb[0].mxu0
    %93 = vdwg.mxu0
    %v94 = vmax.f32 %v88, 0.0
    %v95 = vmax.f32 %v91, 0.0
    %vm96 = vcmask 261120
    %97 = vst.msk [vmem:[%s3] sm:$0xff] %vm96, %v94
    %98 = vst.msk [vmem:[%s3 + $0x8] sm:$0xff] %vm96, %v95
    // Predicated region
    $region18: #{pointr_forward.4} parent=1 // pred_check
      _
    $region19: #{pointr_forward.4} parent=1 // pred_check_branch
      %100 = sbr.rel (0) target = $region21
    $region20: #{pointr_forward.4} parent=1 // pred_region
      _
    $region21: #{pointr_forward.4} parent=1 // pred_fallthru
      _
    // Predicated region
    $region22: #{pointr_forward.4} parent=1 // pred_check
      _
    $region23: #{pointr_forward.4} parent=1 // pred_check_branch
      %102 = sbr.rel (0) target = $region25
    $region24: #{pointr_forward.4} parent=1 // pred_region
      _
    $region25: #{pointr_forward.4} parent=1 // pred_fallthru
      _
    %103 = vsyncpa [#allocation3], 1

// kernel: pointr_forward.6
$region0: #{pointr_forward.6}
  #allocation0 [shape = 'u32[]', space=smem, size = 0x4, offset = 0x4, fixed_abs, tag = 'smem constant byte address 0x4 - core index']
  #allocation1 [shape = 'u32[144,128]{1,0:T(1,128)}', space=vmem, size = 0x12000, scoped, tag = 'internal scratch']
  %s0 = inlined_call_operand.vmem [shape: bf16[2,8,32], index: 0, kind: input, shape index: {}]
  %s1 = inlined_call_operand.vmem [shape: bf16[2,8,3], index: 1, kind: input, shape index: {}]
  %s2 = inlined_call_operand.vmem [shape: f32[2,1,32], index: 2, kind: input, shape index: {}]
  %s3 = inlined_call_operand.vmem [shape: bf16[32,32], index: 3, kind: input, shape index: {}]
  %s4 = inlined_call_operand.vmem [shape: bf16[3,32], index: 4, kind: input, shape index: {}]
  %s5 = inlined_call_operand.vmem [shape: f32[1,32], index: 5, kind: input, shape index: {}]
  %s6 = inlined_call_operand.vmem [shape: bf16[2,8,32], index: 6, kind: output, shape index: {}]
  %s7 = sld [smem:[#allocation0]]
  $region57: #{pointr_forward.6} parent=0
    _
  %s9 = ssub.s32 1, %s7
  %s10 = scalar_select 0, %s9, %s7
  loop: start=0, step=1, limit=4
  $region2: #{pointr_forward.6} parent=0 // loop_pre_header
    _
  $region3: #{pointr_forward.6} parent=0 // loop_header
    %s12 = sphi 0, %s16
    %p13 = scmp.ge.s32.totalorder %s12, 4
    %s22 = sphi 0, %s24
    %s25 = sphi 0, %s22
    %s26 = sphi 0, %s25
    %s42 = sphi 0, %s26
    %s48 = sphi 0, %s50
    %s51 = sphi 0, %s48
    %s52 = sphi 0, %s51
    %s68 = sphi 0, %s52
    %s74 = sphi 0, %s76
    %s77 = sphi 0, %s74
    %s78 = sphi 0, %s77
    %s94 = sphi 0, %s78
    %s98 = sphi 0, %s98
    %s100 = sphi 0, %s98
    %s101 = sphi 0, %s100
    %s115 = sphi 0, %s101
    %s119 = sphi 0, %s119
    %s121 = sphi 0, %s119
    %s122 = sphi 0, %s121
    %s136 = sphi 0, %s122
    %s140 = sphi 0, %s140
    %s142 = sphi 0, %s140
    %s143 = sphi 0, %s142
    %s157 = sphi 0, %s143
    %s163 = sphi 0, %s165
    %s166 = sphi 0, %s163
    %s167 = sphi 0, %s166
    %s183 = sphi 0, %s167
  $region4: #{pointr_forward.6} parent=0 // loop_header_branch
    %15 = sbr.rel (%p13) target = $region8
  $region5: #{pointr_forward.6} parent=0 // loop_body
    %s17 = ssub.s32 %s12, 1
    %s18 = ssub.s32 %s12, 2
    %s19 = sadd.s32 %s12, 1
    %s20 = ssub.s32 %s12, %s19
    %p21 = scmp.eq.s32.totalorder %s20, 0
    %s23 = sadd.s32 %s22, 1
    %s24 = scalar_select %p21, %s22, %s23
    %p27 = pneg %p21
    %p28 = scmp.eq.s32.totalorder %s12, 1
    %p29 = por %p27, %p28
    %p30 = scmp.ne.s32.totalorder %s22, %s25
    %p31 = scmp.eq.s32.totalorder %s12, 0
    %p32 = por %p30, %p31
    %p33 = scmp.ne.s32.totalorder %s22, %s25
    %p34 = scmp.eq.s32.totalorder %s17, 1
    %p35 = por %p33, %p34
    %p36 = scmp.ne.s32.totalorder %s25, %s26
    %p37 = scmp.eq.s32.totalorder %s17, 0
    %p38 = por %p36, %p37
    %p39 = scmp.ne.s32.totalorder %s25, %s26
    %p40 = scmp.eq.s32.totalorder %s18, 1
    %p41 = por %p39, %p40
    %p43 = scmp.ne.s32.totalorder %s26, %s42
    %p44 = scmp.eq.s32.totalorder %s18, 0
    %p45 = por %p43, %p44
    %s46 = ssub.s32 %s12, %s19
    %p47 = scmp.eq.s32.totalorder %s46, 0
    %s49 = sadd.s32 %s48, 1
    %s50 = scalar_select %p47, %s48, %s49
    %p53 = pneg %p47
    %p54 = scmp.eq.s32.totalorder %s12, 1
    %p55 = por %p53, %p54
    %p56 = scmp.ne.s32.totalorder %s48, %s51
    %p57 = scmp.eq.s32.totalorder %s12, 0
    %p58 = por %p56, %p57
    %p59 = scmp.ne.s32.totalorder %s48, %s51
    %p60 = scmp.eq.s32.totalorder %s17, 1
    %p61 = por %p59, %p60
    %p62 = scmp.ne.s32.totalorder %s51, %s52
    %p63 = scmp.eq.s32.totalorder %s17, 0
    %p64 = por %p62, %p63
    %p65 = scmp.ne.s32.totalorder %s51, %s52
    %p66 = scmp.eq.s32.totalorder %s18, 1
    %p67 = por %p65, %p66
    %p69 = scmp.ne.s32.totalorder %s52, %s68
    %p70 = scmp.eq.s32.totalorder %s18, 0
    %p71 = por %p69, %p70
    %s72 = ssub.s32 %s12, %s19
    %p73 = scmp.eq.s32.totalorder %s72, 0
    %s75 = sadd.s32 %s74, 1
    %s76 = scalar_select %p73, %s74, %s75
    %p79 = pneg %p73
    %p80 = scmp.eq.s32.totalorder %s12, 1
    %p81 = por %p79, %p80
    %p82 = scmp.ne.s32.totalorder %s74, %s77
    %p83 = scmp.eq.s32.totalorder %s12, 0
    %p84 = por %p82, %p83
    %p85 = scmp.ne.s32.totalorder %s74, %s77
    %p86 = scmp.eq.s32.totalorder %s17, 1
    %p87 = por %p85, %p86
    %p88 = scmp.ne.s32.totalorder %s77, %s78
    %p89 = scmp.eq.s32.totalorder %s17, 0
    %p90 = por %p88, %p89
    %p91 = scmp.ne.s32.totalorder %s77, %s78
    %p92 = scmp.eq.s32.totalorder %s18, 1
    %p93 = por %p91, %p92
    %p95 = scmp.ne.s32.totalorder %s78, %s94
    %p96 = scmp.eq.s32.totalorder %s18, 0
    %p97 = por %p95, %p96
    %s99 = sadd.s32 %s98, 1
    %p102 = scmp.eq.s32.totalorder %s12, 1
    %p103 = scmp.ne.s32.totalorder %s98, %s100
    %p104 = scmp.eq.s32.totalorder %s12, 0
    %p105 = por %p103, %p104
    %p106 = scmp.ne.s32.totalorder %s98, %s100
    %p107 = scmp.eq.s32.totalorder %s17, 1
    %p108 = por %p106, %p107
    %p109 = scmp.ne.s32.totalorder %s100, %s101
    %p110 = scmp.eq.s32.totalorder %s17, 0
    %p111 = por %p109, %p110
    %p112 = scmp.ne.s32.totalorder %s100, %s101
    %p113 = scmp.eq.s32.totalorder %s18, 1
    %p114 = por %p112, %p113
    %p116 = scmp.ne.s32.totalorder %s101, %s115
    %p117 = scmp.eq.s32.totalorder %s18, 0
    %p118 = por %p116, %p117
    %s120 = sadd.s32 %s119, 1
    %p123 = scmp.eq.s32.totalorder %s12, 1
    %p124 = scmp.ne.s32.totalorder %s119, %s121
    %p125 = scmp.eq.s32.totalorder %s12, 0
    %p126 = por %p124, %p125
    %p127 = scmp.ne.s32.totalorder %s119, %s121
    %p128 = scmp.eq.s32.totalorder %s17, 1
    %p129 = por %p127, %p128
    %p130 = scmp.ne.s32.totalorder %s121, %s122
    %p131 = scmp.eq.s32.totalorder %s17, 0
    %p132 = por %p130, %p131
    %p133 = scmp.ne.s32.totalorder %s121, %s122
    %p134 = scmp.eq.s32.totalorder %s18, 1
    %p135 = por %p133, %p134
    %p137 = scmp.ne.s32.totalorder %s122, %s136
    %p138 = scmp.eq.s32.totalorder %s18, 0
    %p139 = por %p137, %p138
    %s141 = sadd.s32 %s140, 1
    %p144 = scmp.eq.s32.totalorder %s12, 1
    %p145 = scmp.ne.s32.totalorder %s140, %s142
    %p146 = scmp.eq.s32.totalorder %s12, 0
    %p147 = por %p145, %p146
    %p148 = scmp.ne.s32.totalorder %s140, %s142
    %p149 = scmp.eq.s32.totalorder %s17, 1
    %p150 = por %p148, %p149
    %p151 = scmp.ne.s32.totalorder %s142, %s143
    %p152 = scmp.eq.s32.totalorder %s17, 0
    %p153 = por %p151, %p152
    %p154 = scmp.ne.s32.totalorder %s142, %s143
    %p155 = scmp.eq.s32.totalorder %s18, 1
    %p156 = por %p154, %p155
    %p158 = scmp.ne.s32.totalorder %s143, %s157
    %p159 = scmp.eq.s32.totalorder %s18, 0
    %p160 = por %p158, %p159
    %s161 = ssub.s32 %s12, %s19
    %p162 = scmp.eq.s32.totalorder %s161, 0
    %s164 = sadd.s32 %s163, 1
    %s165 = scalar_select %p162, %s163, %s164
    %p168 = pneg %p162
    %p169 = scmp.eq.s32.totalorder %s12, 1
    %p170 = por %p168, %p169
    %p171 = scmp.ne.s32.totalorder %s163, %s166
    %p172 = scmp.eq.s32.totalorder %s12, 0
    %p173 = por %p171, %p172
    %p174 = scmp.ne.s32.totalorder %s163, %s166
    %p175 = scmp.eq.s32.totalorder %s17, 1
    %p176 = por %p174, %p175
    %p177 = scmp.ne.s32.totalorder %s166, %s167
    %p178 = scmp.eq.s32.totalorder %s17, 0
    %p179 = por %p177, %p178
    %p180 = scmp.ne.s32.totalorder %s166, %s167
    %p181 = scmp.eq.s32.totalorder %s18, 1
    %p182 = por %p180, %p181
    %p184 = scmp.ne.s32.totalorder %s167, %s183
    %p185 = scmp.eq.s32.totalorder %s18, 0
    %p186 = por %p184, %p185
    %p187 = scmp.le.s32.totalorder 1, %s12
    %p188 = scmp.lt.s32.totalorder %s12, 3
    %p189 = pnand %p187, %p188
    %p190 = pneg %p189
    // Predicated region
    $region9: #{pointr_forward.6} parent=5 // pred_check
      _
    $region10: #{pointr_forward.6} parent=5 // pred_check_branch
      %192 = sbr.rel (%p189) target = $region12
    $region11: #{pointr_forward.6} parent=5 // pred_region
      %s193 = ssub.s32 %s12, 1
      // Predicated region
      $region13: #{pointr_forward.6} parent=11 // pred_check
        %p194 = pneg %p111
      $region14: #{pointr_forward.6} parent=11 // pred_check_branch
        %196 = sbr.rel (%p194) target = $region16
      $region15: #{pointr_forward.6} parent=11 // pred_region
        _
      $region16: #{pointr_forward.6} parent=11 // pred_fallthru
        _
      // Predicated region
      $region17: #{pointr_forward.6} parent=11 // pred_check
        %p197 = pneg %p132
      $region18: #{pointr_forward.6} parent=11 // pred_check_branch
        %199 = sbr.rel (%p197) target = $region20
      $region19: #{pointr_forward.6} parent=11 // pred_region
        _
      $region20: #{pointr_forward.6} parent=11 // pred_fallthru
        _
      // Predicated region
      $region21: #{pointr_forward.6} parent=11 // pred_check
        %p200 = pneg %p153
      $region22: #{pointr_forward.6} parent=11 // pred_check_branch
        %202 = sbr.rel (%p200) target = $region24
      $region23: #{pointr_forward.6} parent=11 // pred_region
        _
      $region24: #{pointr_forward.6} parent=11 // pred_fallthru
        _
    $region12: #{pointr_forward.6} parent=5 // pred_fallthru
      _
    %p203 = scmp.lt.s32.totalorder %s12, 2
    // Predicated region
    $region25: #{pointr_forward.6} parent=5 // pred_check
      %p204 = pneg %p203
    $region26: #{pointr_forward.6} parent=5 // pred_check_branch
      %206 = sbr.rel (%p204) target = $region28
    $region27: #{pointr_forward.6} parent=5 // pred_region
      // Predicated region
      $region29: #{pointr_forward.6} parent=27 // pred_check
        %p207 = pneg %p32
      $region30: #{pointr_forward.6} parent=27 // pred_check_branch
        %209 = sbr.rel (%p207) target = $region32
      $region31: #{pointr_forward.6} parent=27 // pred_region
        %p210 = scmp.lt.s32.totalorder %s12, 1
        %s211 = scalar_select %p210, %s12, 1
        %s212 = smul.addr %s211, 4
        %s213 = scalar_lea.vmem %s0, %s212
      $region32: #{pointr_forward.6} parent=27 // pred_fallthru
        _
      // Predicated region
      $region33: #{pointr_forward.6} parent=27 // pred_check
        %p214 = pneg %p58
      $region34: #{pointr_forward.6} parent=27 // pred_check_branch
        %216 = sbr.rel (%p214) target = $region36
      $region35: #{pointr_forward.6} parent=27 // pred_region
        %p217 = scmp.lt.s32.totalorder %s12, 1
        %s218 = scalar_select %p217, %s12, 1
        %s219 = smul.addr %s218, 4
        %s220 = scalar_lea.vmem %s1, %s219
      $region36: #{pointr_forward.6} parent=27 // pred_fallthru
        _
      // Predicated region
      $region37: #{pointr_forward.6} parent=27 // pred_check
        %p221 = pneg %p84
      $region38: #{pointr_forward.6} parent=27 // pred_check_branch
        %223 = sbr.rel (%p221) target = $region40
      $region39: #{pointr_forward.6} parent=27 // pred_region
        %p224 = scmp.lt.s32.totalorder %s12, 1
        %s225 = scalar_select %p224, %s12, 1
        %s226 = scalar_lea.vmem %s2, %s225
      $region40: #{pointr_forward.6} parent=27 // pred_fallthru
        _
    $region28: #{pointr_forward.6} parent=5 // pred_fallthru
      _
    %p227 = scmp.le.s32.totalorder 1, %s12
    %p228 = scmp.lt.s32.totalorder %s12, 3
    %p229 = pnand %p227, %p228
    %p230 = pneg %p229
    // Predicated region
    $region41: #{pointr_forward.6} parent=5 // pred_check
      _
    $region42: #{pointr_forward.6} parent=5 // pred_check_branch
      %232 = sbr.rel (%p229) target = $region44
    $region43: #{pointr_forward.6} parent=5 // pred_region
      %s233 = ssub.s32 %s12, 1
      %p234 = scmp.lt.s32.totalorder %s17, 1
      %s235 = scalar_select %p234, %s17, 1
      %s236 = smul.addr %s235, 4
      %s237 = scalar_lea.vmem %s0, %s236
      %p238 = pneg %p38
      %p239 = pneg %p35
      %p240 = scmp.lt.s32.totalorder %s17, 1
      %s241 = scalar_select %p240, %s17, 1
      %s242 = smul.addr %s241, 4
      %s243 = scalar_lea.vmem %s1, %s242
      %p244 = pneg %p64
      %p245 = pneg %p61
      %p246 = scmp.lt.s32.totalorder %s17, 1
      %s247 = scalar_select %p246, %s17, 1
      %s248 = scalar_lea.vmem %s2, %s247
      %p249 = pneg %p90
      %p250 = pneg %p87
      %p251 = pneg %p111
      %p252 = pneg %p108
      %p253 = pneg %p132
      %p254 = pneg %p129
      %p255 = pneg %p153
      %p256 = pneg %p150
      %p257 = pneg %p179
      %p258 = pneg %p176
      %p259 = scmp.lt.s32.totalorder %s17, 1
      %s260 = scalar_select %p259, %s17, 1
      %s261 = smul.addr %s260, 4
      %s262 = scalar_lea.vmem %s6, %s261
      %p263 = scmp.lt.s32.totalorder %s17, 1
      %s264 = scalar_select %p263, %s17, 1
      %s265 = smul.addr %s264, 4
      %s266 = scalar_lea.vmem %s0, %s265
      %p267 = scmp.lt.s32.totalorder %s17, 1
      %s268 = scalar_select %p267, %s17, 1
      %s269 = smul.addr %s268, 4
      %s270 = scalar_lea.vmem %s1, %s269
      %p271 = scmp.lt.s32.totalorder %s17, 1
      %s272 = scalar_select %p271, %s17, 1
      %s273 = scalar_lea.vmem %s2, %s272
      %p274 = scmp.lt.s32.totalorder %s17, 1
      %s275 = scalar_select %p274, %s17, 1
      %s276 = smul.addr %s275, 4
      %s277 = scalar_lea.vmem %s6, %s276
      %v279 = vld [vmem:[%s266] sm:$0xf]
      %v280 = vld [vmem:[%s3] sm:$0xf]
      %v281 = vld [vmem:[%s3 + $0x4] sm:$0xf]
      %v282 = vld [vmem:[%s3 + $0x8] sm:$0xf]
      %v283 = vld [vmem:[%s3 + $0xc] sm:$0xf]
      %v284 = vld [vmem:[%s270] sm:$0xf]
      %v285 = vld [vmem:[%s4] sm:$0x3]
      %vm286 = vcmask 23552
      %v288 = vsel %vm286, %v284, 0
      %vm290 = vcmask 1040384
      %vm291 = vcmask 1041408
      %v292 = vsel %vm290, 4294967295, 65535
      %v293 = vsel %vm291, %v292, 0
      %v295 = vand.u32 %v285, %v293
      %297 = vmatprep.subr.bf16.mxu0 0
      %298 = vmatpush1.bf16.msra.mxu0 %v295
      %299 = vmatprep.subr.bf16.mxu0 0
      %300 = vmatpush1.bf16.msra.mxu0 0
      %301 = vmatprep.subr.bf16.mxu0 0
      %302 = vmatpush1.bf16.msra.mxu0 0
      %303 = vmatprep.subr.bf16.mxu0 0
      %304 = vmatpush1.bf16.msra.mxu0 0
      %305 = vmatprep.subr.bf16.mxu0 0
      %306 = vmatpush1.bf16.msra.mxu0 0
      %307 = vmatprep.subr.bf16.mxu0 0
      %308 = vmatpush1.bf16.msra.mxu0 0
      %309 = vmatprep.subr.bf16.mxu0 0
      %310 = vmatpush1.bf16.msra.mxu0 0
      %311 = vmatprep.subr.bf16.mxu0 0
      %312 = vmatpush1.bf16.msra.mxu0 0
      %313 = vmatprep.subr.bf16.mxu0 0
      %314 = vmatpush1.bf16.msra.mxu0 0
      %315 = vmatprep.subr.bf16.mxu0 0
      %316 = vmatpush1.bf16.msra.mxu0 0
      %317 = vmatprep.subr.bf16.mxu0 0
      %318 = vmatpush1.bf16.msra.mxu0 0
      %319 = vmatprep.subr.bf16.mxu0 0
      %320 = vmatpush1.bf16.msra.mxu0 0
      %321 = vmatprep.subr.bf16.mxu0 0
      %322 = vmatpush1.bf16.msra.mxu0 0
      %323 = vmatprep.subr.bf16.mxu0 0
      %324 = vmatpush1.bf16.msra.mxu0 0
      %325 = vmatprep.subr.bf16.mxu0 0
      %326 = vmatpush1.bf16.msra.mxu0 0
      %327 = vmatprep.subr.bf16.mxu0 0
      %328 = vmatpush1.bf16.msra.mxu0 0
      %329 = vmatprep.mubr.bf16.mxu0 0
      %330 = vmatmul.mubr.bf16.gmra.mrb[0].mxu0 %v288
      %v331 = vpop.f32.mrb[0].mxu0
      %v332 = vadd.f32 0.0, %v331
      %v333 = vpop.f32.mrb[0].mxu0
      %v334 = vpop.f32.mrb[0].mxu0
      %v335 = vpop.f32.mrb[0].mxu0
      %336 = vdwg.mxu0
      %v341 = vunpack.c.l.b16 %v280
      %v342 = vunpack.c.l.b16 %v281
      %v343 = vunpack.c.l.b16 %v282
      %v344 = vunpack.c.l.b16 %v283
      %v345 = vpack.c.b16 %v342, %v341
      %v346 = vpack.c.b16 %v344, %v343
      %vm349 = vcmask 261120
      %v351 = vsel %vm349, %v279, 0
      %353 = vmatprep.subr.bf16.mxu0 0
      %354 = vmatpush1.bf16.msra.mxu0 %v345
      %355 = vmatprep.subr.bf16.mxu0 0
      %356 = vmatpush1.bf16.msra.mxu0 %v346
      %357 = vmatprep.subr.bf16.mxu0 0
      %358 = vmatpush1.bf16.msra.mxu0 0
      %359 = vmatprep.subr.bf16.mxu0 0
      %360 = vmatpush1.bf16.msra.mxu0 0
      %361 = vmatprep.subr.bf16.mxu0 0
      %362 = vmatpush1.bf16.msra.mxu0 0
      %363 = vmatprep.subr.bf16.mxu0 0
      %364 = vmatpush1.bf16.msra.mxu0 0
      %365 = vmatprep.subr.bf16.mxu0 0
      %366 = vmatpush1.bf16.msra.mxu0 0
      %367 = vmatprep.subr.bf16.mxu0 0
      %368 = vmatpush1.bf16.msra.mxu0 0
      %369 = vmatprep.subr.bf16.mxu0 0
      %370 = vmatpush1.bf16.msra.mxu0 0
      %371 = vmatprep.subr.bf16.mxu0 0
      %372 = vmatpush1.bf16.msra.mxu0 0
      %373 = vmatprep.subr.bf16.mxu0 0
      %374 = vmatpush1.bf16.msra.mxu0 0
      %375 = vmatprep.subr.bf16.mxu0 0
      %376 = vmatpush1.bf16.msra.mxu0 0
      %377 = vmatprep.subr.bf16.mxu0 0
      %378 = vmatpush1.bf16.msra.mxu0 0
      %379 = vmatprep.subr.bf16.mxu0 0
      %380 = vmatpush1.bf16.msra.mxu0 0
      %381 = vmatprep.subr.bf16.mxu0 0
      %382 = vmatpush1.bf16.msra.mxu0 0
      %383 = vmatprep.subr.bf16.mxu0 0
      %384 = vmatpush1.bf16.msra.mxu0 0
      %385 = vmatprep.mubr.bf16.mxu0 0
      %386 = vmatmul.mubr.bf16.gmra.mrb[0].mxu0 %v351
      %v387 = vpop.f32.mrb[0].mxu0
      %v388 = vadd.f32 %v332, %v387
      %v389 = vpop.f32.mrb[0].mxu0
      %v390 = vpop.f32.mrb[0].mxu0
      %v391 = vpop.f32.mrb[0].mxu0
      %392 = vdwg.mxu0
      %v393 = vld [vmem:[%s273] sm:$0x1]
      %v395 = vlaneseq
      %v396 = vshrl.u32 %v395, 7
      %v397 = vsub.s32 0, %v396
      %v398 = vrot.slane %v393, %v397
      %v400 = vadd.f32 %v388, %v398
      %v401 = vld [vmem:[%s5] sm:$0x1]
      %v403 = vlaneseq
      %v404 = vshrl.u32 %v403, 7
      %v405 = vsub.s32 0, %v404
      %v406 = vrot.slane %v401, %v405
      %v408 = vadd.f32 %v400, %v406
      %v409 = vpack.c.bf16 %v408, %v408
      %vm410 = vcmask 257024
      %411 = vst.msk [vmem:[%s277] sm:$0xf] %vm410, %v409
      %p412 = scmp.lt.s32.totalorder %s17, 1
      %s413 = scalar_select %p412, %s17, 1
      %s414 = smul.addr %s413, 4
      %s415 = scalar_lea.vmem %s6, %s414
      // Predicated region
      $region45: #{pointr_forward.6} parent=43 // pred_check
        %p416 = pneg %p176
      $region46: #{pointr_forward.6} parent=43 // pred_check_branch
        %418 = sbr.rel (%p416) target = $region48
      $region47: #{pointr_forward.6} parent=43 // pred_region
        _
      $region48: #{pointr_forward.6} parent=43 // pred_fallthru
        _
    $region44: #{pointr_forward.6} parent=5 // pred_fallthru
      _
    %p419 = scmp.le.s32.totalorder 2, %s12
    // Predicated region
    $region49: #{pointr_forward.6} parent=5 // pred_check
      %p420 = pneg %p419
    $region50: #{pointr_forward.6} parent=5 // pred_check_branch
      %422 = sbr.rel (%p420) target = $region52
    $region51: #{pointr_forward.6} parent=5 // pred_region
      %s423 = ssub.s32 %s12, 2
      // Predicated region
      $region53: #{pointr_forward.6} parent=51 // pred_check
        %p424 = pneg %p182
      $region54: #{pointr_forward.6} parent=51 // pred_check_branch
        %426 = sbr.rel (%p424) target = $region56
      $region55: #{pointr_forward.6} parent=51 // pred_region
        %p427 = scmp.lt.s32.totalorder %s18, 1
        %s428 = scalar_select %p427, %s18, 1
        %s429 = smul.addr %s428, 4
        %s430 = scalar_lea.vmem %s6, %s429
      $region56: #{pointr_forward.6} parent=51 // pred_fallthru
        _
    $region52: #{pointr_forward.6} parent=5 // pred_fallthru
      _
  $region6: #{pointr_forward.6} parent=0 // loop_footer
    %s16 = sadd.s32 1, %s12
  $region7: #{pointr_forward.6} parent=0 // loop_footer_branch
    %11 = sbr.rel target = $region3
  $region8: #{pointr_forward.6} parent=0 // loop_exit
    _

// kernel: tile.8
$region0: #{tile.8}
  #allocation0 [shape = 's32[1]{0}', space=sflag, size = 0x4, scoped, tag = 'scoped memory for tile.8']
  %s0 = inlined_call_operand.vmem [shape: bf16[2], index: 0, kind: input, shape index: {}]
  %s1 = inlined_call_operand.vmem [shape: bf16[2,2], index: 1, kind: output, shape index: {}]
  // Predicated region
  $region2: #{tile.8} parent=0 // pred_check
    _
  $region3: #{tile.8} parent=0 // pred_check_branch
    %3 = sbr.rel (0) target = $region5
  $region4: #{tile.8} parent=0 // pred_region
    _
  $region5: #{tile.8} parent=0 // pred_fallthru
    _
  %v4 = vld [vmem:[%s0] ss:$0 sm:$0xff]
  %v5 = vunpack.i.l.bf16 %v4
  %v7 = vunpack.i.h.bf16 %v4
  %v9 = vpack.c.bf16 0.0, %v5
  %10 = vst [vmem:[%s1] sm:$0x1] %v9

// kernel: pointr_forward.7
$region0: #{pointr_forward.7}
  #allocation0 [shape = 'u32[]', space=smem, size = 0x4, offset = 0x4, fixed_abs, tag = 'smem constant byte address 0x4 - core index']
  #allocation1 [shape = 'u32[144,128]{1,0:T(1,128)}', space=vmem, size = 0x12000, scoped, tag = 'internal scratch']
  %s0 = inlined_call_operand.vmem [shape: bf16[16,32], index: 0, kind: input, shape index: {}]
  %s1 = inlined_call_operand.vmem [shape: f32[16,3], index: 1, kind: input, shape index: {}]
  %s2 = inlined_call_operand.vmem [shape: f32[4,256], index: 2, kind: input, shape index: {}]
  %s3 = inlined_call_operand.vmem [shape: bf16[32,256], index: 3, kind: input, shape index: {}]
  %s4 = inlined_call_operand.vmem [shape: f32[1,256], index: 4, kind: input, shape index: {}]
  %s5 = inlined_call_operand.vmem [shape: bf16[256,128], index: 5, kind: input, shape index: {}]
  %s6 = inlined_call_operand.vmem [shape: f32[1,128], index: 6, kind: input, shape index: {}]
  %s7 = inlined_call_operand.vmem [shape: bf16[128,3], index: 7, kind: input, shape index: {}]
  %s8 = inlined_call_operand.vmem [shape: f32[1,3], index: 8, kind: input, shape index: {}]
  %s9 = inlined_call_operand.vmem [shape: bf16[32,256], index: 9, kind: input, shape index: {}]
  %s10 = inlined_call_operand.vmem [shape: bf16[3,256], index: 10, kind: input, shape index: {}]
  %s11 = inlined_call_operand.vmem [shape: f32[1,256], index: 11, kind: input, shape index: {}]
  %s12 = inlined_call_operand.vmem [shape: bf16[256,128], index: 12, kind: input, shape index: {}]
  %s13 = inlined_call_operand.vmem [shape: f32[1,128], index: 13, kind: input, shape index: {}]
  %s14 = inlined_call_operand.vmem [shape: bf16[128,3], index: 14, kind: input, shape index: {}]
  %s15 = inlined_call_operand.vmem [shape: f32[1,3], index: 15, kind: input, shape index: {}]
  %s16 = inlined_call_operand.vmem [shape: f32[4,16,3], index: 16, kind: output, shape index: {}]
  %s17 = sld [smem:[#allocation0]]
  $region81: #{pointr_forward.7} parent=0
    _
  %s19 = ssub.s32 1, %s17
  %s20 = scalar_select 0, %s19, %s17
  // Predicated region
  $region2: #{pointr_forward.7} parent=0 // pred_check
    _
  $region3: #{pointr_forward.7} parent=0 // pred_check_branch
    %22 = sbr.rel (0) target = $region5
  $region4: #{pointr_forward.7} parent=0 // pred_region
    _
  $region5: #{pointr_forward.7} parent=0 // pred_fallthru
    _
  // Predicated region
  $region6: #{pointr_forward.7} parent=0 // pred_check
    _
  $region7: #{pointr_forward.7} parent=0 // pred_check_branch
    %24 = sbr.rel (0) target = $region9
  $region8: #{pointr_forward.7} parent=0 // pred_region
    _
  $region9: #{pointr_forward.7} parent=0 // pred_fallthru
    _
  // Predicated region
  $region10: #{pointr_forward.7} parent=0 // pred_check
    _
  $region11: #{pointr_forward.7} parent=0 // pred_check_branch
    %26 = sbr.rel (0) target = $region13
  $region12: #{pointr_forward.7} parent=0 // pred_region
    _
  $region13: #{pointr_forward.7} parent=0 // pred_fallthru
    _
  // Predicated region
  $region14: #{pointr_forward.7} parent=0 // pred_check
    _
  $region15: #{pointr_forward.7} parent=0 // pred_check_branch
    %28 = sbr.rel (0) target = $region17
  $region16: #{pointr_forward.7} parent=0 // pred_region
    _
  $region17: #{pointr_forward.7} parent=0 // pred_fallthru
    _
  // Predicated region
  $region18: #{pointr_forward.7} parent=0 // pred_check
    _
  $region19: #{pointr_forward.7} parent=0 // pred_check_branch
    %30 = sbr.rel (0) target = $region21
  $region20: #{pointr_forward.7} parent=0 // pred_region
    _
  $region21: #{pointr_forward.7} parent=0 // pred_fallthru
    _
  // Predicated region
  $region22: #{pointr_forward.7} parent=0 // pred_check
    _
  $region23: #{pointr_forward.7} parent=0 // pred_check_branch
    %32 = sbr.rel (0) target = $region25
  $region24: #{pointr_forward.7} parent=0 // pred_region
    _
  $region25: #{pointr_forward.7} parent=0 // pred_fallthru
    _
  // Predicated region
  $region26: #{pointr_forward.7} parent=0 // pred_check
    _
  $region27: #{pointr_forward.7} parent=0 // pred_check_branch
    %34 = sbr.rel (0) target = $region29
  $region28: #{pointr_forward.7} parent=0 // pred_region
    _
  $region29: #{pointr_forward.7} parent=0 // pred_fallthru
    _
  // Predicated region
  $region30: #{pointr_forward.7} parent=0 // pred_check
    _
  $region31: #{pointr_forward.7} parent=0 // pred_check_branch
    %36 = sbr.rel (0) target = $region33
  $region32: #{pointr_forward.7} parent=0 // pred_region
    _
  $region33: #{pointr_forward.7} parent=0 // pred_fallthru
    _
  // Predicated region
  $region34: #{pointr_forward.7} parent=0 // pred_check
    _
  $region35: #{pointr_forward.7} parent=0 // pred_check_branch
    %38 = sbr.rel (0) target = $region37
  $region36: #{pointr_forward.7} parent=0 // pred_region
    _
  $region37: #{pointr_forward.7} parent=0 // pred_fallthru
    _
  // Predicated region
  $region38: #{pointr_forward.7} parent=0 // pred_check
    _
  $region39: #{pointr_forward.7} parent=0 // pred_check_branch
    %40 = sbr.rel (0) target = $region41
  $region40: #{pointr_forward.7} parent=0 // pred_region
    _
  $region41: #{pointr_forward.7} parent=0 // pred_fallthru
    _
  // Predicated region
  $region42: #{pointr_forward.7} parent=0 // pred_check
    _
  $region43: #{pointr_forward.7} parent=0 // pred_check_branch
    %42 = sbr.rel (0) target = $region45
  $region44: #{pointr_forward.7} parent=0 // pred_region
    _
  $region45: #{pointr_forward.7} parent=0 // pred_fallthru
    _
  // Predicated region
  $region46: #{pointr_forward.7} parent=0 // pred_check
    _
  $region47: #{pointr_forward.7} parent=0 // pred_check_branch
    %44 = sbr.rel (0) target = $region49
  $region48: #{pointr_forward.7} parent=0 // pred_region
    _
  $region49: #{pointr_forward.7} parent=0 // pred_fallthru
    _
  // Predicated region
  $region50: #{pointr_forward.7} parent=0 // pred_check
    _
  $region51: #{pointr_forward.7} parent=0 // pred_check_branch
    %46 = sbr.rel (0) target = $region53
  $region52: #{pointr_forward.7} parent=0 // pred_region
    _
  $region53: #{pointr_forward.7} parent=0 // pred_fallthru
    _
  // Predicated region
  $region54: #{pointr_forward.7} parent=0 // pred_check
    _
  $region55: #{pointr_forward.7} parent=0 // pred_check_branch
    %48 = sbr.rel (0) target = $region57
  $region56: #{pointr_forward.7} parent=0 // pred_region
    _
  $region57: #{pointr_forward.7} parent=0 // pred_fallthru
    _
  // Predicated region
  $region58: #{pointr_forward.7} parent=0 // pred_check
    _
  $region59: #{pointr_forward.7} parent=0 // pred_check_branch
    %50 = sbr.rel (0) target = $region61
  $region60: #{pointr_forward.7} parent=0 // pred_region
    _
  $region61: #{pointr_forward.7} parent=0 // pred_fallthru
    _
  // Predicated region
  $region62: #{pointr_forward.7} parent=0 // pred_check
    _
  $region63: #{pointr_forward.7} parent=0 // pred_check_branch
    %52 = sbr.rel (0) target = $region65
  $region64: #{pointr_forward.7} parent=0 // pred_region
    _
  $region65: #{pointr_forward.7} parent=0 // pred_fallthru
    _
  %v54 = vld [vmem:[%s0] sm:$0xf]
  %v55 = vld [vmem:[%s0 + $0x4] sm:$0xf]
  %v56 = vld [vmem:[%s1] sm:$0xff]
  %v57 = vld [vmem:[%s1 + $0x8] sm:$0xff]
  %v58 = vld [vmem:[%s3] sm:$0xff]
  %v59 = vld [vmem:[%s3 + $0x8] sm:$0xff]
  %v60 = vld [vmem:[%s3 + $0x10] sm:$0xff]
  %v61 = vld [vmem:[%s3 + $0x18] sm:$0xff]
  %v62 = vld [vmem:[%s4] sm:$0x3]
  %v64 = vlaneseq
  %v65 = vshrl.u32 %v64, 7
  %v66 = vsub.s32 0, %v65
  %v67 = vrot.slane %v62, %v66
  %v68 = vlaneseq
  %v69 = vshrl.u32 %v68, 7
  %v70 = vsub.s32 1, %v69
  %v71 = vrot.slane %v62, %v70
  %v76 = vunpack.c.l.b16 %v54
  %v77 = vunpack.c.l.b16 %v55
  %v78 = vpack.c.b16 %v77, %v76
  %v83 = vunpack.c.l.b16 %v58
  %v84 = vunpack.c.h.b16 %v58
  %v85 = vunpack.c.l.b16 %v59
  %v86 = vunpack.c.h.b16 %v59
  %v87 = vunpack.c.l.b16 %v60
  %v88 = vunpack.c.h.b16 %v60
  %v89 = vunpack.c.l.b16 %v61
  %v90 = vunpack.c.h.b16 %v61
  %v91 = vpack.c.b16 %v85, %v83
  %v92 = vpack.c.b16 %v86, %v84
  %v93 = vpack.c.b16 %v89, %v87
  %v94 = vpack.c.b16 %v90, %v88
  %vm99 = vcmask 261120
  %v101 = vsel %vm99, %v78, 0
  %103 = vmatprep.subr.bf16.mxu0 %v92
  %104 = vmatpush1.bf16.msra.mxu0 %v91
  %105 = vmatprep.subr.bf16.mxu0 %v94
  %106 = vmatpush1.bf16.msra.mxu0 %v93
  %107 = vmatprep.subr.bf16.mxu0 0
  %108 = vmatpush1.bf16.msra.mxu0 0
  %109 = vmatprep.subr.bf16.mxu0 0
  %110 = vmatpush1.bf16.msra.mxu0 0
  %111 = vmatprep.subr.bf16.mxu0 0
  %112 = vmatpush1.bf16.msra.mxu0 0
  %113 = vmatprep.subr.bf16.mxu0 0
  %114 = vmatpush1.bf16.msra.mxu0 0
  %115 = vmatprep.subr.bf16.mxu0 0
  %116 = vmatpush1.bf16.msra.mxu0 0
  %117 = vmatprep.subr.bf16.mxu0 0
  %118 = vmatpush1.bf16.msra.mxu0 0
  %119 = vmatprep.subr.bf16.mxu0 0
  %120 = vmatpush1.bf16.msra.mxu0 0
  %121 = vmatprep.subr.bf16.mxu0 0
  %122 = vmatpush1.bf16.msra.mxu0 0
  %123 = vmatprep.subr.bf16.mxu0 0
  %124 = vmatpush1.bf16.msra.mxu0 0
  %125 = vmatprep.subr.bf16.mxu0 0
  %126 = vmatpush1.bf16.msra.mxu0 0
  %127 = vmatprep.subr.bf16.mxu0 0
  %128 = vmatpush1.bf16.msra.mxu0 0
  %129 = vmatprep.subr.bf16.mxu0 0
  %130 = vmatpush1.bf16.msra.mxu0 0
  %131 = vmatprep.subr.bf16.mxu0 0
  %132 = vmatpush1.bf16.msra.mxu0 0
  %133 = vmatprep.subr.bf16.mxu0 0
  %134 = vmatpush1.bf16.msra.mxu0 0
  %135 = vmatprep.mubr.bf16.mxu0 0
  %136 = vmatmul.mubr.bf16.gmra.mrb[0].mxu0 %v101
  %v137 = vpop.f32.mrb[0].mxu0
  %v138 = vadd.f32 %v67, %v137
  %v139 = vpop.f32.mrb[0].mxu0
  %v140 = vadd.f32 %v71, %v139
  %v141 = vpop.f32.mrb[0].mxu0
  %v142 = vadd.f32 %v67, %v141
  %v143 = vpop.f32.mrb[0].mxu0
  %v144 = vadd.f32 %v71, %v143
  %145 = vdwg.mxu0
  %v146 = vld [vmem:[%s9] sm:$0xff]
  %v147 = vld [vmem:[%s9 + $0x8] sm:$0xff]
  %v148 = vld [vmem:[%s9 + $0x10] sm:$0xff]
  %v149 = vld [vmem:[%s9 + $0x18] sm:$0xff]
  %v150 = vld [vmem:[%s11] sm:$0x3]
  %v152 = vlaneseq
  %v153 = vshrl.u32 %v152, 7
  %v154 = vsub.s32 0, %v153
  %v155 = vrot.slane %v150, %v154
  %v156 = vlaneseq
  %v157 = vshrl.u32 %v156, 7
  %v158 = vsub.s32 1, %v157
  %v159 = vrot.slane %v150, %v158
  %v166 = vunpack.c.l.b16 %v146
  %v167 = vunpack.c.h.b16 %v146
  %v168 = vunpack.c.l.b16 %v147
  %v169 = vunpack.c.h.b16 %v147
  %v170 = vunpack.c.l.b16 %v148
  %v171 = vunpack.c.h.b16 %v148
  %v172 = vunpack.c.l.b16 %v149
  %v173 = vunpack.c.h.b16 %v149
  %v174 = vpack.c.b16 %v168, %v166
  %v175 = vpack.c.b16 %v169, %v167
  %v176 = vpack.c.b16 %v172, %v170
  %v177 = vpack.c.b16 %v173, %v171
  %182 = vmatprep.subr.bf16.mxu0 %v175
  %183 = vmatpush1.bf16.msra.mxu0 %v174
  %184 = vmatprep.subr.bf16.mxu0 %v177
  %185 = vmatpush1.bf16.msra.mxu0 %v176
  %186 = vmatprep.subr.bf16.mxu0 0
  %187 = vmatpush1.bf16.msra.mxu0 0
  %188 = vmatprep.subr.bf16.mxu0 0
  %189 = vmatpush1.bf16.msra.mxu0 0
  %190 = vmatprep.subr.bf16.mxu0 0
  %191 = vmatpush1.bf16.msra.mxu0 0
  %192 = vmatprep.subr.bf16.mxu0 0
  %193 = vmatpush1.bf16.msra.mxu0 0
  %194 = vmatprep.subr.bf16.mxu0 0
  %195 = vmatpush1.bf16.msra.mxu0 0
  %196 = vmatprep.subr.bf16.mxu0 0
  %197 = vmatpush1.bf16.msra.mxu0 0
  %198 = vmatprep.subr.bf16.mxu0 0
  %199 = vmatpush1.bf16.msra.mxu0 0
  %200 = vmatprep.subr.bf16.mxu0 0
  %201 = vmatpush1.bf16.msra.mxu0 0
  %202 = vmatprep.subr.bf16.mxu0 0
  %203 = vmatpush1.bf16.msra.mxu0 0
  %204 = vmatprep.subr.bf16.mxu0 0
  %205 = vmatpush1.bf16.msra.mxu0 0
  %206 = vmatprep.subr.bf16.mxu0 0
  %207 = vmatpush1.bf16.msra.mxu0 0
  %208 = vmatprep.subr.bf16.mxu0 0
  %209 = vmatpush1.bf16.msra.mxu0 0
  %210 = vmatprep.subr.bf16.mxu0 0
  %211 = vmatpush1.bf16.msra.mxu0 0
  %212 = vmatprep.subr.bf16.mxu0 0
  %213 = vmatpush1.bf16.msra.mxu0 0
  %214 = vmatprep.mubr.bf16.mxu0 0
  %215 = vmatmul.mubr.bf16.gmra.mrb[0].mxu0 %v101
  %v216 = vpop.f32.mrb[0].mxu0
  %v217 = vadd.f32 %v155, %v216
  %v218 = vpop.f32.mrb[0].mxu0
  %v219 = vadd.f32 %v159, %v218
  %v220 = vpop.f32.mrb[0].mxu0
  %v221 = vadd.f32 %v155, %v220
  %v222 = vpop.f32.mrb[0].mxu0
  %v223 = vadd.f32 %v159, %v222
  %224 = vdwg.mxu0
  %v225 = vld [vmem:[%s5] sm:$0xf]
  %v226 = vld [vmem:[%s5 + $0x4] sm:$0xf]
  %v227 = vld [vmem:[%s5 + $0x8] sm:$0xf]
  %v228 = vld [vmem:[%s5 + $0xc] sm:$0xf]
  %v229 = vld [vmem:[%s5 + $0x10] sm:$0xf]
  %v230 = vld [vmem:[%s5 + $0x14] sm:$0xf]
  %v231 = vld [vmem:[%s5 + $0x18] sm:$0xf]
  %v232 = vld [vmem:[%s5 + $0x1c] sm:$0xf]
  %v233 = vld [vmem:[%s5 + $0x20] sm:$0xf]
  %v234 = vld [vmem:[%s5 + $0x24] sm:$0xf]
  %v235 = vld [vmem:[%s5 + $0x28] sm:$0xf]
  %v236 = vld [vmem:[%s5 + $0x2c] sm:$0xf]
  %v237 = vld [vmem:[%s5 + $0x30] sm:$0xf]
  %v238 = vld [vmem:[%s5 + $0x34] sm:$0xf]
  %v239 = vld [vmem:[%s5 + $0x38] sm:$0xf]
  %v240 = vld [vmem:[%s5 + $0x3c] sm:$0xf]
  %v241 = vld [vmem:[%s5 + $0x40] sm:$0xf]
  %v242 = vld [vmem:[%s5 + $0x44] sm:$0xf]
  %v243 = vld [vmem:[%s5 + $0x48] sm:$0xf]
  %v244 = vld [vmem:[%s5 + $0x4c] sm:$0xf]
  %v245 = vld [vmem:[%s5 + $0x50] sm:$0xf]
  %v246 = vld [vmem:[%s5 + $0x54] sm:$0xf]
  %v247 = vld [vmem:[%s5 + $0x58] sm:$0xf]
  %v248 = vld [vmem:[%s5 + $0x5c] sm:$0xf]
  %v249 = vld [vmem:[%s5 + $0x60] sm:$0xf]
  %v250 = vld [vmem:[%s5 + $0x64] sm:$0xf]
  %v251 = vld [vmem:[%s5 + $0x68] sm:$0xf]
  %v252 = vld [vmem:[%s5 + $0x6c] sm:$0xf]
  %v253 = vld [vmem:[%s5 + $0x70] sm:$0xf]
  %v254 = vld [vmem:[%s5 + $0x74] sm:$0xf]
  %v255 = vld [vmem:[%s5 + $0x78] sm:$0xf]
  %v256 = vld [vmem:[%s5 + $0x7c] sm:$0xf]
  %v257 = vld [vmem:[%s6] sm:$0x1]
  %v258 = vld [vmem:[%s7] sm:$0xf]
  %v259 = vld [vmem:[%s7 + $0x4] sm:$0xf]
  %v260 = vld [vmem:[%s7 + $0x8] sm:$0xf]
  %v261 = vld [vmem:[%s7 + $0xc] sm:$0xf]
  %v262 = vld [vmem:[%s7 + $0x10] sm:$0xf]
  %v263 = vld [vmem:[%s7 + $0x14] sm:$0xf]
  %v264 = vld [vmem:[%s7 + $0x18] sm:$0xf]
  %v265 = vld [vmem:[%s7 + $0x1c] sm:$0xf]
  %v266 = vld [vmem:[%s7 + $0x20] sm:$0xf]
  %v267 = vld [vmem:[%s7 + $0x24] sm:$0xf]
  %v268 = vld [vmem:[%s7 + $0x28] sm:$0xf]
  %v269 = vld [vmem:[%s7 + $0x2c] sm:$0xf]
  %v270 = vld [vmem:[%s7 + $0x30] sm:$0xf]
  %v271 = vld [vmem:[%s7 + $0x34] sm:$0xf]
  %v272 = vld [vmem:[%s7 + $0x38] sm:$0xf]
  %v273 = vld [vmem:[%s7 + $0x3c] sm:$0xf]
  %v274 = vld [vmem:[%s8] sm:$0x1]
  %v275 = vld [vmem:[%s10] sm:$0xf]
  %v276 = vld [vmem:[%s12] sm:$0xf]
  %v277 = vld [vmem:[%s12 + $0x4] sm:$0xf]
  %v278 = vld [vmem:[%s12 + $0x8] sm:$0xf]
  %v279 = vld [vmem:[%s12 + $0xc] sm:$0xf]
  %v280 = vld [vmem:[%s12 + $0x10] sm:$0xf]
  %v281 = vld [vmem:[%s12 + $0x14] sm:$0xf]
  %v282 = vld [vmem:[%s12 + $0x18] sm:$0xf]
  %v283 = vld [vmem:[%s12 + $0x1c] sm:$0xf]
  %v284 = vld [vmem:[%s12 + $0x20] sm:$0xf]
  %v285 = vld [vmem:[%s12 + $0x24] sm:$0xf]
  %v286 = vld [vmem:[%s12 + $0x28] sm:$0xf]
  %v287 = vld [vmem:[%s12 + $0x2c] sm:$0xf]
  %v288 = vld [vmem:[%s12 + $0x30] sm:$0xf]
  %v289 = vld [vmem:[%s12 + $0x34] sm:$0xf]
  %v290 = vld [vmem:[%s12 + $0x38] sm:$0xf]
  %v291 = vld [vmem:[%s12 + $0x3c] sm:$0xf]
  %v292 = vld [vmem:[%s12 + $0x40] sm:$0xf]
  %v293 = vld [vmem:[%s12 + $0x44] sm:$0xf]
  %v294 = vld [vmem:[%s12 + $0x48] sm:$0xf]
  %v295 = vld [vmem:[%s12 + $0x4c] sm:$0xf]
  %v296 = vld [vmem:[%s12 + $0x50] sm:$0xf]
  %v297 = vld [vmem:[%s12 + $0x54] sm:$0xf]
  %v298 = vld [vmem:[%s12 + $0x58] sm:$0xf]
  %v299 = vld [vmem:[%s12 + $0x5c] sm:$0xf]
  %v300 = vld [vmem:[%s12 + $0x60] sm:$0xf]
  %v301 = vld [vmem:[%s12 + $0x64] sm:$0xf]
  %v302 = vld [vmem:[%s12 + $0x68] sm:$0xf]
  %v303 = vld [vmem:[%s12 + $0x6c] sm:$0xf]
  %v304 = vld [vmem:[%s12 + $0x70] sm:$0xf]
  %v305 = vld [vmem:[%s12 + $0x74] sm:$0xf]
  %v306 = vld [vmem:[%s12 + $0x78] sm:$0xf]
  %v307 = vld [vmem:[%s12 + $0x7c] sm:$0xf]
  %v308 = vld [vmem:[%s13] sm:$0x1]
  %v309 = vld [vmem:[%s14] sm:$0xf]
  %v310 = vld [vmem:[%s14 + $0x4] sm:$0xf]
  %v311 = vld [vmem:[%s14 + $0x8] sm:$0xf]
  %v312 = vld [vmem:[%s14 + $0xc] sm:$0xf]
  %v313 = vld [vmem:[%s14 + $0x10] sm:$0xf]
  %v314 = vld [vmem:[%s14 + $0x14] sm:$0xf]
  %v315 = vld [vmem:[%s14 + $0x18] sm:$0xf]
  %v316 = vld [vmem:[%s14 + $0x1c] sm:$0xf]
  %v317 = vld [vmem:[%s14 + $0x20] sm:$0xf]
  %v318 = vld [vmem:[%s14 + $0x24] sm:$0xf]
  %v319 = vld [vmem:[%s14 + $0x28] sm:$0xf]
  %v320 = vld [vmem:[%s14 + $0x2c] sm:$0xf]
  %v321 = vld [vmem:[%s14 + $0x30] sm:$0xf]
  %v322 = vld [vmem:[%s14 + $0x34] sm:$0xf]
  %v323 = vld [vmem:[%s14 + $0x38] sm:$0xf]
  %v324 = vld [vmem:[%s14 + $0x3c] sm:$0xf]
  %v325 = vld [vmem:[%s15] sm:$0x1]
  loop: start=0, step=1, limit=4
  $region66: #{pointr_forward.7} parent=0 // loop_pre_header
    _
  $region67: #{pointr_forward.7} parent=0 // loop_header
    %s327 = sphi 0, %s331
    %p328 = scmp.ge.s32.totalorder %s327, 4
  $region68: #{pointr_forward.7} parent=0 // loop_header_branch
    %330 = sbr.rel (%p328) target = $region72
  $region69: #{pointr_forward.7} parent=0 // loop_body
    %s332 = sshra.s32 %s327, 2
    %s333 = sand.u32 %s327, 3
    %s334 = sshra.s32 %s327, 2
    %s335 = sand.u32 %s327, 3
    %s336 = smul.u32 %s332, 2
    %s337 = smul.u32 %s336, 4
    %s338 = sadd.s32 %s337, %s335
    %s339 = scalar_lea.vmem %s2, %s338
    %v340 = vld [vmem:[%s339] ss:$4 sm:$0x3]
    %v342 = vlaneseq
    %v343 = vshrl.u32 %v342, 7
    %v344 = vsub.s32 0, %v343
    %v345 = vrot.slane %v340, %v344
    %v346 = vlaneseq
    %v347 = vshrl.u32 %v346, 7
    %v348 = vsub.s32 1, %v347
    %v349 = vrot.slane %v340, %v348
    %v352 = vadd.f32 %v138, %v345
    %v353 = vadd.f32 %v140, %v349
    %v354 = vadd.f32 %v142, %v345
    %v355 = vadd.f32 %v144, %v349
    %v356 = vmax.f32 %v352, 0.0
    %v357 = vmax.f32 %v353, 0.0
    %v358 = vmax.f32 %v354, 0.0
    %v359 = vmax.f32 %v355, 0.0
    %v360 = vpack.c.bf16 %v358, %v356
    %v361 = vpack.c.bf16 %v359, %v357
    %v363 = vlaneseq
    %v364 = vshrl.u32 %v363, 7
    %v365 = vsub.s32 0, %v364
    %v366 = vrot.slane %v257, %v365
    %v400 = vunpack.c.l.b16 %v225
    %v401 = vunpack.c.l.b16 %v226
    %v402 = vunpack.c.l.b16 %v227
    %v403 = vunpack.c.l.b16 %v228
    %v404 = vunpack.c.l.b16 %v229
    %v405 = vunpack.c.l.b16 %v230
    %v406 = vunpack.c.l.b16 %v231
    %v407 = vunpack.c.l.b16 %v232
    %v408 = vunpack.c.l.b16 %v233
    %v409 = vunpack.c.l.b16 %v234
    %v410 = vunpack.c.l.b16 %v235
    %v411 = vunpack.c.l.b16 %v236
    %v412 = vunpack.c.l.b16 %v237
    %v413 = vunpack.c.l.b16 %v238
    %v414 = vunpack.c.l.b16 %v239
    %v415 = vunpack.c.l.b16 %v240
    %v416 = vunpack.c.l.b16 %v241
    %v417 = vunpack.c.l.b16 %v242
    %v418 = vunpack.c.l.b16 %v243
    %v419 = vunpack.c.l.b16 %v244
    %v420 = vunpack.c.l.b16 %v245
    %v421 = vunpack.c.l.b16 %v246
    %v422 = vunpack.c.l.b16 %v247
    %v423 = vunpack.c.l.b16 %v248
    %v424 = vunpack.c.l.b16 %v249
    %v425 = vunpack.c.l.b16 %v250
    %v426 = vunpack.c.l.b16 %v251
    %v427 = vunpack.c.l.b16 %v252
    %v428 = vunpack.c.l.b16 %v253
    %v429 = vunpack.c.l.b16 %v254
    %v430 = vunpack.c.l.b16 %v255
    %v431 = vunpack.c.l.b16 %v256
    %v432 = vpack.c.b16 %v401, %v400
    %v433 = vpack.c.b16 %v403, %v402
    %v434 = vpack.c.b16 %v405, %v404
    %v435 = vpack.c.b16 %v407, %v406
    %v436 = vpack.c.b16 %v409, %v408
    %v437 = vpack.c.b16 %v411, %v410
    %v438 = vpack.c.b16 %v413, %v412
    %v439 = vpack.c.b16 %v415, %v414
    %v440 = vpack.c.b16 %v417, %v416
    %v441 = vpack.c.b16 %v419, %v418
    %v442 = vpack.c.b16 %v421, %v420
    %v443 = vpack.c.b16 %v423, %v422
    %v444 = vpack.c.b16 %v425, %v424
    %v445 = vpack.c.b16 %v427, %v426
    %v446 = vpack.c.b16 %v429, %v428
    %v447 = vpack.c.b16 %v431, %v430
    %464 = vmatprep.subr.bf16.mxu0 0
    %465 = vmatpush1.bf16.msra.mxu0 %v432
    %466 = vmatprep.subr.bf16.mxu0 0
    %467 = vmatpush1.bf16.msra.mxu0 %v433
    %468 = vmatprep.subr.bf16.mxu0 0
    %469 = vmatpush1.bf16.msra.mxu0 %v434
    %470 = vmatprep.subr.bf16.mxu0 0
    %471 = vmatpush1.bf16.msra.mxu0 %v435
    %472 = vmatprep.subr.bf16.mxu0 0
    %473 = vmatpush1.bf16.msra.mxu0 %v436
    %474 = vmatprep.subr.bf16.mxu0 0
    %475 = vmatpush1.bf16.msra.mxu0 %v437
    %476 = vmatprep.subr.bf16.mxu0 0
    %477 = vmatpush1.bf16.msra.mxu0 %v438
    %478 = vmatprep.subr.bf16.mxu0 0
    %479 = vmatpush1.bf16.msra.mxu0 %v439
    %480 = vmatprep.subr.bf16.mxu0 0
    %481 = vmatpush1.bf16.msra.mxu0 %v440
    %482 = vmatprep.subr.bf16.mxu0 0
    %483 = vmatpush1.bf16.msra.mxu0 %v441
    %484 = vmatprep.subr.bf16.mxu0 0
    %485 = vmatpush1.bf16.msra.mxu0 %v442
    %486 = vmatprep.subr.bf16.mxu0 0
    %487 = vmatpush1.bf16.msra.mxu0 %v443
    %488 = vmatprep.subr.bf16.mxu0 0
    %489 = vmatpush1.bf16.msra.mxu0 %v444
    %490 = vmatprep.subr.bf16.mxu0 0
    %491 = vmatpush1.bf16.msra.mxu0 %v445
    %492 = vmatprep.subr.bf16.mxu0 0
    %493 = vmatpush1.bf16.msra.mxu0 %v446
    %494 = vmatprep.subr.bf16.mxu0 0
    %495 = vmatpush1.bf16.msra.mxu0 %v447
    %496 = vmatprep.mubr.bf16.mxu0 %v361
    %497 = vmatmul.mubr.bf16.gmra.mrb[0].mxu0 %v360
    %v498 = vpop.f32.mrb[0].mxu0
    %v499 = vadd.f32 %v366, %v498
    %v500 = vpop.f32.mrb[0].mxu0
    %v501 = vpop.f32.mrb[0].mxu0
    %v502 = vadd.f32 %v366, %v501
    %v503 = vpop.f32.mrb[0].mxu0
    %504 = vdwg.mxu0
    %v505 = vmax.f32 %v499, 0.0
    %v506 = vmax.f32 %v502, 0.0
    %v507 = vpack.c.bf16 %v506, %v505
    %v509 = vlaneseq
    %v510 = vshrl.u32 %v509, 7
    %v511 = vsub.s32 0, %v510
    %v512 = vrot.slane %v274, %v511
    %v530 = vunpack.c.l.b16 %v258
    %v531 = vunpack.c.l.b16 %v259
    %v532 = vunpack.c.l.b16 %v260
    %v533 = vunpack.c.l.b16 %v261
    %v534 = vunpack.c.l.b16 %v262
    %v535 = vunpack.c.l.b16 %v263
    %v536 = vunpack.c.l.b16 %v264
    %v537 = vunpack.c.l.b16 %v265
    %v538 = vunpack.c.l.b16 %v266
    %v539 = vunpack.c.l.b16 %v267
    %v540 = vunpack.c.l.b16 %v268
    %v541 = vunpack.c.l.b16 %v269
    %v542 = vunpack.c.l.b16 %v270
    %v543 = vunpack.c.l.b16 %v271
    %v544 = vunpack.c.l.b16 %v272
    %v545 = vunpack.c.l.b16 %v273
    %v546 = vpack.c.b16 %v531, %v530
    %v547 = vpack.c.b16 %v533, %v532
    %v548 = vpack.c.b16 %v535, %v534
    %v549 = vpack.c.b16 %v537, %v536
    %v550 = vpack.c.b16 %v539, %v538
    %v551 = vpack.c.b16 %v541, %v540
    %v552 = vpack.c.b16 %v543, %v542
    %v553 = vpack.c.b16 %v545, %v544
    %562 = vmatprep.subr.bf16.mxu0 0
    %563 = vmatpush1.bf16.msra.mxu0 %v546
    %564 = vmatprep.subr.bf16.mxu0 0
    %565 = vmatpush1.bf16.msra.mxu0 %v547
    %566 = vmatprep.subr.bf16.mxu0 0
    %567 = vmatpush1.bf16.msra.mxu0 %v548
    %568 = vmatprep.subr.bf16.mxu0 0
    %569 = vmatpush1.bf16.msra.mxu0 %v549
    %570 = vmatprep.subr.bf16.mxu0 0
    %571 = vmatpush1.bf16.msra.mxu0 %v550
    %572 = vmatprep.subr.bf16.mxu0 0
    %573 = vmatpush1.bf16.msra.mxu0 %v551
    %574 = vmatprep.subr.bf16.mxu0 0
    %575 = vmatpush1.bf16.msra.mxu0 %v552
    %576 = vmatprep.subr.bf16.mxu0 0
    %577 = vmatpush1.bf16.msra.mxu0 %v553
    %578 = vmatprep.subr.bf16.mxu0 0
    %579 = vmatpush1.bf16.msra.mxu0 0
    %580 = vmatprep.subr.bf16.mxu0 0
    %581 = vmatpush1.bf16.msra.mxu0 0
    %582 = vmatprep.subr.bf16.mxu0 0
    %583 = vmatpush1.bf16.msra.mxu0 0
    %584 = vmatprep.subr.bf16.mxu0 0
    %585 = vmatpush1.bf16.msra.mxu0 0
    %586 = vmatprep.subr.bf16.mxu0 0
    %587 = vmatpush1.bf16.msra.mxu0 0
    %588 = vmatprep.subr.bf16.mxu0 0
    %589 = vmatpush1.bf16.msra.mxu0 0
    %590 = vmatprep.subr.bf16.mxu0 0
    %591 = vmatpush1.bf16.msra.mxu0 0
    %592 = vmatprep.subr.bf16.mxu0 0
    %593 = vmatpush1.bf16.msra.mxu0 0
    %594 = vmatprep.mubr.bf16.mxu0 0
    %595 = vmatmul.mubr.bf16.gmra.mrb[0].mxu0 %v507
    %v596 = vpop.f32.mrb[0].mxu0
    %v597 = vadd.f32 %v512, %v596
    %v598 = vpop.f32.mrb[0].mxu0
    %v599 = vpop.f32.mrb[0].mxu0
    %v600 = vadd.f32 %v512, %v599
    %v601 = vpop.f32.mrb[0].mxu0
    %602 = vdwg.mxu0
    %v603 = vpack.c.bf16 %v600, %v597
    %v606 = vunpack.c.l.s4 1983009808
    %v607 = vunpack.c.0.s8 %v606
    %v608 = vlaneseq
    %v609 = vshrl.u32 %v608, 7
    %v610 = vsub.s32 %v607, %v609
    %v611 = vrot.slane %v275, %v610
    %v612 = vcombine.high %v611, %v611
    %vm613 = vcmask 23552
    %v615 = vsel %vm613, %v603, 0
    %vm617 = vcmask 1040384
    %vm618 = vcmask 1041408
    %v619 = vsel %vm617, 4294967295, 65535
    %v620 = vsel %vm618, %v619, 0
    %v622 = vand.u32 %v611, %v620
    %v625 = vand.u32 %v612, %v620
    %627 = vmatprep.subr.bf16.mxu0 %v625
    %628 = vmatpush1.bf16.msra.mxu0 %v622
    %629 = vmatprep.subr.bf16.mxu0 0
    %630 = vmatpush1.bf16.msra.mxu0 0
    %631 = vmatprep.subr.bf16.mxu0 0
    %632 = vmatpush1.bf16.msra.mxu0 0
    %633 = vmatprep.subr.bf16.mxu0 0
    %634 = vmatpush1.bf16.msra.mxu0 0
    %635 = vmatprep.subr.bf16.mxu0 0
    %636 = vmatpush1.bf16.msra.mxu0 0
    %637 = vmatprep.subr.bf16.mxu0 0
    %638 = vmatpush1.bf16.msra.mxu0 0
    %639 = vmatprep.subr.bf16.mxu0 0
    %640 = vmatpush1.bf16.msra.mxu0 0
    %641 = vmatprep.subr.bf16.mxu0 0
    %642 = vmatpush1.bf16.msra.mxu0 0
    %643 = vmatprep.subr.bf16.mxu0 0
    %644 = vmatpush1.bf16.msra.mxu0 0
    %645 = vmatprep.subr.bf16.mxu0 0
    %646 = vmatpush1.bf16.msra.mxu0 0
    %647 = vmatprep.subr.bf16.mxu0 0
    %648 = vmatpush1.bf16.msra.mxu0 0
    %649 = vmatprep.subr.bf16.mxu0 0
    %650 = vmatpush1.bf16.msra.mxu0 0
    %651 = vmatprep.subr.bf16.mxu0 0
    %652 = vmatpush1.bf16.msra.mxu0 0
    %653 = vmatprep.subr.bf16.mxu0 0
    %654 = vmatpush1.bf16.msra.mxu0 0
    %655 = vmatprep.subr.bf16.mxu0 0
    %656 = vmatpush1.bf16.msra.mxu0 0
    %657 = vmatprep.subr.bf16.mxu0 0
    %658 = vmatpush1.bf16.msra.mxu0 0
    %659 = vmatprep.mubr.bf16.mxu0 0
    %660 = vmatmul.mubr.bf16.gmra.mrb[0].mxu0 %v615
    %v661 = vpop.f32.mrb[0].mxu0
    %v662 = vadd.f32 0.0, %v661
    %v663 = vpop.f32.mrb[0].mxu0
    %v664 = vadd.f32 0.0, %v663
    %v665 = vpop.f32.mrb[0].mxu0
    %v666 = vadd.f32 0.0, %v665
    %v667 = vpop.f32.mrb[0].mxu0
    %v668 = vadd.f32 0.0, %v667
    %669 = vdwg.mxu0
    %v670 = vadd.f32 %v217, %v662
    %v671 = vadd.f32 %v219, %v664
    %v672 = vadd.f32 %v221, %v666
    %v673 = vadd.f32 %v223, %v668
    %v674 = vmax.f32 %v670, 0.0
    %v675 = vmax.f32 %v671, 0.0
    %v676 = vmax.f32 %v672, 0.0
    %v677 = vmax.f32 %v673, 0.0
    %v678 = vpack.c.bf16 %v676, %v674
    %v679 = vpack.c.bf16 %v677, %v675
    %v681 = vlaneseq
    %v682 = vshrl.u32 %v681, 7
    %v683 = vsub.s32 0, %v682
    %v684 = vrot.slane %v308, %v683
    %v718 = vunpack.c.l.b16 %v276
    %v719 = vunpack.c.l.b16 %v277
    %v720 = vunpack.c.l.b16 %v278
    %v721 = vunpack.c.l.b16 %v279
    %v722 = vunpack.c.l.b16 %v280
    %v723 = vunpack.c.l.b16 %v281
    %v724 = vunpack.c.l.b16 %v282
    %v725 = vunpack.c.l.b16 %v283
    %v726 = vunpack.c.l.b16 %v284
    %v727 = vunpack.c.l.b16 %v285
    %v728 = vunpack.c.l.b16 %v286
    %v729 = vunpack.c.l.b16 %v287
    %v730 = vunpack.c.l.b16 %v288
    %v731 = vunpack.c.l.b16 %v289
    %v732 = vunpack.c.l.b16 %v290
    %v733 = vunpack.c.l.b16 %v291
    %v734 = vunpack.c.l.b16 %v292
    %v735 = vunpack.c.l.b16 %v293
    %v736 = vunpack.c.l.b16 %v294
    %v737 = vunpack.c.l.b16 %v295
    %v738 = vunpack.c.l.b16 %v296
    %v739 = vunpack.c.l.b16 %v297
    %v740 = vunpack.c.l.b16 %v298
    %v741 = vunpack.c.l.b16 %v299
    %v742 = vunpack.c.l.b16 %v300
    %v743 = vunpack.c.l.b16 %v301
    %v744 = vunpack.c.l.b16 %v302
    %v745 = vunpack.c.l.b16 %v303
    %v746 = vunpack.c.l.b16 %v304
    %v747 = vunpack.c.l.b16 %v305
    %v748 = vunpack.c.l.b16 %v306
    %v749 = vunpack.c.l.b16 %v307
    %v750 = vpack.c.b16 %v719, %v718
    %v751 = vpack.c.b16 %v721, %v720
    %v752 = vpack.c.b16 %v723, %v722
    %v753 = vpack.c.b16 %v725, %v724
    %v754 = vpack.c.b16 %v727, %v726
    %v755 = vpack.c.b16 %v729, %v728
    %v756 = vpack.c.b16 %v731, %v730
    %v757 = vpack.c.b16 %v733, %v732
    %v758 = vpack.c.b16 %v735, %v734
    %v759 = vpack.c.b16 %v737, %v736
    %v760 = vpack.c.b16 %v739, %v738
    %v761 = vpack.c.b16 %v741, %v740
    %v762 = vpack.c.b16 %v743, %v742
    %v763 = vpack.c.b16 %v745, %v744
    %v764 = vpack.c.b16 %v747, %v746
    %v765 = vpack.c.b16 %v749, %v748
    %782 = vmatprep.subr.bf16.mxu0 0
    %783 = vmatpush1.bf16.msra.mxu0 %v750
    %784 = vmatprep.subr.bf16.mxu0 0
    %785 = vmatpush1.bf16.msra.mxu0 %v751
    %786 = vmatprep.subr.bf16.mxu0 0
    %787 = vmatpush1.bf16.msra.mxu0 %v752
    %788 = vmatprep.subr.bf16.mxu0 0
    %789 = vmatpush1.bf16.msra.mxu0 %v753
    %790 = vmatprep.subr.bf16.mxu0 0
    %791 = vmatpush1.bf16.msra.mxu0 %v754
    %792 = vmatprep.subr.bf16.mxu0 0
    %793 = vmatpush1.bf16.msra.mxu0 %v755
    %794 = vmatprep.subr.bf16.mxu0 0
    %795 = vmatpush1.bf16.msra.mxu0 %v756
    %796 = vmatprep.subr.bf16.mxu0 0
    %797 = vmatpush1.bf16.msra.mxu0 %v757
    %798 = vmatprep.subr.bf16.mxu0 0
    %799 = vmatpush1.bf16.msra.mxu0 %v758
    %800 = vmatprep.subr.bf16.mxu0 0
    %801 = vmatpush1.bf16.msra.mxu0 %v759
    %802 = vmatprep.subr.bf16.mxu0 0
    %803 = vmatpush1.bf16.msra.mxu0 %v760
    %804 = vmatprep.subr.bf16.mxu0 0
    %805 = vmatpush1.bf16.msra.mxu0 %v761
    %806 = vmatprep.subr.bf16.mxu0 0
    %807 = vmatpush1.bf16.msra.mxu0 %v762
    %808 = vmatprep.subr.bf16.mxu0 0
    %809 = vmatpush1.bf16.msra.mxu0 %v763
    %810 = vmatprep.subr.bf16.mxu0 0
    %811 = vmatpush1.bf16.msra.mxu0 %v764
    %812 = vmatprep.subr.bf16.mxu0 0
    %813 = vmatpush1.bf16.msra.mxu0 %v765
    %814 = vmatprep.mubr.bf16.mxu0 %v679
    %815 = vmatmul.mubr.bf16.gmra.mrb[0].mxu0 %v678
    %v816 = vpop.f32.mrb[0].mxu0
    %v817 = vadd.f32 %v684, %v816
    %v818 = vpop.f32.mrb[0].mxu0
    %v819 = vpop.f32.mrb[0].mxu0
    %v820 = vadd.f32 %v684, %v819
    %v821 = vpop.f32.mrb[0].mxu0
    %822 = vdwg.mxu0
    %v823 = vmax.f32 %v817, 0.0
    %v824 = vmax.f32 %v820, 0.0
    %v825 = vpack.c.bf16 %v824, %v823
    %v827 = vlaneseq
    %v828 = vshrl.u32 %v827, 7
    %v829 = vsub.s32 0, %v828
    %v830 = vrot.slane %v325, %v829
    %v848 = vunpack.c.l.b16 %v309
    %v849 = vunpack.c.l.b16 %v310
    %v850 = vunpack.c.l.b16 %v311
    %v851 = vunpack.c.l.b16 %v312
    %v852 = vunpack.c.l.b16 %v313
    %v853 = vunpack.c.l.b16 %v314
    %v854 = vunpack.c.l.b16 %v315
    %v855 = vunpack.c.l.b16 %v316
    %v856 = vunpack.c.l.b16 %v317
    %v857 = vunpack.c.l.b16 %v318
    %v858 = vunpack.c.l.b16 %v319
    %v859 = vunpack.c.l.b16 %v320
    %v860 = vunpack.c.l.b16 %v321
    %v861 = vunpack.c.l.b16 %v322
    %v862 = vunpack.c.l.b16 %v323
    %v863 = vunpack.c.l.b16 %v324
    %v864 = vpack.c.b16 %v849, %v848
    %v865 = vpack.c.b16 %v851, %v850
    %v866 = vpack.c.b16 %v853, %v852
    %v867 = vpack.c.b16 %v855, %v854
    %v868 = vpack.c.b16 %v857, %v856
    %v869 = vpack.c.b16 %v859, %v858
    %v870 = vpack.c.b16 %v861, %v860
    %v871 = vpack.c.b16 %v863, %v862
    %880 = vmatprep.subr.bf16.mxu0 0
    %881 = vmatpush1.bf16.msra.mxu0 %v864
    %882 = vmatprep.subr.bf16.mxu0 0
    %883 = vmatpush1.bf16.msra.mxu0 %v865
    %884 = vmatprep.subr.bf16.mxu0 0
    %885 = vmatpush1.bf16.msra.mxu0 %v866
    %886 = vmatprep.subr.bf16.mxu0 0
    %887 = vmatpush1.bf16.msra.mxu0 %v867
    %888 = vmatprep.subr.bf16.mxu0 0
    %889 = vmatpush1.bf16.msra.mxu0 %v868
    %890 = vmatprep.subr.bf16.mxu0 0
    %891 = vmatpush1.bf16.msra.mxu0 %v869
    %892 = vmatprep.subr.bf16.mxu0 0
    %893 = vmatpush1.bf16.msra.mxu0 %v870
    %894 = vmatprep.subr.bf16.mxu0 0
    %895 = vmatpush1.bf16.msra.mxu0 %v871
    %896 = vmatprep.subr.bf16.mxu0 0
    %897 = vmatpush1.bf16.msra.mxu0 0
    %898 = vmatprep.subr.bf16.mxu0 0
    %899 = vmatpush1.bf16.msra.mxu0 0
    %900 = vmatprep.subr.bf16.mxu0 0
    %901 = vmatpush1.bf16.msra.mxu0 0
    %902 = vmatprep.subr.bf16.mxu0 0
    %903 = vmatpush1.bf16.msra.mxu0 0
    %904 = vmatprep.subr.bf16.mxu0 0
    %905 = vmatpush1.bf16.msra.mxu0 0
    %906 = vmatprep.subr.bf16.mxu0 0
    %907 = vmatpush1.bf16.msra.mxu0 0
    %908 = vmatprep.subr.bf16.mxu0 0
    %909 = vmatpush1.bf16.msra.mxu0 0
    %910 = vmatprep.subr.bf16.mxu0 0
    %911 = vmatpush1.bf16.msra.mxu0 0
    %912 = vmatprep.mubr.bf16.mxu0 0
    %913 = vmatmul.mubr.bf16.gmra.mrb[0].mxu0 %v825
    %v914 = vpop.f32.mrb[0].mxu0
    %v915 = vadd.f32 %v830, %v914
    %v916 = vpop.f32.mrb[0].mxu0
    %v917 = vpop.f32.mrb[0].mxu0
    %v918 = vadd.f32 %v830, %v917
    %v919 = vpop.f32.mrb[0].mxu0
    %920 = vdwg.mxu0
    %v921 = vadd.f32 %v915, %v56
    %v922 = vadd.f32 %v918, %v57
    %s923 = smul.u32 %s327, 16
    %s924 = scalar_lea.vmem %s16, %s923
    %925 = vst.msk [vmem:[%s924] sm:$0xff] %vm613, %v921
    %926 = vst.msk [vmem:[%s924 + $0x8] sm:$0xff] %vm613, %v922
  $region70: #{pointr_forward.7} parent=0 // loop_footer
    %s331 = sadd.s32 1, %s327
  $region71: #{pointr_forward.7} parent=0 // loop_footer_branch
    %326 = sbr.rel target = $region67
  $region72: #{pointr_forward.7} parent=0 // loop_exit
    _
  // Predicated region
  $region73: #{pointr_forward.7} parent=0 // pred_check
    _
  $region74: #{pointr_forward.7} parent=0 // pred_check_branch
    %928 = sbr.rel (0) target = $region76
  $region75: #{pointr_forward.7} parent=0 // pred_region
    _
  $region76: #{pointr_forward.7} parent=0 // pred_fallthru
    _
  // Predicated region
  $region77: #{pointr_forward.7} parent=0 // pred_check
    _
  $region78: #{pointr_forward.7} parent=0 // pred_check_branch
    %930 = sbr.rel (0) target = $region80
  $region79: #{pointr_forward.7} parent=0 // pred_region
    _
  $region80: #{pointr_forward.7} parent=0 // pred_fallthru
    _

// kernel: pointr_forward.5
$region0: #{pointr_forward.5}
  #allocation0 [shape = 'u32[]', space=smem, size = 0x4, offset = 0x4, fixed_abs, tag = 'smem constant byte address 0x4 - core index']
  #allocation1 [shape = 'u32[144,128]{1,0:T(1,128)}', space=vmem, size = 0x12000, scoped, tag = 'internal scratch']
  %s0 = inlined_call_operand.vmem [shape: bf16[2,8,32], index: 0, kind: input, shape index: {}]
  %s1 = inlined_call_operand.vmem [shape: bf16[32,1024], index: 1, kind: input, shape index: {}]
  %s2 = inlined_call_operand.vmem [shape: f32[1,1024], index: 2, kind: input, shape index: {}]
  %s3 = inlined_call_operand.vmem [shape: bf16[1024,1024], index: 3, kind: input, shape index: {}]
  %s4 = inlined_call_operand.vmem [shape: f32[1,1024], index: 4, kind: input, shape index: {}]
  %s5 = inlined_call_operand.vmem [shape: bf16[1024,32], index: 5, kind: input, shape index: {}]
  %s6 = inlined_call_operand.vmem [shape: f32[2,1,32], index: 6, kind: output, shape index: {}]
  %s7 = sld [smem:[#allocation0]]
  $region57: #{pointr_forward.5} parent=0
    _
  %s9 = ssub.s32 1, %s7
  %s10 = scalar_select 0, %s9, %s7
  loop: start=0, step=1, limit=4
  $region2: #{pointr_forward.5} parent=0 // loop_pre_header
    _
  $region3: #{pointr_forward.5} parent=0 // loop_header
    %s12 = sphi 0, %s16
    %p13 = scmp.ge.s32.totalorder %s12, 4
    %s22 = sphi 0, %s24
    %s25 = sphi 0, %s22
    %s26 = sphi 0, %s25
    %s42 = sphi 0, %s26
    %s46 = sphi 0, %s46
    %s48 = sphi 0, %s46
    %s49 = sphi 0, %s48
    %s63 = sphi 0, %s49
    %s67 = sphi 0, %s67
    %s69 = sphi 0, %s67
    %s70 = sphi 0, %s69
    %s84 = sphi 0, %s70
    %s88 = sphi 0, %s88
    %s90 = sphi 0, %s88
    %s91 = sphi 0, %s90
    %s105 = sphi 0, %s91
    %s109 = sphi 0, %s109
    %s111 = sphi 0, %s109
    %s112 = sphi 0, %s111
    %s126 = sphi 0, %s112
    %s130 = sphi 0, %s130
    %s132 = sphi 0, %s130
    %s133 = sphi 0, %s132
    %s147 = sphi 0, %s133
    %s153 = sphi 0, %s155
    %s156 = sphi 0, %s153
    %s157 = sphi 0, %s156
    %s173 = sphi 0, %s157
  $region4: #{pointr_forward.5} parent=0 // loop_header_branch
    %15 = sbr.rel (%p13) target = $region8
  $region5: #{pointr_forward.5} parent=0 // loop_body
    %s17 = ssub.s32 %s12, 1
    %s18 = ssub.s32 %s12, 2
    %s19 = sadd.s32 %s12, 1
    %s20 = ssub.s32 %s12, %s19
    %p21 = scmp.eq.s32.totalorder %s20, 0
    %s23 = sadd.s32 %s22, 1
    %s24 = scalar_select %p21, %s22, %s23
    %p27 = pneg %p21
    %p28 = scmp.eq.s32.totalorder %s12, 1
    %p29 = por %p27, %p28
    %p30 = scmp.ne.s32.totalorder %s22, %s25
    %p31 = scmp.eq.s32.totalorder %s12, 0
    %p32 = por %p30, %p31
    %p33 = scmp.ne.s32.totalorder %s22, %s25
    %p34 = scmp.eq.s32.totalorder %s17, 1
    %p35 = por %p33, %p34
    %p36 = scmp.ne.s32.totalorder %s25, %s26
    %p37 = scmp.eq.s32.totalorder %s17, 0
    %p38 = por %p36, %p37
    %p39 = scmp.ne.s32.totalorder %s25, %s26
    %p40 = scmp.eq.s32.totalorder %s18, 1
    %p41 = por %p39, %p40
    %p43 = scmp.ne.s32.totalorder %s26, %s42
    %p44 = scmp.eq.s32.totalorder %s18, 0
    %p45 = por %p43, %p44
    %s47 = sadd.s32 %s46, 1
    %p50 = scmp.eq.s32.totalorder %s12, 1
    %p51 = scmp.ne.s32.totalorder %s46, %s48
    %p52 = scmp.eq.s32.totalorder %s12, 0
    %p53 = por %p51, %p52
    %p54 = scmp.ne.s32.totalorder %s46, %s48
    %p55 = scmp.eq.s32.totalorder %s17, 1
    %p56 = por %p54, %p55
    %p57 = scmp.ne.s32.totalorder %s48, %s49
    %p58 = scmp.eq.s32.totalorder %s17, 0
    %p59 = por %p57, %p58
    %p60 = scmp.ne.s32.totalorder %s48, %s49
    %p61 = scmp.eq.s32.totalorder %s18, 1
    %p62 = por %p60, %p61
    %p64 = scmp.ne.s32.totalorder %s49, %s63
    %p65 = scmp.eq.s32.totalorder %s18, 0
    %p66 = por %p64, %p65
    %s68 = sadd.s32 %s67, 1
    %p71 = scmp.eq.s32.totalorder %s12, 1
    %p72 = scmp.ne.s32.totalorder %s67, %s69
    %p73 = scmp.eq.s32.totalorder %s12, 0
    %p74 = por %p72, %p73
    %p75 = scmp.ne.s32.totalorder %s67, %s69
    %p76 = scmp.eq.s32.totalorder %s17, 1
    %p77 = por %p75, %p76
    %p78 = scmp.ne.s32.totalorder %s69, %s70
    %p79 = scmp.eq.s32.totalorder %s17, 0
    %p80 = por %p78, %p79
    %p81 = scmp.ne.s32.totalorder %s69, %s70
    %p82 = scmp.eq.s32.totalorder %s18, 1
    %p83 = por %p81, %p82
    %p85 = scmp.ne.s32.totalorder %s70, %s84
    %p86 = scmp.eq.s32.totalorder %s18, 0
    %p87 = por %p85, %p86
    %s89 = sadd.s32 %s88, 1
    %p92 = scmp.eq.s32.totalorder %s12, 1
    %p93 = scmp.ne.s32.totalorder %s88, %s90
    %p94 = scmp.eq.s32.totalorder %s12, 0
    %p95 = por %p93, %p94
    %p96 = scmp.ne.s32.totalorder %s88, %s90
    %p97 = scmp.eq.s32.totalorder %s17, 1
    %p98 = por %p96, %p97
    %p99 = scmp.ne.s32.totalorder %s90, %s91
    %p100 = scmp.eq.s32.totalorder %s17, 0
    %p101 = por %p99, %p100
    %p102 = scmp.ne.s32.totalorder %s90, %s91
    %p103 = scmp.eq.s32.totalorder %s18, 1
    %p104 = por %p102, %p103
    %p106 = scmp.ne.s32.totalorder %s91, %s105
    %p107 = scmp.eq.s32.totalorder %s18, 0
    %p108 = por %p106, %p107
    %s110 = sadd.s32 %s109, 1
    %p113 = scmp.eq.s32.totalorder %s12, 1
    %p114 = scmp.ne.s32.totalorder %s109, %s111
    %p115 = scmp.eq.s32.totalorder %s12, 0
    %p116 = por %p114, %p115
    %p117 = scmp.ne.s32.totalorder %s109, %s111
    %p118 = scmp.eq.s32.totalorder %s17, 1
    %p119 = por %p117, %p118
    %p120 = scmp.ne.s32.totalorder %s111, %s112
    %p121 = scmp.eq.s32.totalorder %s17, 0
    %p122 = por %p120, %p121
    %p123 = scmp.ne.s32.totalorder %s111, %s112
    %p124 = scmp.eq.s32.totalorder %s18, 1
    %p125 = por %p123, %p124
    %p127 = scmp.ne.s32.totalorder %s112, %s126
    %p128 = scmp.eq.s32.totalorder %s18, 0
    %p129 = por %p127, %p128
    %s131 = sadd.s32 %s130, 1
    %p134 = scmp.eq.s32.totalorder %s12, 1
    %p135 = scmp.ne.s32.totalorder %s130, %s132
    %p136 = scmp.eq.s32.totalorder %s12, 0
    %p137 = por %p135, %p136
    %p138 = scmp.ne.s32.totalorder %s130, %s132
    %p139 = scmp.eq.s32.totalorder %s17, 1
    %p140 = por %p138, %p139
    %p141 = scmp.ne.s32.totalorder %s132, %s133
    %p142 = scmp.eq.s32.totalorder %s17, 0
    %p143 = por %p141, %p142
    %p144 = scmp.ne.s32.totalorder %s132, %s133
    %p145 = scmp.eq.s32.totalorder %s18, 1
    %p146 = por %p144, %p145
    %p148 = scmp.ne.s32.totalorder %s133, %s147
    %p149 = scmp.eq.s32.totalorder %s18, 0
    %p150 = por %p148, %p149
    %s151 = ssub.s32 %s12, %s19
    %p152 = scmp.eq.s32.totalorder %s151, 0
    %s154 = sadd.s32 %s153, 1
    %s155 = scalar_select %p152, %s153, %s154
    %p158 = pneg %p152
    %p159 = scmp.eq.s32.totalorder %s12, 1
    %p160 = por %p158, %p159
    %p161 = scmp.ne.s32.totalorder %s153, %s156
    %p162 = scmp.eq.s32.totalorder %s12, 0
    %p163 = por %p161, %p162
    %p164 = scmp.ne.s32.totalorder %s153, %s156
    %p165 = scmp.eq.s32.totalorder %s17, 1
    %p166 = por %p164, %p165
    %p167 = scmp.ne.s32.totalorder %s156, %s157
    %p168 = scmp.eq.s32.totalorder %s17, 0
    %p169 = por %p167, %p168
    %p170 = scmp.ne.s32.totalorder %s156, %s157
    %p171 = scmp.eq.s32.totalorder %s18, 1
    %p172 = por %p170, %p171
    %p174 = scmp.ne.s32.totalorder %s157, %s173
    %p175 = scmp.eq.s32.totalorder %s18, 0
    %p176 = por %p174, %p175
    %p177 = scmp.le.s32.totalorder 1, %s12
    %p178 = scmp.lt.s32.totalorder %s12, 3
    %p179 = pnand %p177, %p178
    %p180 = pneg %p179
    // Predicated region
    $region9: #{pointr_forward.5} parent=5 // pred_check
      _
    $region10: #{pointr_forward.5} parent=5 // pred_check_branch
      %182 = sbr.rel (%p179) target = $region12
    $region11: #{pointr_forward.5} parent=5 // pred_region
      %s183 = ssub.s32 %s12, 1
      // Predicated region
      $region13: #{pointr_forward.5} parent=11 // pred_check
        %p184 = pneg %p59
      $region14: #{pointr_forward.5} parent=11 // pred_check_branch
        %186 = sbr.rel (%p184) target = $region16
      $region15: #{pointr_forward.5} parent=11 // pred_region
        _
      $region16: #{pointr_forward.5} parent=11 // pred_fallthru
        _
      // Predicated region
      $region17: #{pointr_forward.5} parent=11 // pred_check
        %p187 = pneg %p80
      $region18: #{pointr_forward.5} parent=11 // pred_check_branch
        %189 = sbr.rel (%p187) target = $region20
      $region19: #{pointr_forward.5} parent=11 // pred_region
        _
      $region20: #{pointr_forward.5} parent=11 // pred_fallthru
        _
      // Predicated region
      $region21: #{pointr_forward.5} parent=11 // pred_check
        %p190 = pneg %p101
      $region22: #{pointr_forward.5} parent=11 // pred_check_branch
        %192 = sbr.rel (%p190) target = $region24
      $region23: #{pointr_forward.5} parent=11 // pred_region
        _
      $region24: #{pointr_forward.5} parent=11 // pred_fallthru
        _
      // Predicated region
      $region25: #{pointr_forward.5} parent=11 // pred_check
        %p193 = pneg %p122
      $region26: #{pointr_forward.5} parent=11 // pred_check_branch
        %195 = sbr.rel (%p193) target = $region28
      $region27: #{pointr_forward.5} parent=11 // pred_region
        _
      $region28: #{pointr_forward.5} parent=11 // pred_fallthru
        _
      // Predicated region
      $region29: #{pointr_forward.5} parent=11 // pred_check
        %p196 = pneg %p143
      $region30: #{pointr_forward.5} parent=11 // pred_check_branch
        %198 = sbr.rel (%p196) target = $region32
      $region31: #{pointr_forward.5} parent=11 // pred_region
        _
      $region32: #{pointr_forward.5} parent=11 // pred_fallthru
        _
    $region12: #{pointr_forward.5} parent=5 // pred_fallthru
      _
    %p199 = scmp.lt.s32.totalorder %s12, 2
    // Predicated region
    $region33: #{pointr_forward.5} parent=5 // pred_check
      %p200 = pneg %p199
    $region34: #{pointr_forward.5} parent=5 // pred_check_branch
      %202 = sbr.rel (%p200) target = $region36
    $region35: #{pointr_forward.5} parent=5 // pred_region
      // Predicated region
      $region37: #{pointr_forward.5} parent=35 // pred_check
        %p203 = pneg %p32
      $region38: #{pointr_forward.5} parent=35 // pred_check_branch
        %205 = sbr.rel (%p203) target = $region40
      $region39: #{pointr_forward.5} parent=35 // pred_region
        %p206 = scmp.lt.s32.totalorder %s12, 1
        %s207 = scalar_select %p206, %s12, 1
        %s208 = smul.addr %s207, 4
        %s209 = scalar_lea.vmem %s0, %s208
      $region40: #{pointr_forward.5} parent=35 // pred_fallthru
        _
    $region36: #{pointr_forward.5} parent=5 // pred_fallthru
      _
    %p210 = scmp.le.s32.totalorder 1, %s12
    %p211 = scmp.lt.s32.totalorder %s12, 3
    %p212 = pnand %p210, %p211
    %p213 = pneg %p212
    // Predicated region
    $region41: #{pointr_forward.5} parent=5 // pred_check
      _
    $region42: #{pointr_forward.5} parent=5 // pred_check_branch
      %215 = sbr.rel (%p212) target = $region44
    $region43: #{pointr_forward.5} parent=5 // pred_region
      %s216 = ssub.s32 %s12, 1
      %p217 = scmp.lt.s32.totalorder %s17, 1
      %s218 = scalar_select %p217, %s17, 1
      %s219 = smul.addr %s218, 4
      %s220 = scalar_lea.vmem %s0, %s219
      %p221 = pneg %p38
      %p222 = pneg %p35
      %p223 = pneg %p59
      %p224 = pneg %p56
      %p225 = pneg %p80
      %p226 = pneg %p77
      %p227 = pneg %p101
      %p228 = pneg %p98
      %p229 = pneg %p122
      %p230 = pneg %p119
      %p231 = pneg %p143
      %p232 = pneg %p140
      %p233 = pneg %p169
      %p234 = pneg %p166
      %p235 = scmp.lt.s32.totalorder %s17, 1
      %s236 = scalar_select %p235, %s17, 1
      %s237 = scalar_lea.vmem %s6, %s236
      %p238 = scmp.lt.s32.totalorder %s17, 1
      %s239 = scalar_select %p238, %s17, 1
      %s240 = smul.addr %s239, 4
      %s241 = scalar_lea.vmem %s0, %s240
      %p242 = scmp.lt.s32.totalorder %s17, 1
      %s243 = scalar_select %p242, %s17, 1
      %s244 = scalar_lea.vmem %s6, %s243
      %v246 = vld [vmem:[%s241] sm:$0xf]
      %v247 = vld [vmem:[%s1] sm:$0xff]
      %v248 = vld [vmem:[%s1 + $0x8] sm:$0xff]
      %v249 = vld [vmem:[%s1 + $0x10] sm:$0xff]
      %v250 = vld [vmem:[%s1 + $0x18] sm:$0xff]
      %v251 = vld [vmem:[%s1 + $0x20] sm:$0xff]
      %v252 = vld [vmem:[%s1 + $0x28] sm:$0xff]
      %v253 = vld [vmem:[%s1 + $0x30] sm:$0xff]
      %v254 = vld [vmem:[%s1 + $0x38] sm:$0xff]
      %v255 = vld [vmem:[%s1 + $0x40] sm:$0xff]
      %v256 = vld [vmem:[%s1 + $0x48] sm:$0xff]
      %v257 = vld [vmem:[%s1 + $0x50] sm:$0xff]
      %v258 = vld [vmem:[%s1 + $0x58] sm:$0xff]
      %v259 = vld [vmem:[%s1 + $0x60] sm:$0xff]
      %v260 = vld [vmem:[%s1 + $0x68] sm:$0xff]
      %v261 = vld [vmem:[%s1 + $0x70] sm:$0xff]
      %v262 = vld [vmem:[%s1 + $0x78] sm:$0xff]
      %v263 = vld [vmem:[%s2] sm:$0xff]
      %v265 = vlaneseq
      %v266 = vshrl.u32 %v265, 7
      %v267 = vsub.s32 0, %v266
      %v268 = vrot.slane %v263, %v267
      %v269 = vlaneseq
      %v270 = vshrl.u32 %v269, 7
      %v271 = vsub.s32 1, %v270
      %v272 = vrot.slane %v263, %v271
      %v273 = vlaneseq
      %v274 = vshrl.u32 %v273, 7
      %v275 = vsub.s32 2, %v274
      %v276 = vrot.slane %v263, %v275
      %v277 = vlaneseq
      %v278 = vshrl.u32 %v277, 7
      %v279 = vsub.s32 3, %v278
      %v280 = vrot.slane %v263, %v279
      %v281 = vlaneseq
      %v282 = vshrl.u32 %v281, 7
      %v283 = vsub.s32 4, %v282
      %v284 = vrot.slane %v263, %v283
      %v285 = vlaneseq
      %v286 = vshrl.u32 %v285, 7
      %v287 = vsub.s32 5, %v286
      %v288 = vrot.slane %v263, %v287
      %v289 = vlaneseq
      %v290 = vshrl.u32 %v289, 7
      %v291 = vsub.s32 6, %v290
      %v292 = vrot.slane %v263, %v291
      %v293 = vlaneseq
      %v294 = vshrl.u32 %v293, 7
      %v295 = vsub.s32 7, %v294
      %v296 = vrot.slane %v263, %v295
      %v321 = vunpack.c.l.b16 %v247
      %v322 = vunpack.c.h.b16 %v247
      %v323 = vunpack.c.l.b16 %v248
      %v324 = vunpack.c.h.b16 %v248
      %v325 = vunpack.c.l.b16 %v249
      %v326 = vunpack.c.h.b16 %v249
      %v327 = vunpack.c.l.b16 %v250
      %v328 = vunpack.c.h.b16 %v250
      %v329 = vunpack.c.l.b16 %v251
      %v330 = vunpack.c.h.b16 %v251
      %v331 = vunpack.c.l.b16 %v252
      %v332 = vunpack.c.h.b16 %v252
      %v333 = vunpack.c.l.b16 %v253
      %v334 = vunpack.c.h.b16 %v253
      %v335 = vunpack.c.l.b16 %v254
      %v336 = vunpack.c.h.b16 %v254
      %v337 = vunpack.c.l.b16 %v255
      %v338 = vunpack.c.h.b16 %v255
      %v339 = vunpack.c.l.b16 %v256
      %v340 = vunpack.c.h.b16 %v256
      %v341 = vunpack.c.l.b16 %v257
      %v342 = vunpack.c.h.b16 %v257
      %v343 = vunpack.c.l.b16 %v258
      %v344 = vunpack.c.h.b16 %v258
      %v345 = vunpack.c.l.b16 %v259
      %v346 = vunpack.c.h.b16 %v259
      %v347 = vunpack.c.l.b16 %v260
      %v348 = vunpack.c.h.b16 %v260
      %v349 = vunpack.c.l.b16 %v261
      %v350 = vunpack.c.h.b16 %v261
      %v351 = vunpack.c.l.b16 %v262
      %v352 = vunpack.c.h.b16 %v262
      %v353 = vpack.c.b16 %v329, %v321
      %v354 = vpack.c.b16 %v330, %v322
      %v355 = vpack.c.b16 %v331, %v323
      %v356 = vpack.c.b16 %v332, %v324
      %v357 = vpack.c.b16 %v333, %v325
      %v358 = vpack.c.b16 %v334, %v326
      %v359 = vpack.c.b16 %v335, %v327
      %v360 = vpack.c.b16 %v336, %v328
      %v361 = vpack.c.b16 %v345, %v337
      %v362 = vpack.c.b16 %v346, %v338
      %v363 = vpack.c.b16 %v347, %v339
      %v364 = vpack.c.b16 %v348, %v340
      %v365 = vpack.c.b16 %v349, %v341
      %v366 = vpack.c.b16 %v350, %v342
      %v367 = vpack.c.b16 %v351, %v343
      %v368 = vpack.c.b16 %v352, %v344
      %vm385 = vcmask 261120
      %v387 = vsel %vm385, %v246, 0
      %389 = vmatprep.subr.bf16.mxu0 %v354
      %390 = vmatpush1.bf16.msra.mxu0 %v353
      %391 = vmatprep.subr.bf16.mxu0 %v362
      %392 = vmatpush1.bf16.msra.mxu0 %v361
      %393 = vmatprep.subr.bf16.mxu0 0
      %394 = vmatpush1.bf16.msra.mxu0 0
      %395 = vmatprep.subr.bf16.mxu0 0
      %396 = vmatpush1.bf16.msra.mxu0 0
      %397 = vmatprep.subr.bf16.mxu0 0
      %398 = vmatpush1.bf16.msra.mxu0 0
      %399 = vmatprep.subr.bf16.mxu0 0
      %400 = vmatpush1.bf16.msra.mxu0 0
      %401 = vmatprep.subr.bf16.mxu0 0
      %402 = vmatpush1.bf16.msra.mxu0 0
      %403 = vmatprep.subr.bf16.mxu0 0
      %404 = vmatpush1.bf16.msra.mxu0 0
      %405 = vmatprep.subr.bf16.mxu0 0
      %406 = vmatpush1.bf16.msra.mxu0 0
      %407 = vmatprep.subr.bf16.mxu0 0
      %408 = vmatpush1.bf16.msra.mxu0 0
      %409 = vmatprep.subr.bf16.mxu0 0
      %410 = vmatpush1.bf16.msra.mxu0 0
      %411 = vmatprep.subr.bf16.mxu0 0
      %412 = vmatpush1.bf16.msra.mxu0 0
      %413 = vmatprep.subr.bf16.mxu0 0
      %414 = vmatpush1.bf16.msra.mxu0 0
      %415 = vmatprep.subr.bf16.mxu0 0
      %416 = vmatpush1.bf16.msra.mxu0 0
      %417 = vmatprep.subr.bf16.mxu0 0
      %418 = vmatpush1.bf16.msra.mxu0 0
      %419 = vmatprep.subr.bf16.mxu0 0
      %420 = vmatpush1.bf16.msra.mxu0 0
      %421 = vmatprep.mubr.bf16.mxu0 0
      %422 = vmatmul.mubr.bf16.gmra.mrb[0].mxu0 %v387
      %v423 = vpop.f32.mrb[0].mxu0
      %v424 = vadd.f32 %v268, %v423
      %v425 = vpop.f32.mrb[0].mxu0
      %v426 = vadd.f32 %v272, %v425
      %v427 = vpop.f32.mrb[0].mxu0
      %v428 = vpop.f32.mrb[0].mxu0
      %429 = vdwg.mxu0
      %430 = vmatprep.subr.bf16.mxu0 %v356
      %431 = vmatpush1.bf16.msra.mxu0 %v355
      %432 = vmatprep.subr.bf16.mxu0 %v364
      %433 = vmatpush1.bf16.msra.mxu0 %v363
      %434 = vmatprep.subr.bf16.mxu0 0
      %435 = vmatpush1.bf16.msra.mxu0 0
      %436 = vmatprep.subr.bf16.mxu0 0
      %437 = vmatpush1.bf16.msra.mxu0 0
      %438 = vmatprep.subr.bf16.mxu0 0
      %439 = vmatpush1.bf16.msra.mxu0 0
      %440 = vmatprep.subr.bf16.mxu0 0
      %441 = vmatpush1.bf16.msra.mxu0 0
      %442 = vmatprep.subr.bf16.mxu0 0
      %443 = vmatpush1.bf16.msra.mxu0 0
      %444 = vmatprep.subr.bf16.mxu0 0
      %445 = vmatpush1.bf16.msra.mxu0 0
      %446 = vmatprep.subr.bf16.mxu0 0
      %447 = vmatpush1.bf16.msra.mxu0 0
      %448 = vmatprep.subr.bf16.mxu0 0
      %449 = vmatpush1.bf16.msra.mxu0 0
      %450 = vmatprep.subr.bf16.mxu0 0
      %451 = vmatpush1.bf16.msra.mxu0 0
      %452 = vmatprep.subr.bf16.mxu0 0
      %453 = vmatpush1.bf16.msra.mxu0 0
      %454 = vmatprep.subr.bf16.mxu0 0
      %455 = vmatpush1.bf16.msra.mxu0 0
      %456 = vmatprep.subr.bf16.mxu0 0
      %457 = vmatpush1.bf16.msra.mxu0 0
      %458 = vmatprep.subr.bf16.mxu0 0
      %459 = vmatpush1.bf16.msra.mxu0 0
      %460 = vmatprep.subr.bf16.mxu0 0
      %461 = vmatpush1.bf16.msra.mxu0 0
      %462 = vmatprep.mubr.bf16.mxu0 0
      %463 = vmatmul.mubr.bf16.gmra.mrb[0].mxu0 %v387
      %v464 = vpop.f32.mrb[0].mxu0
      %v465 = vadd.f32 %v276, %v464
      %v466 = vpop.f32.mrb[0].mxu0
      %v467 = vadd.f32 %v280, %v466
      %v468 = vpop.f32.mrb[0].mxu0
      %v469 = vpop.f32.mrb[0].mxu0
      %470 = vdwg.mxu0
      %471 = vmatprep.subr.bf16.mxu0 %v358
      %472 = vmatpush1.bf16.msra.mxu0 %v357
      %473 = vmatprep.subr.bf16.mxu0 %v366
      %474 = vmatpush1.bf16.msra.mxu0 %v365
      %475 = vmatprep.subr.bf16.mxu0 0
      %476 = vmatpush1.bf16.msra.mxu0 0
      %477 = vmatprep.subr.bf16.mxu0 0
      %478 = vmatpush1.bf16.msra.mxu0 0
      %479 = vmatprep.subr.bf16.mxu0 0
      %480 = vmatpush1.bf16.msra.mxu0 0
      %481 = vmatprep.subr.bf16.mxu0 0
      %482 = vmatpush1.bf16.msra.mxu0 0
      %483 = vmatprep.subr.bf16.mxu0 0
      %484 = vmatpush1.bf16.msra.mxu0 0
      %485 = vmatprep.subr.bf16.mxu0 0
      %486 = vmatpush1.bf16.msra.mxu0 0
      %487 = vmatprep.subr.bf16.mxu0 0
      %488 = vmatpush1.bf16.msra.mxu0 0
      %489 = vmatprep.subr.bf16.mxu0 0
      %490 = vmatpush1.bf16.msra.mxu0 0
      %491 = vmatprep.subr.bf16.mxu0 0
      %492 = vmatpush1.bf16.msra.mxu0 0
      %493 = vmatprep.subr.bf16.mxu0 0
      %494 = vmatpush1.bf16.msra.mxu0 0
      %495 = vmatprep.subr.bf16.mxu0 0
      %496 = vmatpush1.bf16.msra.mxu0 0
      %497 = vmatprep.subr.bf16.mxu0 0
      %498 = vmatpush1.bf16.msra.mxu0 0
      %499 = vmatprep.subr.bf16.mxu0 0
      %500 = vmatpush1.bf16.msra.mxu0 0
      %501 = vmatprep.subr.bf16.mxu0 0
      %502 = vmatpush1.bf16.msra.mxu0 0
      %503 = vmatprep.mubr.bf16.mxu0 0
      %504 = vmatmul.mubr.bf16.gmra.mrb[0].mxu0 %v387
      %v505 = vpop.f32.mrb[0].mxu0
      %v506 = vadd.f32 %v284, %v505
      %v507 = vpop.f32.mrb[0].mxu0
      %v508 = vadd.f32 %v288, %v507
      %v509 = vpop.f32.mrb[0].mxu0
      %v510 = vpop.f32.mrb[0].mxu0
      %511 = vdwg.mxu0
      %512 = vmatprep.subr.bf16.mxu0 %v360
      %513 = vmatpush1.bf16.msra.mxu0 %v359
      %514 = vmatprep.subr.bf16.mxu0 %v368
      %515 = vmatpush1.bf16.msra.mxu0 %v367
      %516 = vmatprep.subr.bf16.mxu0 0
      %517 = vmatpush1.bf16.msra.mxu0 0
      %518 = vmatprep.subr.bf16.mxu0 0
      %519 = vmatpush1.bf16.msra.mxu0 0
      %520 = vmatprep.subr.bf16.mxu0 0
      %521 = vmatpush1.bf16.msra.mxu0 0
      %522 = vmatprep.subr.bf16.mxu0 0
      %523 = vmatpush1.bf16.msra.mxu0 0
      %524 = vmatprep.subr.bf16.mxu0 0
      %525 = vmatpush1.bf16.msra.mxu0 0
      %526 = vmatprep.subr.bf16.mxu0 0
      %527 = vmatpush1.bf16.msra.mxu0 0
      %528 = vmatprep.subr.bf16.mxu0 0
      %529 = vmatpush1.bf16.msra.mxu0 0
      %530 = vmatprep.subr.bf16.mxu0 0
      %531 = vmatpush1.bf16.msra.mxu0 0
      %532 = vmatprep.subr.bf16.mxu0 0
      %533 = vmatpush1.bf16.msra.mxu0 0
      %534 = vmatprep.subr.bf16.mxu0 0
      %535 = vmatpush1.bf16.msra.mxu0 0
      %536 = vmatprep.subr.bf16.mxu0 0
      %537 = vmatpush1.bf16.msra.mxu0 0
      %538 = vmatprep.subr.bf16.mxu0 0
      %539 = vmatpush1.bf16.msra.mxu0 0
      %540 = vmatprep.subr.bf16.mxu0 0
      %541 = vmatpush1.bf16.msra.mxu0 0
      %542 = vmatprep.subr.bf16.mxu0 0
      %543 = vmatpush1.bf16.msra.mxu0 0
      %544 = vmatprep.mubr.bf16.mxu0 0
      %545 = vmatmul.mubr.bf16.gmra.mrb[0].mxu0 %v387
      %v546 = vpop.f32.mrb[0].mxu0
      %v547 = vadd.f32 %v292, %v546
      %v548 = vpop.f32.mrb[0].mxu0
      %v549 = vadd.f32 %v296, %v548
      %v550 = vpop.f32.mrb[0].mxu0
      %v551 = vpop.f32.mrb[0].mxu0
      %552 = vdwg.mxu0
      %vm553 = vcmp.ge.f32.partialorder %v424, 0.0
      %vm554 = vcmp.ge.f32.partialorder %v426, 0.0
      %vm555 = vcmp.ge.f32.partialorder %v465, 0.0
      %vm556 = vcmp.ge.f32.partialorder %v467, 0.0
      %vm557 = vcmp.ge.f32.partialorder %v506, 0.0
      %vm558 = vcmp.ge.f32.partialorder %v508, 0.0
      %vm559 = vcmp.ge.f32.partialorder %v547, 0.0
      %vm560 = vcmp.ge.f32.partialorder %v549, 0.0
      %v561 = vmul.f32 %v424, 0.2
      %v562 = vmul.f32 %v426, 0.2
      %v563 = vmul.f32 %v465, 0.2
      %v564 = vmul.f32 %v467, 0.2
      %v565 = vmul.f32 %v506, 0.2
      %v566 = vmul.f32 %v508, 0.2
      %v567 = vmul.f32 %v547, 0.2
      %v568 = vmul.f32 %v549, 0.2
      %v569 = vsel %vm553, %v424, %v561
      %v570 = vsel %vm554, %v426, %v562
      %v571 = vsel %vm555, %v465, %v563
      %v572 = vsel %vm556, %v467, %v564
      %v573 = vsel %vm557, %v506, %v565
      %v574 = vsel %vm558, %v508, %v566
      %v575 = vsel %vm559, %v547, %v567
      %v576 = vsel %vm560, %v549, %v568
      %v577 = vpack.c.bf16 %v569, %v569
      %v578 = vpack.c.bf16 %v570, %v570
      %v579 = vpack.c.bf16 %v571, %v571
      %v580 = vpack.c.bf16 %v572, %v572
      %v581 = vpack.c.bf16 %v573, %v573
      %v582 = vpack.c.bf16 %v574, %v574
      %v583 = vpack.c.bf16 %v575, %v575
      %v584 = vpack.c.bf16 %v576, %v576
      %v585 = vld [vmem:[%s3] sm:$0xff]
      %v586 = vld [vmem:[%s3 + $0x8] sm:$0xff]
      %v587 = vld [vmem:[%s3 + $0x10] sm:$0xff]
      %v588 = vld [vmem:[%s3 + $0x18] sm:$0xff]
      %v589 = vld [vmem:[%s3 + $0x20] sm:$0xff]
      %v590 = vld [vmem:[%s3 + $0x28] sm:$0xff]
      %v591 = vld [vmem:[%s3 + $0x30] sm:$0xff]
      %v592 = vld [vmem:[%s3 + $0x38] sm:$0xff]
      %v593 = vld [vmem:[%s3 + $0x40] sm:$0xff]
      %v594 = vld [vmem:[%s3 + $0x48] sm:$0xff]
      %v595 = vld [vmem:[%s3 + $0x50] sm:$0xff]
      %v596 = vld [vmem:[%s3 + $0x58] sm:$0xff]
      %v597 = vld [vmem:[%s3 + $0x60] sm:$0xff]
      %v598 = vld [vmem:[%s3 + $0x68] sm:$0xff]
      %v599 = vld [vmem:[%s3 + $0x70] sm:$0xff]
      %v600 = vld [vmem:[%s3 + $0x78] sm:$0xff]
      %v601 = vld [vmem:[%s3 + $0x80] sm:$0xff]
      %v602 = vld [vmem:[%s3 + $0x88] sm:$0xff]
      %v603 = vld [vmem:[%s3 + $0x90] sm:$0xff]
      %v604 = vld [vmem:[%s3 + $0x98] sm:$0xff]
      %v605 = vld [vmem:[%s3 + $0xa0] sm:$0xff]
      %v606 = vld [vmem:[%s3 + $0xa8] sm:$0xff]
      %v607 = vld [vmem:[%s3 + $0xb0] sm:$0xff]
      %v608 = vld [vmem:[%s3 + $0xb8] sm:$0xff]
      %v609 = vld [vmem:[%s3 + $0xc0] sm:$0xff]
      %v610 = vld [vmem:[%s3 + $0xc8] sm:$0xff]
      %v611 = vld [vmem:[%s3 + $0xd0] sm:$0xff]
      %v612 = vld [vmem:[%s3 + $0xd8] sm:$0xff]
      %v613 = vld [vmem:[%s3 + $0xe0] sm:$0xff]
      %v614 = vld [vmem:[%s3 + $0xe8] sm:$0xff]
      %v615 = vld [vmem:[%s3 + $0xf0] sm:$0xff]
      %v616 = vld [vmem:[%s3 + $0xf8] sm:$0xff]
      %v617 = vld [vmem:[%s3 + $0x100] sm:$0xff]
      %v618 = vld [vmem:[%s3 + $0x108] sm:$0xff]
      %v619 = vld [vmem:[%s3 + $0x110] sm:$0xff]
      %v620 = vld [vmem:[%s3 + $0x118] sm:$0xff]
      %v621 = vld [vmem:[%s3 + $0x120] sm:$0xff]
      %v622 = vld [vmem:[%s3 + $0x128] sm:$0xff]
      %v623 = vld [vmem:[%s3 + $0x130] sm:$0xff]
      %v624 = vld [vmem:[%s3 + $0x138] sm:$0xff]
      %v625 = vld [vmem:[%s3 + $0x140] sm:$0xff]
      %v626 = vld [vmem:[%s3 + $0x148] sm:$0xff]
      %v627 = vld [vmem:[%s3 + $0x150] sm:$0xff]
      %v628 = vld [vmem:[%s3 + $0x158] sm:$0xff]
      %v629 = vld [vmem:[%s3 + $0x160] sm:$0xff]
      %v630 = vld [vmem:[%s3 + $0x168] sm:$0xff]
      %v631 = vld [vmem:[%s3 + $0x170] sm:$0xff]
      %v632 = vld [vmem:[%s3 + $0x178] sm:$0xff]
      %v633 = vld [vmem:[%s3 + $0x180] sm:$0xff]
      %v634 = vld [vmem:[%s3 + $0x188] sm:$0xff]
      %v635 = vld [vmem:[%s3 + $0x190] sm:$0xff]
      %v636 = vld [vmem:[%s3 + $0x198] sm:$0xff]
      %v637 = vld [vmem:[%s3 + $0x1a0] sm:$0xff]
      %v638 = vld [vmem:[%s3 + $0x1a8] sm:$0xff]
      %v639 = vld [vmem:[%s3 + $0x1b0] sm:$0xff]
      %v640 = vld [vmem:[%s3 + $0x1b8] sm:$0xff]
      %v641 = vld [vmem:[%s3 + $0x1c0] sm:$0xff]
      %v642 = vld [vmem:[%s3 + $0x1c8] sm:$0xff]
      %v643 = vld [vmem:[%s3 + $0x1d0] sm:$0xff]
      %v644 = vld [vmem:[%s3 + $0x1d8] sm:$0xff]
      %v645 = vld [vmem:[%s3 + $0x1e0] sm:$0xff]
      %v646 = vld [vmem:[%s3 + $0x1e8] sm:$0xff]
      %v647 = vld [vmem:[%s3 + $0x1f0] sm:$0xff]
      %v648 = vld [vmem:[%s3 + $0x1f8] sm:$0xff]
      %v649 = vld [vmem:[%s3 + $0x200] sm:$0xff]
      %v650 = vld [vmem:[%s3 + $0x208] sm:$0xff]
      %v651 = vld [vmem:[%s3 + $0x210] sm:$0xff]
      %v652 = vld [vmem:[%s3 + $0x218] sm:$0xff]
      %v653 = vld [vmem:[%s3 + $0x220] sm:$0xff]
      %v654 = vld [vmem:[%s3 + $0x228] sm:$0xff]
      %v655 = vld [vmem:[%s3 + $0x230] sm:$0xff]
      %v656 = vld [vmem:[%s3 + $0x238] sm:$0xff]
      %v657 = vld [vmem:[%s3 + $0x240] sm:$0xff]
      %v658 = vld [vmem:[%s3 + $0x248] sm:$0xff]
      %v659 = vld [vmem:[%s3 + $0x250] sm:$0xff]
      %v660 = vld [vmem:[%s3 + $0x258] sm:$0xff]
      %v661 = vld [vmem:[%s3 + $0x260] sm:$0xff]
      %v662 = vld [vmem:[%s3 + $0x268] sm:$0xff]
      %v663 = vld [vmem:[%s3 + $0x270] sm:$0xff]
      %v664 = vld [vmem:[%s3 + $0x278] sm:$0xff]
      %v665 = vld [vmem:[%s3 + $0x280] sm:$0xff]
      %v666 = vld [vmem:[%s3 + $0x288] sm:$0xff]
      %v667 = vld [vmem:[%s3 + $0x290] sm:$0xff]
      %v668 = vld [vmem:[%s3 + $0x298] sm:$0xff]
      %v669 = vld [vmem:[%s3 + $0x2a0] sm:$0xff]
      %v670 = vld [vmem:[%s3 + $0x2a8] sm:$0xff]
      %v671 = vld [vmem:[%s3 + $0x2b0] sm:$0xff]
      %v672 = vld [vmem:[%s3 + $0x2b8] sm:$0xff]
      %v673 = vld [vmem:[%s3 + $0x2c0] sm:$0xff]
      %v674 = vld [vmem:[%s3 + $0x2c8] sm:$0xff]
      %v675 = vld [vmem:[%s3 + $0x2d0] sm:$0xff]
      %v676 = vld [vmem:[%s3 + $0x2d8] sm:$0xff]
      %v677 = vld [vmem:[%s3 + $0x2e0] sm:$0xff]
      %v678 = vld [vmem:[%s3 + $0x2e8] sm:$0xff]
      %v679 = vld [vmem:[%s3 + $0x2f0] sm:$0xff]
      %v680 = vld [vmem:[%s3 + $0x2f8] sm:$0xff]
      %v681 = vld [vmem:[%s3 + $0x300] sm:$0xff]
      %v682 = vld [vmem:[%s3 + $0x308] sm:$0xff]
      %v683 = vld [vmem:[%s3 + $0x310] sm:$0xff]
      %v684 = vld [vmem:[%s3 + $0x318] sm:$0xff]
      %v685 = vld [vmem:[%s3 + $0x320] sm:$0xff]
      %v686 = vld [vmem:[%s3 + $0x328] sm:$0xff]
      %v687 = vld [vmem:[%s3 + $0x330] sm:$0xff]
      %v688 = vld [vmem:[%s3 + $0x338] sm:$0xff]
      %v689 = vld [vmem:[%s3 + $0x340] sm:$0xff]
      %v690 = vld [vmem:[%s3 + $0x348] sm:$0xff]
      %v691 = vld [vmem:[%s3 + $0x350] sm:$0xff]
      %v692 = vld [vmem:[%s3 + $0x358] sm:$0xff]
      %v693 = vld [vmem:[%s3 + $0x360] sm:$0xff]
      %v694 = vld [vmem:[%s3 + $0x368] sm:$0xff]
      %v695 = vld [vmem:[%s3 + $0x370] sm:$0xff]
      %v696 = vld [vmem:[%s3 + $0x378] sm:$0xff]
      %v697 = vld [vmem:[%s3 + $0x380] sm:$0xff]
      %v698 = vld [vmem:[%s3 + $0x388] sm:$0xff]
      %v699 = vld [vmem:[%s3 + $0x390] sm:$0xff]
      %v700 = vld [vmem:[%s3 + $0x398] sm:$0xff]
      %v701 = vld [vmem:[%s3 + $0x3a0] sm:$0xff]
      %v702 = vld [vmem:[%s3 + $0x3a8] sm:$0xff]
      %v703 = vld [vmem:[%s3 + $0x3b0] sm:$0xff]
      %v704 = vld [vmem:[%s3 + $0x3b8] sm:$0xff]
      %v705 = vld [vmem:[%s3 + $0x3c0] sm:$0xff]
      %v706 = vld [vmem:[%s3 + $0x3c8] sm:$0xff]
      %v707 = vld [vmem:[%s3 + $0x3d0] sm:$0xff]
      %v708 = vld [vmem:[%s3 + $0x3d8] sm:$0xff]
      %v709 = vld [vmem:[%s3 + $0x3e0] sm:$0xff]
      %v710 = vld [vmem:[%s3 + $0x3e8] sm:$0xff]
      %v711 = vld [vmem:[%s3 + $0x3f0] sm:$0xff]
      %v712 = vld [vmem:[%s3 + $0x3f8] sm:$0xff]
      %v713 = vld [vmem:[%s3 + $0x400] sm:$0xff]
      %v714 = vld [vmem:[%s3 + $0x408] sm:$0xff]
      %v715 = vld [vmem:[%s3 + $0x410] sm:$0xff]
      %v716 = vld [vmem:[%s3 + $0x418] sm:$0xff]
      %v717 = vld [vmem:[%s3 + $0x420] sm:$0xff]
      %v718 = vld [vmem:[%s3 + $0x428] sm:$0xff]
      %v719 = vld [vmem:[%s3 + $0x430] sm:$0xff]
      %v720 = vld [vmem:[%s3 + $0x438] sm:$0xff]
      %v721 = vld [vmem:[%s3 + $0x440] sm:$0xff]
      %v722 = vld [vmem:[%s3 + $0x448] sm:$0xff]
      %v723 = vld [vmem:[%s3 + $0x450] sm:$0xff]
      %v724 = vld [vmem:[%s3 + $0x458] sm:$0xff]
      %v725 = vld [vmem:[%s3 + $0x460] sm:$0xff]
      %v726 = vld [vmem:[%s3 + $0x468] sm:$0xff]
      %v727 = vld [vmem:[%s3 + $0x470] sm:$0xff]
      %v728 = vld [vmem:[%s3 + $0x478] sm:$0xff]
      %v729 = vld [vmem:[%s3 + $0x480] sm:$0xff]
      %v730 = vld [vmem:[%s3 + $0x488] sm:$0xff]
      %v731 = vld [vmem:[%s3 + $0x490] sm:$0xff]
      %v732 = vld [vmem:[%s3 + $0x498] sm:$0xff]
      %v733 = vld [vmem:[%s3 + $0x4a0] sm:$0xff]
      %v734 = vld [vmem:[%s3 + $0x4a8] sm:$0xff]
      %v735 = vld [vmem:[%s3 + $0x4b0] sm:$0xff]
      %v736 = vld [vmem:[%s3 + $0x4b8] sm:$0xff]
      %v737 = vld [vmem:[%s3 + $0x4c0] sm:$0xff]
      %v738 = vld [vmem:[%s3 + $0x4c8] sm:$0xff]
      %v739 = vld [vmem:[%s3 + $0x4d0] sm:$0xff]
      %v740 = vld [vmem:[%s3 + $0x4d8] sm:$0xff]
      %v741 = vld [vmem:[%s3 + $0x4e0] sm:$0xff]
      %v742 = vld [vmem:[%s3 + $0x4e8] sm:$0xff]
      %v743 = vld [vmem:[%s3 + $0x4f0] sm:$0xff]
      %v744 = vld [vmem:[%s3 + $0x4f8] sm:$0xff]
      %v745 = vld [vmem:[%s3 + $0x500] sm:$0xff]
      %v746 = vld [vmem:[%s3 + $0x508] sm:$0xff]
      %v747 = vld [vmem:[%s3 + $0x510] sm:$0xff]
      %v748 = vld [vmem:[%s3 + $0x518] sm:$0xff]
      %v749 = vld [vmem:[%s3 + $0x520] sm:$0xff]
      %v750 = vld [vmem:[%s3 + $0x528] sm:$0xff]
      %v751 = vld [vmem:[%s3 + $0x530] sm:$0xff]
      %v752 = vld [vmem:[%s3 + $0x538] sm:$0xff]
      %v753 = vld [vmem:[%s3 + $0x540] sm:$0xff]
      %v754 = vld [vmem:[%s3 + $0x548] sm:$0xff]
      %v755 = vld [vmem:[%s3 + $0x550] sm:$0xff]
      %v756 = vld [vmem:[%s3 + $0x558] sm:$0xff]
      %v757 = vld [vmem:[%s3 + $0x560] sm:$0xff]
      %v758 = vld [vmem:[%s3 + $0x568] sm:$0xff]
      %v759 = vld [vmem:[%s3 + $0x570] sm:$0xff]
      %v760 = vld [vmem:[%s3 + $0x578] sm:$0xff]
      %v761 = vld [vmem:[%s3 + $0x580] sm:$0xff]
      %v762 = vld [vmem:[%s3 + $0x588] sm:$0xff]
      %v763 = vld [vmem:[%s3 + $0x590] sm:$0xff]
      %v764 = vld [vmem:[%s3 + $0x598] sm:$0xff]
      %v765 = vld [vmem:[%s3 + $0x5a0] sm:$0xff]
      %v766 = vld [vmem:[%s3 + $0x5a8] sm:$0xff]
      %v767 = vld [vmem:[%s3 + $0x5b0] sm:$0xff]
      %v768 = vld [vmem:[%s3 + $0x5b8] sm:$0xff]
      %v769 = vld [vmem:[%s3 + $0x5c0] sm:$0xff]
      %v770 = vld [vmem:[%s3 + $0x5c8] sm:$0xff]
      %v771 = vld [vmem:[%s3 + $0x5d0] sm:$0xff]
      %v772 = vld [vmem:[%s3 + $0x5d8] sm:$0xff]
      %v773 = vld [vmem:[%s3 + $0x5e0] sm:$0xff]
      %v774 = vld [vmem:[%s3 + $0x5e8] sm:$0xff]
      %v775 = vld [vmem:[%s3 + $0x5f0] sm:$0xff]
      %v776 = vld [vmem:[%s3 + $0x5f8] sm:$0xff]
      %v777 = vld [vmem:[%s3 + $0x600] sm:$0xff]
      %v778 = vld [vmem:[%s3 + $0x608] sm:$0xff]
      %v779 = vld [vmem:[%s3 + $0x610] sm:$0xff]
      %v780 = vld [vmem:[%s3 + $0x618] sm:$0xff]
      %v781 = vld [vmem:[%s3 + $0x620] sm:$0xff]
      %v782 = vld [vmem:[%s3 + $0x628] sm:$0xff]
      %v783 = vld [vmem:[%s3 + $0x630] sm:$0xff]
      %v784 = vld [vmem:[%s3 + $0x638] sm:$0xff]
      %v785 = vld [vmem:[%s3 + $0x640] sm:$0xff]
      %v786 = vld [vmem:[%s3 + $0x648] sm:$0xff]
      %v787 = vld [vmem:[%s3 + $0x650] sm:$0xff]
      %v788 = vld [vmem:[%s3 + $0x658] sm:$0xff]
      %v789 = vld [vmem:[%s3 + $0x660] sm:$0xff]
      %v790 = vld [vmem:[%s3 + $0x668] sm:$0xff]
      %v791 = vld [vmem:[%s3 + $0x670] sm:$0xff]
      %v792 = vld [vmem:[%s3 + $0x678] sm:$0xff]
      %v793 = vld [vmem:[%s3 + $0x680] sm:$0xff]
      %v794 = vld [vmem:[%s3 + $0x688] sm:$0xff]
      %v795 = vld [vmem:[%s3 + $0x690] sm:$0xff]
      %v796 = vld [vmem:[%s3 + $0x698] sm:$0xff]
      %v797 = vld [vmem:[%s3 + $0x6a0] sm:$0xff]
      %v798 = vld [vmem:[%s3 + $0x6a8] sm:$0xff]
      %v799 = vld [vmem:[%s3 + $0x6b0] sm:$0xff]
      %v800 = vld [vmem:[%s3 + $0x6b8] sm:$0xff]
      %v801 = vld [vmem:[%s3 + $0x6c0] sm:$0xff]
      %v802 = vld [vmem:[%s3 + $0x6c8] sm:$0xff]
      %v803 = vld [vmem:[%s3 + $0x6d0] sm:$0xff]
      %v804 = vld [vmem:[%s3 + $0x6d8] sm:$0xff]
      %v805 = vld [vmem:[%s3 + $0x6e0] sm:$0xff]
      %v806 = vld [vmem:[%s3 + $0x6e8] sm:$0xff]
      %v807 = vld [vmem:[%s3 + $0x6f0] sm:$0xff]
      %v808 = vld [vmem:[%s3 + $0x6f8] sm:$0xff]
      %v809 = vld [vmem:[%s3 + $0x700] sm:$0xff]
      %v810 = vld [vmem:[%s3 + $0x708] sm:$0xff]
      %v811 = vld [vmem:[%s3 + $0x710] sm:$0xff]
      %v812 = vld [vmem:[%s3 + $0x718] sm:$0xff]
      %v813 = vld [vmem:[%s3 + $0x720] sm:$0xff]
      %v814 = vld [vmem:[%s3 + $0x728] sm:$0xff]
      %v815 = vld [vmem:[%s3 + $0x730] sm:$0xff]
      %v816 = vld [vmem:[%s3 + $0x738] sm:$0xff]
      %v817 = vld [vmem:[%s3 + $0x740] sm:$0xff]
      %v818 = vld [vmem:[%s3 + $0x748] sm:$0xff]
      %v819 = vld [vmem:[%s3 + $0x750] sm:$0xff]
      %v820 = vld [vmem:[%s3 + $0x758] sm:$0xff]
      %v821 = vld [vmem:[%s3 + $0x760] sm:$0xff]
      %v822 = vld [vmem:[%s3 + $0x768] sm:$0xff]
      %v823 = vld [vmem:[%s3 + $0x770] sm:$0xff]
      %v824 = vld [vmem:[%s3 + $0x778] sm:$0xff]
      %v825 = vld [vmem:[%s3 + $0x780] sm:$0xff]
      %v826 = vld [vmem:[%s3 + $0x788] sm:$0xff]
      %v827 = vld [vmem:[%s3 + $0x790] sm:$0xff]
      %v828 = vld [vmem:[%s3 + $0x798] sm:$0xff]
      %v829 = vld [vmem:[%s3 + $0x7a0] sm:$0xff]
      %v830 = vld [vmem:[%s3 + $0x7a8] sm:$0xff]
      %v831 = vld [vmem:[%s3 + $0x7b0] sm:$0xff]
      %v832 = vld [vmem:[%s3 + $0x7b8] sm:$0xff]
      %v833 = vld [vmem:[%s3 + $0x7c0] sm:$0xff]
      %v834 = vld [vmem:[%s3 + $0x7c8] sm:$0xff]
      %v835 = vld [vmem:[%s3 + $0x7d0] sm:$0xff]
      %v836 = vld [vmem:[%s3 + $0x7d8] sm:$0xff]
      %v837 = vld [vmem:[%s3 + $0x7e0] sm:$0xff]
      %v838 = vld [vmem:[%s3 + $0x7e8] sm:$0xff]
      %v839 = vld [vmem:[%s3 + $0x7f0] sm:$0xff]
      %v840 = vld [vmem:[%s3 + $0x7f8] sm:$0xff]
      %v841 = vld [vmem:[%s3 + $0x800] sm:$0xff]
      %v842 = vld [vmem:[%s3 + $0x808] sm:$0xff]
      %v843 = vld [vmem:[%s3 + $0x810] sm:$0xff]
      %v844 = vld [vmem:[%s3 + $0x818] sm:$0xff]
      %v845 = vld [vmem:[%s3 + $0x820] sm:$0xff]
      %v846 = vld [vmem:[%s3 + $0x828] sm:$0xff]
      %v847 = vld [vmem:[%s3 + $0x830] sm:$0xff]
      %v848 = vld [vmem:[%s3 + $0x838] sm:$0xff]
      %v849 = vld [vmem:[%s3 + $0x840] sm:$0xff]
      %v850 = vld [vmem:[%s3 + $0x848] sm:$0xff]
      %v851 = vld [vmem:[%s3 + $0x850] sm:$0xff]
      %v852 = vld [vmem:[%s3 + $0x858] sm:$0xff]
      %v853 = vld [vmem:[%s3 + $0x860] sm:$0xff]
      %v854 = vld [vmem:[%s3 + $0x868] sm:$0xff]
      %v855 = vld [vmem:[%s3 + $0x870] sm:$0xff]
      %v856 = vld [vmem:[%s3 + $0x878] sm:$0xff]
      %v857 = vld [vmem:[%s3 + $0x880] sm:$0xff]
      %v858 = vld [vmem:[%s3 + $0x888] sm:$0xff]
      %v859 = vld [vmem:[%s3 + $0x890] sm:$0xff]
      %v860 = vld [vmem:[%s3 + $0x898] sm:$0xff]
      %v861 = vld [vmem:[%s3 + $0x8a0] sm:$0xff]
      %v862 = vld [vmem:[%s3 + $0x8a8] sm:$0xff]
      %v863 = vld [vmem:[%s3 + $0x8b0] sm:$0xff]
      %v864 = vld [vmem:[%s3 + $0x8b8] sm:$0xff]
      %v865 = vld [vmem:[%s3 + $0x8c0] sm:$0xff]
      %v866 = vld [vmem:[%s3 + $0x8c8] sm:$0xff]
      %v867 = vld [vmem:[%s3 + $0x8d0] sm:$0xff]
      %v868 = vld [vmem:[%s3 + $0x8d8] sm:$0xff]
      %v869 = vld [vmem:[%s3 + $0x8e0] sm:$0xff]
      %v870 = vld [vmem:[%s3 + $0x8e8] sm:$0xff]
      %v871 = vld [vmem:[%s3 + $0x8f0] sm:$0xff]
      %v872 = vld [vmem:[%s3 + $0x8f8] sm:$0xff]
      %v873 = vld [vmem:[%s3 + $0x900] sm:$0xff]
      %v874 = vld [vmem:[%s3 + $0x908] sm:$0xff]
      %v875 = vld [vmem:[%s3 + $0x910] sm:$0xff]
      %v876 = vld [vmem:[%s3 + $0x918] sm:$0xff]
      %v877 = vld [vmem:[%s3 + $0x920] sm:$0xff]
      %v878 = vld [vmem:[%s3 + $0x928] sm:$0xff]
      %v879 = vld [vmem:[%s3 + $0x930] sm:$0xff]
      %v880 = vld [vmem:[%s3 + $0x938] sm:$0xff]
      %v881 = vld [vmem:[%s3 + $0x940] sm:$0xff]
      %v882 = vld [vmem:[%s3 + $0x948] sm:$0xff]
      %v883 = vld [vmem:[%s3 + $0x950] sm:$0xff]
      %v884 = vld [vmem:[%s3 + $0x958] sm:$0xff]
      %v885 = vld [vmem:[%s3 + $0x960] sm:$0xff]
      %v886 = vld [vmem:[%s3 + $0x968] sm:$0xff]
      %v887 = vld [vmem:[%s3 + $0x970] sm:$0xff]
      %v888 = vld [vmem:[%s3 + $0x978] sm:$0xff]
      %v889 = vld [vmem:[%s3 + $0x980] sm:$0xff]
      %v890 = vld [vmem:[%s3 + $0x988] sm:$0xff]
      %v891 = vld [vmem:[%s3 + $0x990] sm:$0xff]
      %v892 = vld [vmem:[%s3 + $0x998] sm:$0xff]
      %v893 = vld [vmem:[%s3 + $0x9a0] sm:$0xff]
      %v894 = vld [vmem:[%s3 + $0x9a8] sm:$0xff]
      %v895 = vld [vmem:[%s3 + $0x9b0] sm:$0xff]
      %v896 = vld [vmem:[%s3 + $0x9b8] sm:$0xff]
      %v897 = vld [vmem:[%s3 + $0x9c0] sm:$0xff]
      %v898 = vld [vmem:[%s3 + $0x9c8] sm:$0xff]
      %v899 = vld [vmem:[%s3 + $0x9d0] sm:$0xff]
      %v900 = vld [vmem:[%s3 + $0x9d8] sm:$0xff]
      %v901 = vld [vmem:[%s3 + $0x9e0] sm:$0xff]
      %v902 = vld [vmem:[%s3 + $0x9e8] sm:$0xff]
      %v903 = vld [vmem:[%s3 + $0x9f0] sm:$0xff]
      %v904 = vld [vmem:[%s3 + $0x9f8] sm:$0xff]
      %v905 = vld [vmem:[%s3 + $0xa00] sm:$0xff]
      %v906 = vld [vmem:[%s3 + $0xa08] sm:$0xff]
      %v907 = vld [vmem:[%s3 + $0xa10] sm:$0xff]
      %v908 = vld [vmem:[%s3 + $0xa18] sm:$0xff]
      %v909 = vld [vmem:[%s3 + $0xa20] sm:$0xff]
      %v910 = vld [vmem:[%s3 + $0xa28] sm:$0xff]
      %v911 = vld [vmem:[%s3 + $0xa30] sm:$0xff]
      %v912 = vld [vmem:[%s3 + $0xa38] sm:$0xff]
      %v913 = vld [vmem:[%s3 + $0xa40] sm:$0xff]
      %v914 = vld [vmem:[%s3 + $0xa48] sm:$0xff]
      %v915 = vld [vmem:[%s3 + $0xa50] sm:$0xff]
      %v916 = vld [vmem:[%s3 + $0xa58] sm:$0xff]
      %v917 = vld [vmem:[%s3 + $0xa60] sm:$0xff]
      %v918 = vld [vmem:[%s3 + $0xa68] sm:$0xff]
      %v919 = vld [vmem:[%s3 + $0xa70] sm:$0xff]
      %v920 = vld [vmem:[%s3 + $0xa78] sm:$0xff]
      %v921 = vld [vmem:[%s3 + $0xa80] sm:$0xff]
      %v922 = vld [vmem:[%s3 + $0xa88] sm:$0xff]
      %v923 = vld [vmem:[%s3 + $0xa90] sm:$0xff]
      %v924 = vld [vmem:[%s3 + $0xa98] sm:$0xff]
      %v925 = vld [vmem:[%s3 + $0xaa0] sm:$0xff]
      %v926 = vld [vmem:[%s3 + $0xaa8] sm:$0xff]
      %v927 = vld [vmem:[%s3 + $0xab0] sm:$0xff]
      %v928 = vld [vmem:[%s3 + $0xab8] sm:$0xff]
      %v929 = vld [vmem:[%s3 + $0xac0] sm:$0xff]
      %v930 = vld [vmem:[%s3 + $0xac8] sm:$0xff]
      %v931 = vld [vmem:[%s3 + $0xad0] sm:$0xff]
      %v932 = vld [vmem:[%s3 + $0xad8] sm:$0xff]
      %v933 = vld [vmem:[%s3 + $0xae0] sm:$0xff]
      %v934 = vld [vmem:[%s3 + $0xae8] sm:$0xff]
      %v935 = vld [vmem:[%s3 + $0xaf0] sm:$0xff]
      %v936 = vld [vmem:[%s3 + $0xaf8] sm:$0xff]
      %v937 = vld [vmem:[%s3 + $0xb00] sm:$0xff]
      %v938 = vld [vmem:[%s3 + $0xb08] sm:$0xff]
      %v939 = vld [vmem:[%s3 + $0xb10] sm:$0xff]
      %v940 = vld [vmem:[%s3 + $0xb18] sm:$0xff]
      %v941 = vld [vmem:[%s3 + $0xb20] sm:$0xff]
      %v942 = vld [vmem:[%s3 + $0xb28] sm:$0xff]
      %v943 = vld [vmem:[%s3 + $0xb30] sm:$0xff]
      %v944 = vld [vmem:[%s3 + $0xb38] sm:$0xff]
      %v945 = vld [vmem:[%s3 + $0xb40] sm:$0xff]
      %v946 = vld [vmem:[%s3 + $0xb48] sm:$0xff]
      %v947 = vld [vmem:[%s3 + $0xb50] sm:$0xff]
      %v948 = vld [vmem:[%s3 + $0xb58] sm:$0xff]
      %v949 = vld [vmem:[%s3 + $0xb60] sm:$0xff]
      %v950 = vld [vmem:[%s3 + $0xb68] sm:$0xff]
      %v951 = vld [vmem:[%s3 + $0xb70] sm:$0xff]
      %v952 = vld [vmem:[%s3 + $0xb78] sm:$0xff]
      %v953 = vld [vmem:[%s3 + $0xb80] sm:$0xff]
      %v954 = vld [vmem:[%s3 + $0xb88] sm:$0xff]
      %v955 = vld [vmem:[%s3 + $0xb90] sm:$0xff]
      %v956 = vld [vmem:[%s3 + $0xb98] sm:$0xff]
      %v957 = vld [vmem:[%s3 + $0xba0] sm:$0xff]
      %v958 = vld [vmem:[%s3 + $0xba8] sm:$0xff]
      %v959 = vld [vmem:[%s3 + $0xbb0] sm:$0xff]
      %v960 = vld [vmem:[%s3 + $0xbb8] sm:$0xff]
      %v961 = vld [vmem:[%s3 + $0xbc0] sm:$0xff]
      %v962 = vld [vmem:[%s3 + $0xbc8] sm:$0xff]
      %v963 = vld [vmem:[%s3 + $0xbd0] sm:$0xff]
      %v964 = vld [vmem:[%s3 + $0xbd8] sm:$0xff]
      %v965 = vld [vmem:[%s3 + $0xbe0] sm:$0xff]
      %v966 = vld [vmem:[%s3 + $0xbe8] sm:$0xff]
      %v967 = vld [vmem:[%s3 + $0xbf0] sm:$0xff]
      %v968 = vld [vmem:[%s3 + $0xbf8] sm:$0xff]
      %v969 = vld [vmem:[%s3 + $0xc00] sm:$0xff]
      %v970 = vld [vmem:[%s3 + $0xc08] sm:$0xff]
      %v971 = vld [vmem:[%s3 + $0xc10] sm:$0xff]
      %v972 = vld [vmem:[%s3 + $0xc18] sm:$0xff]
      %v973 = vld [vmem:[%s3 + $0xc20] sm:$0xff]
      %v974 = vld [vmem:[%s3 + $0xc28] sm:$0xff]
      %v975 = vld [vmem:[%s3 + $0xc30] sm:$0xff]
      %v976 = vld [vmem:[%s3 + $0xc38] sm:$0xff]
      %v977 = vld [vmem:[%s3 + $0xc40] sm:$0xff]
      %v978 = vld [vmem:[%s3 + $0xc48] sm:$0xff]
      %v979 = vld [vmem:[%s3 + $0xc50] sm:$0xff]
      %v980 = vld [vmem:[%s3 + $0xc58] sm:$0xff]
      %v981 = vld [vmem:[%s3 + $0xc60] sm:$0xff]
      %v982 = vld [vmem:[%s3 + $0xc68] sm:$0xff]
      %v983 = vld [vmem:[%s3 + $0xc70] sm:$0xff]
      %v984 = vld [vmem:[%s3 + $0xc78] sm:$0xff]
      %v985 = vld [vmem:[%s3 + $0xc80] sm:$0xff]
      %v986 = vld [vmem:[%s3 + $0xc88] sm:$0xff]
      %v987 = vld [vmem:[%s3 + $0xc90] sm:$0xff]
      %v988 = vld [vmem:[%s3 + $0xc98] sm:$0xff]
      %v989 = vld [vmem:[%s3 + $0xca0] sm:$0xff]
      %v990 = vld [vmem:[%s3 + $0xca8] sm:$0xff]
      %v991 = vld [vmem:[%s3 + $0xcb0] sm:$0xff]
      %v992 = vld [vmem:[%s3 + $0xcb8] sm:$0xff]
      %v993 = vld [vmem:[%s3 + $0xcc0] sm:$0xff]
      %v994 = vld [vmem:[%s3 + $0xcc8] sm:$0xff]
      %v995 = vld [vmem:[%s3 + $0xcd0] sm:$0xff]
      %v996 = vld [vmem:[%s3 + $0xcd8] sm:$0xff]
      %v997 = vld [vmem:[%s3 + $0xce0] sm:$0xff]
      %v998 = vld [vmem:[%s3 + $0xce8] sm:$0xff]
      %v999 = vld [vmem:[%s3 + $0xcf0] sm:$0xff]
      %v1000 = vld [vmem:[%s3 + $0xcf8] sm:$0xff]
      %v1001 = vld [vmem:[%s3 + $0xd00] sm:$0xff]
      %v1002 = vld [vmem:[%s3 + $0xd08] sm:$0xff]
      %v1003 = vld [vmem:[%s3 + $0xd10] sm:$0xff]
      %v1004 = vld [vmem:[%s3 + $0xd18] sm:$0xff]
      %v1005 = vld [vmem:[%s3 + $0xd20] sm:$0xff]
      %v1006 = vld [vmem:[%s3 + $0xd28] sm:$0xff]
      %v1007 = vld [vmem:[%s3 + $0xd30] sm:$0xff]
      %v1008 = vld [vmem:[%s3 + $0xd38] sm:$0xff]
      %v1009 = vld [vmem:[%s3 + $0xd40] sm:$0xff]
      %v1010 = vld [vmem:[%s3 + $0xd48] sm:$0xff]
      %v1011 = vld [vmem:[%s3 + $0xd50] sm:$0xff]
      %v1012 = vld [vmem:[%s3 + $0xd58] sm:$0xff]
      %v1013 = vld [vmem:[%s3 + $0xd60] sm:$0xff]
      %v1014 = vld [vmem:[%s3 + $0xd68] sm:$0xff]
      %v1015 = vld [vmem:[%s3 + $0xd70] sm:$0xff]
      %v1016 = vld [vmem:[%s3 + $0xd78] sm:$0xff]
      %v1017 = vld [vmem:[%s3 + $0xd80] sm:$0xff]
      %v1018 = vld [vmem:[%s3 + $0xd88] sm:$0xff]
      %v1019 = vld [vmem:[%s3 + $0xd90] sm:$0xff]
      %v1020 = vld [vmem:[%s3 + $0xd98] sm:$0xff]
      %v1021 = vld [vmem:[%s3 + $0xda0] sm:$0xff]
      %v1022 = vld [vmem:[%s3 + $0xda8] sm:$0xff]
      %v1023 = vld [vmem:[%s3 + $0xdb0] sm:$0xff]
      %v1024 = vld [vmem:[%s3 + $0xdb8] sm:$0xff]
      %v1025 = vld [vmem:[%s3 + $0xdc0] sm:$0xff]
      %v1026 = vld [vmem:[%s3 + $0xdc8] sm:$0xff]
      %v1027 = vld [vmem:[%s3 + $0xdd0] sm:$0xff]
      %v1028 = vld [vmem:[%s3 + $0xdd8] sm:$0xff]
      %v1029 = vld [vmem:[%s3 + $0xde0] sm:$0xff]
      %v1030 = vld [vmem:[%s3 + $0xde8] sm:$0xff]
      %v1031 = vld [vmem:[%s3 + $0xdf0] sm:$0xff]
      %v1032 = vld [vmem:[%s3 + $0xdf8] sm:$0xff]
      %v1033 = vld [vmem:[%s3 + $0xe00] sm:$0xff]
      %v1034 = vld [vmem:[%s3 + $0xe08] sm:$0xff]
      %v1035 = vld [vmem:[%s3 + $0xe10] sm:$0xff]
      %v1036 = vld [vmem:[%s3 + $0xe18] sm:$0xff]
      %v1037 = vld [vmem:[%s3 + $0xe20] sm:$0xff]
      %v1038 = vld [vmem:[%s3 + $0xe28] sm:$0xff]
      %v1039 = vld [vmem:[%s3 + $0xe30] sm:$0xff]
      %v1040 = vld [vmem:[%s3 + $0xe38] sm:$0xff]
      %v1041 = vld [vmem:[%s3 + $0xe40] sm:$0xff]
      %v1042 = vld [vmem:[%s3 + $0xe48] sm:$0xff]
      %v1043 = vld [vmem:[%s3 + $0xe50] sm:$0xff]
      %v1044 = vld [vmem:[%s3 + $0xe58] sm:$0xff]
      %v1045 = vld [vmem:[%s3 + $0xe60] sm:$0xff]
      %v1046 = vld [vmem:[%s3 + $0xe68] sm:$0xff]
      %v1047 = vld [vmem:[%s3 + $0xe70] sm:$0xff]
      %v1048 = vld [vmem:[%s3 + $0xe78] sm:$0xff]
      %v1049 = vld [vmem:[%s3 + $0xe80] sm:$0xff]
      %v1050 = vld [vmem:[%s3 + $0xe88] sm:$0xff]
      %v1051 = vld [vmem:[%s3 + $0xe90] sm:$0xff]
      %v1052 = vld [vmem:[%s3 + $0xe98] sm:$0xff]
      %v1053 = vld [vmem:[%s3 + $0xea0] sm:$0xff]
      %v1054 = vld [vmem:[%s3 + $0xea8] sm:$0xff]
      %v1055 = vld [vmem:[%s3 + $0xeb0] sm:$0xff]
      %v1056 = vld [vmem:[%s3 + $0xeb8] sm:$0xff]
      %v1057 = vld [vmem:[%s3 + $0xec0] sm:$0xff]
      %v1058 = vld [vmem:[%s3 + $0xec8] sm:$0xff]
      %v1059 = vld [vmem:[%s3 + $0xed0] sm:$0xff]
      %v1060 = vld [vmem:[%s3 + $0xed8] sm:$0xff]
      %v1061 = vld [vmem:[%s3 + $0xee0] sm:$0xff]
      %v1062 = vld [vmem:[%s3 + $0xee8] sm:$0xff]
      %v1063 = vld [vmem:[%s3 + $0xef0] sm:$0xff]
      %v1064 = vld [vmem:[%s3 + $0xef8] sm:$0xff]
      %v1065 = vld [vmem:[%s3 + $0xf00] sm:$0xff]
      %v1066 = vld [vmem:[%s3 + $0xf08] sm:$0xff]
      %v1067 = vld [vmem:[%s3 + $0xf10] sm:$0xff]
      %v1068 = vld [vmem:[%s3 + $0xf18] sm:$0xff]
      %v1069 = vld [vmem:[%s3 + $0xf20] sm:$0xff]
      %v1070 = vld [vmem:[%s3 + $0xf28] sm:$0xff]
      %v1071 = vld [vmem:[%s3 + $0xf30] sm:$0xff]
      %v1072 = vld [vmem:[%s3 + $0xf38] sm:$0xff]
      %v1073 = vld [vmem:[%s3 + $0xf40] sm:$0xff]
      %v1074 = vld [vmem:[%s3 + $0xf48] sm:$0xff]
      %v1075 = vld [vmem:[%s3 + $0xf50] sm:$0xff]
      %v1076 = vld [vmem:[%s3 + $0xf58] sm:$0xff]
      %v1077 = vld [vmem:[%s3 + $0xf60] sm:$0xff]
      %v1078 = vld [vmem:[%s3 + $0xf68] sm:$0xff]
      %v1079 = vld [vmem:[%s3 + $0xf70] sm:$0xff]
      %v1080 = vld [vmem:[%s3 + $0xf78] sm:$0xff]
      %v1081 = vld [vmem:[%s3 + $0xf80] sm:$0xff]
      %v1082 = vld [vmem:[%s3 + $0xf88] sm:$0xff]
      %v1083 = vld [vmem:[%s3 + $0xf90] sm:$0xff]
      %v1084 = vld [vmem:[%s3 + $0xf98] sm:$0xff]
      %v1085 = vld [vmem:[%s3 + $0xfa0] sm:$0xff]
      %v1086 = vld [vmem:[%s3 + $0xfa8] sm:$0xff]
      %v1087 = vld [vmem:[%s3 + $0xfb0] sm:$0xff]
      %v1088 = vld [vmem:[%s3 + $0xfb8] sm:$0xff]
      %v1089 = vld [vmem:[%s3 + $0xfc0] sm:$0xff]
      %v1090 = vld [vmem:[%s3 + $0xfc8] sm:$0xff]
      %v1091 = vld [vmem:[%s3 + $0xfd0] sm:$0xff]
      %v1092 = vld [vmem:[%s3 + $0xfd8] sm:$0xff]
      %v1093 = vld [vmem:[%s3 + $0xfe0] sm:$0xff]
      %v1094 = vld [vmem:[%s3 + $0xfe8] sm:$0xff]
      %v1095 = vld [vmem:[%s3 + $0xff0] sm:$0xff]
      %v1096 = vld [vmem:[%s3 + $0xff8] sm:$0xff]
      %v1097 = vld [vmem:[%s4] sm:$0xff]
      %v1099 = vlaneseq
      %v1100 = vshrl.u32 %v1099, 7
      %v1101 = vsub.s32 0, %v1100
      %v1102 = vrot.slane %v1097, %v1101
      %v1103 = vlaneseq
      %v1104 = vshrl.u32 %v1103, 7
      %v1105 = vsub.s32 1, %v1104
      %v1106 = vrot.slane %v1097, %v1105
      %v1107 = vlaneseq
      %v1108 = vshrl.u32 %v1107, 7
      %v1109 = vsub.s32 2, %v1108
      %v1110 = vrot.slane %v1097, %v1109
      %v1111 = vlaneseq
      %v1112 = vshrl.u32 %v1111, 7
      %v1113 = vsub.s32 3, %v1112
      %v1114 = vrot.slane %v1097, %v1113
      %v1115 = vlaneseq
      %v1116 = vshrl.u32 %v1115, 7
      %v1117 = vsub.s32 4, %v1116
      %v1118 = vrot.slane %v1097, %v1117
      %v1119 = vlaneseq
      %v1120 = vshrl.u32 %v1119, 7
      %v1121 = vsub.s32 5, %v1120
      %v1122 = vrot.slane %v1097, %v1121
      %v1123 = vlaneseq
      %v1124 = vshrl.u32 %v1123, 7
      %v1125 = vsub.s32 6, %v1124
      %v1126 = vrot.slane %v1097, %v1125
      %v1127 = vlaneseq
      %v1128 = vshrl.u32 %v1127, 7
      %v1129 = vsub.s32 7, %v1128
      %v1130 = vrot.slane %v1097, %v1129
      %v1651 = vunpack.c.l.b16 %v585
      %v1652 = vunpack.c.h.b16 %v585
      %v1653 = vunpack.c.l.b16 %v586
      %v1654 = vunpack.c.h.b16 %v586
      %v1655 = vunpack.c.l.b16 %v587
      %v1656 = vunpack.c.h.b16 %v587
      %v1657 = vunpack.c.l.b16 %v588
      %v1658 = vunpack.c.h.b16 %v588
      %v1659 = vunpack.c.l.b16 %v589
      %v1660 = vunpack.c.h.b16 %v589
      %v1661 = vunpack.c.l.b16 %v590
      %v1662 = vunpack.c.h.b16 %v590
      %v1663 = vunpack.c.l.b16 %v591
      %v1664 = vunpack.c.h.b16 %v591
      %v1665 = vunpack.c.l.b16 %v592
      %v1666 = vunpack.c.h.b16 %v592
      %v1667 = vunpack.c.l.b16 %v593
      %v1668 = vunpack.c.h.b16 %v593
      %v1669 = vunpack.c.l.b16 %v594
      %v1670 = vunpack.c.h.b16 %v594
      %v1671 = vunpack.c.l.b16 %v595
      %v1672 = vunpack.c.h.b16 %v595
      %v1673 = vunpack.c.l.b16 %v596
      %v1674 = vunpack.c.h.b16 %v596
      %v1675 = vunpack.c.l.b16 %v597
      %v1676 = vunpack.c.h.b16 %v597
      %v1677 = vunpack.c.l.b16 %v598
      %v1678 = vunpack.c.h.b16 %v598
      %v1679 = vunpack.c.l.b16 %v599
      %v1680 = vunpack.c.h.b16 %v599
      %v1681 = vunpack.c.l.b16 %v600
      %v1682 = vunpack.c.h.b16 %v600
      %v1683 = vunpack.c.l.b16 %v601
      %v1684 = vunpack.c.h.b16 %v601
      %v1685 = vunpack.c.l.b16 %v602
      %v1686 = vunpack.c.h.b16 %v602
      %v1687 = vunpack.c.l.b16 %v603
      %v1688 = vunpack.c.h.b16 %v603
      %v1689 = vunpack.c.l.b16 %v604
      %v1690 = vunpack.c.h.b16 %v604
      %v1691 = vunpack.c.l.b16 %v605
      %v1692 = vunpack.c.h.b16 %v605
      %v1693 = vunpack.c.l.b16 %v606
      %v1694 = vunpack.c.h.b16 %v606
      %v1695 = vunpack.c.l.b16 %v607
      %v1696 = vunpack.c.h.b16 %v607
      %v1697 = vunpack.c.l.b16 %v608
      %v1698 = vunpack.c.h.b16 %v608
      %v1699 = vunpack.c.l.b16 %v609
      %v1700 = vunpack.c.h.b16 %v609
      %v1701 = vunpack.c.l.b16 %v610
      %v1702 = vunpack.c.h.b16 %v610
      %v1703 = vunpack.c.l.b16 %v611
      %v1704 = vunpack.c.h.b16 %v611
      %v1705 = vunpack.c.l.b16 %v612
      %v1706 = vunpack.c.h.b16 %v612
      %v1707 = vunpack.c.l.b16 %v613
      %v1708 = vunpack.c.h.b16 %v613
      %v1709 = vunpack.c.l.b16 %v614
      %v1710 = vunpack.c.h.b16 %v614
      %v1711 = vunpack.c.l.b16 %v615
      %v1712 = vunpack.c.h.b16 %v615
      %v1713 = vunpack.c.l.b16 %v616
      %v1714 = vunpack.c.h.b16 %v616
      %v1715 = vunpack.c.l.b16 %v617
      %v1716 = vunpack.c.h.b16 %v617
      %v1717 = vunpack.c.l.b16 %v618
      %v1718 = vunpack.c.h.b16 %v618
      %v1719 = vunpack.c.l.b16 %v619
      %v1720 = vunpack.c.h.b16 %v619
      %v1721 = vunpack.c.l.b16 %v620
      %v1722 = vunpack.c.h.b16 %v620
      %v1723 = vunpack.c.l.b16 %v621
      %v1724 = vunpack.c.h.b16 %v621
      %v1725 = vunpack.c.l.b16 %v622
      %v1726 = vunpack.c.h.b16 %v622
      %v1727 = vunpack.c.l.b16 %v623
      %v1728 = vunpack.c.h.b16 %v623
      %v1729 = vunpack.c.l.b16 %v624
      %v1730 = vunpack.c.h.b16 %v624
      %v1731 = vunpack.c.l.b16 %v625
      %v1732 = vunpack.c.h.b16 %v625
      %v1733 = vunpack.c.l.b16 %v626
      %v1734 = vunpack.c.h.b16 %v626
      %v1735 = vunpack.c.l.b16 %v627
      %v1736 = vunpack.c.h.b16 %v627
      %v1737 = vunpack.c.l.b16 %v628
      %v1738 = vunpack.c.h.b16 %v628
      %v1739 = vunpack.c.l.b16 %v629
      %v1740 = vunpack.c.h.b16 %v629
      %v1741 = vunpack.c.l.b16 %v630
      %v1742 = vunpack.c.h.b16 %v630
      %v1743 = vunpack.c.l.b16 %v631
      %v1744 = vunpack.c.h.b16 %v631
      %v1745 = vunpack.c.l.b16 %v632
      %v1746 = vunpack.c.h.b16 %v632
      %v1747 = vunpack.c.l.b16 %v633
      %v1748 = vunpack.c.h.b16 %v633
      %v1749 = vunpack.c.l.b16 %v634
      %v1750 = vunpack.c.h.b16 %v634
      %v1751 = vunpack.c.l.b16 %v635
      %v1752 = vunpack.c.h.b16 %v635
      %v1753 = vunpack.c.l.b16 %v636
      %v1754 = vunpack.c.h.b16 %v636
      %v1755 = vunpack.c.l.b16 %v637
      %v1756 = vunpack.c.h.b16 %v637
      %v1757 = vunpack.c.l.b16 %v638
      %v1758 = vunpack.c.h.b16 %v638
      %v1759 = vunpack.c.l.b16 %v639
      %v1760 = vunpack.c.h.b16 %v639
      %v1761 = vunpack.c.l.b16 %v640
      %v1762 = vunpack.c.h.b16 %v640
      %v1763 = vunpack.c.l.b16 %v641
      %v1764 = vunpack.c.h.b16 %v641
      %v1765 = vunpack.c.l.b16 %v642
      %v1766 = vunpack.c.h.b16 %v642
      %v1767 = vunpack.c.l.b16 %v643
      %v1768 = vunpack.c.h.b16 %v643
      %v1769 = vunpack.c.l.b16 %v644
      %v1770 = vunpack.c.h.b16 %v644
      %v1771 = vunpack.c.l.b16 %v645
      %v1772 = vunpack.c.h.b16 %v645
      %v1773 = vunpack.c.l.b16 %v646
      %v1774 = vunpack.c.h.b16 %v646
      %v1775 = vunpack.c.l.b16 %v647
      %v1776 = vunpack.c.h.b16 %v647
      %v1777 = vunpack.c.l.b16 %v648
      %v1778 = vunpack.c.h.b16 %v648
      %v1779 = vunpack.c.l.b16 %v649
      %v1780 = vunpack.c.h.b16 %v649
      %v1781 = vunpack.c.l.b16 %v650
      %v1782 = vunpack.c.h.b16 %v650
      %v1783 = vunpack.c.l.b16 %v651
      %v1784 = vunpack.c.h.b16 %v651
      %v1785 = vunpack.c.l.b16 %v652
      %v1786 = vunpack.c.h.b16 %v652
      %v1787 = vunpack.c.l.b16 %v653
      %v1788 = vunpack.c.h.b16 %v653
      %v1789 = vunpack.c.l.b16 %v654
      %v1790 = vunpack.c.h.b16 %v654
      %v1791 = vunpack.c.l.b16 %v655
      %v1792 = vunpack.c.h.b16 %v655
      %v1793 = vunpack.c.l.b16 %v656
      %v1794 = vunpack.c.h.b16 %v656
      %v1795 = vunpack.c.l.b16 %v657
      %v1796 = vunpack.c.h.b16 %v657
      %v1797 = vunpack.c.l.b16 %v658
      %v1798 = vunpack.c.h.b16 %v658
      %v1799 = vunpack.c.l.b16 %v659
      %v1800 = vunpack.c.h.b16 %v659
      %v1801 = vunpack.c.l.b16 %v660
      %v1802 = vunpack.c.h.b16 %v660
      %v1803 = vunpack.c.l.b16 %v661
      %v1804 = vunpack.c.h.b16 %v661
      %v1805 = vunpack.c.l.b16 %v662
      %v1806 = vunpack.c.h.b16 %v662
      %v1807 = vunpack.c.l.b16 %v663
      %v1808 = vunpack.c.h.b16 %v663
      %v1809 = vunpack.c.l.b16 %v664
      %v1810 = vunpack.c.h.b16 %v664
      %v1811 = vunpack.c.l.b16 %v665
      %v1812 = vunpack.c.h.b16 %v665
      %v1813 = vunpack.c.l.b16 %v666
      %v1814 = vunpack.c.h.b16 %v666
      %v1815 = vunpack.c.l.b16 %v667
      %v1816 = vunpack.c.h.b16 %v667
      %v1817 = vunpack.c.l.b16 %v668
      %v1818 = vunpack.c.h.b16 %v668
      %v1819 = vunpack.c.l.b16 %v669
      %v1820 = vunpack.c.h.b16 %v669
      %v1821 = vunpack.c.l.b16 %v670
      %v1822 = vunpack.c.h.b16 %v670
      %v1823 = vunpack.c.l.b16 %v671
      %v1824 = vunpack.c.h.b16 %v671
      %v1825 = vunpack.c.l.b16 %v672
      %v1826 = vunpack.c.h.b16 %v672
      %v1827 = vunpack.c.l.b16 %v673
      %v1828 = vunpack.c.h.b16 %v673
      %v1829 = vunpack.c.l.b16 %v674
      %v1830 = vunpack.c.h.b16 %v674
      %v1831 = vunpack.c.l.b16 %v675
      %v1832 = vunpack.c.h.b16 %v675
      %v1833 = vunpack.c.l.b16 %v676
      %v1834 = vunpack.c.h.b16 %v676
      %v1835 = vunpack.c.l.b16 %v677
      %v1836 = vunpack.c.h.b16 %v677
      %v1837 = vunpack.c.l.b16 %v678
      %v1838 = vunpack.c.h.b16 %v678
      %v1839 = vunpack.c.l.b16 %v679
      %v1840 = vunpack.c.h.b16 %v679
      %v1841 = vunpack.c.l.b16 %v680
      %v1842 = vunpack.c.h.b16 %v680
      %v1843 = vunpack.c.l.b16 %v681
      %v1844 = vunpack.c.h.b16 %v681
      %v1845 = vunpack.c.l.b16 %v682
      %v1846 = vunpack.c.h.b16 %v682
      %v1847 = vunpack.c.l.b16 %v683
      %v1848 = vunpack.c.h.b16 %v683
      %v1849 = vunpack.c.l.b16 %v684
      %v1850 = vunpack.c.h.b16 %v684
      %v1851 = vunpack.c.l.b16 %v685
      %v1852 = vunpack.c.h.b16 %v685
      %v1853 = vunpack.c.l.b16 %v686
      %v1854 = vunpack.c.h.b16 %v686
      %v1855 = vunpack.c.l.b16 %v687
      %v1856 = vunpack.c.h.b16 %v687
      %v1857 = vunpack.c.l.b16 %v688
      %v1858 = vunpack.c.h.b16 %v688
      %v1859 = vunpack.c.l.b16 %v689
      %v1860 = vunpack.c.h.b16 %v689
      %v1861 = vunpack.c.l.b16 %v690
      %v1862 = vunpack.c.h.b16 %v690
      %v1863 = vunpack.c.l.b16 %v691
      %v1864 = vunpack.c.h.b16 %v691
      %v1865 = vunpack.c.l.b16 %v692
      %v1866 = vunpack.c.h.b16 %v692
      %v1867 = vunpack.c.l.b16 %v693
      %v1868 = vunpack.c.h.b16 %v693
      %v1869 = vunpack.c.l.b16 %v694
      %v1870 = vunpack.c.h.b16 %v694
      %v1871 = vunpack.c.l.b16 %v695
      %v1872 = vunpack.c.h.b16 %v695
      %v1873 = vunpack.c.l.b16 %v696
      %v1874 = vunpack.c.h.b16 %v696
      %v1875 = vunpack.c.l.b16 %v697
      %v1876 = vunpack.c.h.b16 %v697
      %v1877 = vunpack.c.l.b16 %v698
      %v1878 = vunpack.c.h.b16 %v698
      %v1879 = vunpack.c.l.b16 %v699
      %v1880 = vunpack.c.h.b16 %v699
      %v1881 = vunpack.c.l.b16 %v700
      %v1882 = vunpack.c.h.b16 %v700
      %v1883 = vunpack.c.l.b16 %v701
      %v1884 = vunpack.c.h.b16 %v701
      %v1885 = vunpack.c.l.b16 %v702
      %v1886 = vunpack.c.h.b16 %v702
      %v1887 = vunpack.c.l.b16 %v703
      %v1888 = vunpack.c.h.b16 %v703
      %v1889 = vunpack.c.l.b16 %v704
      %v1890 = vunpack.c.h.b16 %v704
      %v1891 = vunpack.c.l.b16 %v705
      %v1892 = vunpack.c.h.b16 %v705
      %v1893 = vunpack.c.l.b16 %v706
      %v1894 = vunpack.c.h.b16 %v706
      %v1895 = vunpack.c.l.b16 %v707
      %v1896 = vunpack.c.h.b16 %v707
      %v1897 = vunpack.c.l.b16 %v708
      %v1898 = vunpack.c.h.b16 %v708
      %v1899 = vunpack.c.l.b16 %v709
      %v1900 = vunpack.c.h.b16 %v709
      %v1901 = vunpack.c.l.b16 %v710
      %v1902 = vunpack.c.h.b16 %v710
      %v1903 = vunpack.c.l.b16 %v711
      %v1904 = vunpack.c.h.b16 %v711
      %v1905 = vunpack.c.l.b16 %v712
      %v1906 = vunpack.c.h.b16 %v712
      %v1907 = vunpack.c.l.b16 %v713
      %v1908 = vunpack.c.h.b16 %v713
      %v1909 = vunpack.c.l.b16 %v714
      %v1910 = vunpack.c.h.b16 %v714
      %v1911 = vunpack.c.l.b16 %v715
      %v1912 = vunpack.c.h.b16 %v715
      %v1913 = vunpack.c.l.b16 %v716
      %v1914 = vunpack.c.h.b16 %v716
      %v1915 = vunpack.c.l.b16 %v717
      %v1916 = vunpack.c.h.b16 %v717
      %v1917 = vunpack.c.l.b16 %v718
      %v1918 = vunpack.c.h.b16 %v718
      %v1919 = vunpack.c.l.b16 %v719
      %v1920 = vunpack.c.h.b16 %v719
      %v1921 = vunpack.c.l.b16 %v720
      %v1922 = vunpack.c.h.b16 %v720
      %v1923 = vunpack.c.l.b16 %v721
      %v1924 = vunpack.c.h.b16 %v721
      %v1925 = vunpack.c.l.b16 %v722
      %v1926 = vunpack.c.h.b16 %v722
      %v1927 = vunpack.c.l.b16 %v723
      %v1928 = vunpack.c.h.b16 %v723
      %v1929 = vunpack.c.l.b16 %v724
      %v1930 = vunpack.c.h.b16 %v724
      %v1931 = vunpack.c.l.b16 %v725
      %v1932 = vunpack.c.h.b16 %v725
      %v1933 = vunpack.c.l.b16 %v726
      %v1934 = vunpack.c.h.b16 %v726
      %v1935 = vunpack.c.l.b16 %v727
      %v1936 = vunpack.c.h.b16 %v727
      %v1937 = vunpack.c.l.b16 %v728
      %v1938 = vunpack.c.h.b16 %v728
      %v1939 = vunpack.c.l.b16 %v729
      %v1940 = vunpack.c.h.b16 %v729
      %v1941 = vunpack.c.l.b16 %v730
      %v1942 = vunpack.c.h.b16 %v730
      %v1943 = vunpack.c.l.b16 %v731
      %v1944 = vunpack.c.h.b16 %v731
      %v1945 = vunpack.c.l.b16 %v732
      %v1946 = vunpack.c.h.b16 %v732
      %v1947 = vunpack.c.l.b16 %v733
      %v1948 = vunpack.c.h.b16 %v733
      %v1949 = vunpack.c.l.b16 %v734
      %v1950 = vunpack.c.h.b16 %v734
      %v1951 = vunpack.c.l.b16 %v735
      %v1952 = vunpack.c.h.b16 %v735
      %v1953 = vunpack.c.l.b16 %v736
      %v1954 = vunpack.c.h.b16 %v736
      %v1955 = vunpack.c.l.b16 %v737
      %v1956 = vunpack.c.h.b16 %v737
      %v1957 = vunpack.c.l.b16 %v738
      %v1958 = vunpack.c.h.b16 %v738
      %v1959 = vunpack.c.l.b16 %v739
      %v1960 = vunpack.c.h.b16 %v739
      %v1961 = vunpack.c.l.b16 %v740
      %v1962 = vunpack.c.h.b16 %v740
      %v1963 = vunpack.c.l.b16 %v741
      %v1964 = vunpack.c.h.b16 %v741
      %v1965 = vunpack.c.l.b16 %v742
      %v1966 = vunpack.c.h.b16 %v742
      %v1967 = vunpack.c.l.b16 %v743
      %v1968 = vunpack.c.h.b16 %v743
      %v1969 = vunpack.c.l.b16 %v744
      %v1970 = vunpack.c.h.b16 %v744
      %v1971 = vunpack.c.l.b16 %v745
      %v1972 = vunpack.c.h.b16 %v745
      %v1973 = vunpack.c.l.b16 %v746
      %v1974 = vunpack.c.h.b16 %v746
      %v1975 = vunpack.c.l.b16 %v747
      %v1976 = vunpack.c.h.b16 %v747
      %v1977 = vunpack.c.l.b16 %v748
      %v1978 = vunpack.c.h.b16 %v748
      %v1979 = vunpack.c.l.b16 %v749
      %v1980 = vunpack.c.h.b16 %v749
      %v1981 = vunpack.c.l.b16 %v750
      %v1982 = vunpack.c.h.b16 %v750
      %v1983 = vunpack.c.l.b16 %v751
      %v1984 = vunpack.c.h.b16 %v751
      %v1985 = vunpack.c.l.b16 %v752
      %v1986 = vunpack.c.h.b16 %v752
      %v1987 = vunpack.c.l.b16 %v753
      %v1988 = vunpack.c.h.b16 %v753
      %v1989 = vunpack.c.l.b16 %v754
      %v1990 = vunpack.c.h.b16 %v754
      %v1991 = vunpack.c.l.b16 %v755
      %v1992 = vunpack.c.h.b16 %v755
      %v1993 = vunpack.c.l.b16 %v756
      %v1994 = vunpack.c.h.b16 %v756
      %v1995 = vunpack.c.l.b16 %v757
      %v1996 = vunpack.c.h.b16 %v757
      %v1997 = vunpack.c.l.b16 %v758
      %v1998 = vunpack.c.h.b16 %v758
      %v1999 = vunpack.c.l.b16 %v759
      %v2000 = vunpack.c.h.b16 %v759
      %v2001 = vunpack.c.l.b16 %v760
      %v2002 = vunpack.c.h.b16 %v760
      %v2003 = vunpack.c.l.b16 %v761
      %v2004 = vunpack.c.h.b16 %v761
      %v2005 = vunpack.c.l.b16 %v762
      %v2006 = vunpack.c.h.b16 %v762
      %v2007 = vunpack.c.l.b16 %v763
      %v2008 = vunpack.c.h.b16 %v763
      %v2009 = vunpack.c.l.b16 %v764
      %v2010 = vunpack.c.h.b16 %v764
      %v2011 = vunpack.c.l.b16 %v765
      %v2012 = vunpack.c.h.b16 %v765
      %v2013 = vunpack.c.l.b16 %v766
      %v2014 = vunpack.c.h.b16 %v766
      %v2015 = vunpack.c.l.b16 %v767
      %v2016 = vunpack.c.h.b16 %v767
      %v2017 = vunpack.c.l.b16 %v768
      %v2018 = vunpack.c.h.b16 %v768
      %v2019 = vunpack.c.l.b16 %v769
      %v2020 = vunpack.c.h.b16 %v769
      %v2021 = vunpack.c.l.b16 %v770
      %v2022 = vunpack.c.h.b16 %v770
      %v2023 = vunpack.c.l.b16 %v771
      %v2024 = vunpack.c.h.b16 %v771
      %v2025 = vunpack.c.l.b16 %v772
      %v2026 = vunpack.c.h.b16 %v772
      %v2027 = vunpack.c.l.b16 %v773
      %v2028 = vunpack.c.h.b16 %v773
      %v2029 = vunpack.c.l.b16 %v774
      %v2030 = vunpack.c.h.b16 %v774
      %v2031 = vunpack.c.l.b16 %v775
      %v2032 = vunpack.c.h.b16 %v775
      %v2033 = vunpack.c.l.b16 %v776
      %v2034 = vunpack.c.h.b16 %v776
      %v2035 = vunpack.c.l.b16 %v777
      %v2036 = vunpack.c.h.b16 %v777
      %v2037 = vunpack.c.l.b16 %v778
      %v2038 = vunpack.c.h.b16 %v778
      %v2039 = vunpack.c.l.b16 %v779
      %v2040 = vunpack.c.h.b16 %v779
      %v2041 = vunpack.c.l.b16 %v780
      %v2042 = vunpack.c.h.b16 %v780
      %v2043 = vunpack.c.l.b16 %v781
      %v2044 = vunpack.c.h.b16 %v781
      %v2045 = vunpack.c.l.b16 %v782
      %v2046 = vunpack.c.h.b16 %v782
      %v2047 = vunpack.c.l.b16 %v783
      %v2048 = vunpack.c.h.b16 %v783
      %v2049 = vunpack.c.l.b16 %v784
      %v2050 = vunpack.c.h.b16 %v784
      %v2051 = vunpack.c.l.b16 %v785
      %v2052 = vunpack.c.h.b16 %v785
      %v2053 = vunpack.c.l.b16 %v786
      %v2054 = vunpack.c.h.b16 %v786
      %v2055 = vunpack.c.l.b16 %v787
      %v2056 = vunpack.c.h.b16 %v787
      %v2057 = vunpack.c.l.b16 %v788
      %v2058 = vunpack.c.h.b16 %v788
      %v2059 = vunpack.c.l.b16 %v789
      %v2060 = vunpack.c.h.b16 %v789
      %v2061 = vunpack.c.l.b16 %v790
      %v2062 = vunpack.c.h.b16 %v790
      %v2063 = vunpack.c.l.b16 %v791
      %v2064 = vunpack.c.h.b16 %v791
      %v2065 = vunpack.c.l.b16 %v792
      %v2066 = vunpack.c.h.b16 %v792
      %v2067 = vunpack.c.l.b16 %v793
      %v2068 = vunpack.c.h.b16 %v793
      %v2069 = vunpack.c.l.b16 %v794
      %v2070 = vunpack.c.h.b16 %v794
      %v2071 = vunpack.c.l.b16 %v795
      %v2072 = vunpack.c.h.b16 %v795
      %v2073 = vunpack.c.l.b16 %v796
      %v2074 = vunpack.c.h.b16 %v796
      %v2075 = vunpack.c.l.b16 %v797
      %v2076 = vunpack.c.h.b16 %v797
      %v2077 = vunpack.c.l.b16 %v798
      %v2078 = vunpack.c.h.b16 %v798
      %v2079 = vunpack.c.l.b16 %v799
      %v2080 = vunpack.c.h.b16 %v799
      %v2081 = vunpack.c.l.b16 %v800
      %v2082 = vunpack.c.h.b16 %v800
      %v2083 = vunpack.c.l.b16 %v801
      %v2084 = vunpack.c.h.b16 %v801
      %v2085 = vunpack.c.l.b16 %v802
      %v2086 = vunpack.c.h.b16 %v802
      %v2087 = vunpack.c.l.b16 %v803
      %v2088 = vunpack.c.h.b16 %v803
      %v2089 = vunpack.c.l.b16 %v804
      %v2090 = vunpack.c.h.b16 %v804
      %v2091 = vunpack.c.l.b16 %v805
      %v2092 = vunpack.c.h.b16 %v805
      %v2093 = vunpack.c.l.b16 %v806
      %v2094 = vunpack.c.h.b16 %v806
      %v2095 = vunpack.c.l.b16 %v807
      %v2096 = vunpack.c.h.b16 %v807
      %v2097 = vunpack.c.l.b16 %v808
      %v2098 = vunpack.c.h.b16 %v808
      %v2099 = vunpack.c.l.b16 %v809
      %v2100 = vunpack.c.h.b16 %v809
      %v2101 = vunpack.c.l.b16 %v810
      %v2102 = vunpack.c.h.b16 %v810
      %v2103 = vunpack.c.l.b16 %v811
      %v2104 = vunpack.c.h.b16 %v811
      %v2105 = vunpack.c.l.b16 %v812
      %v2106 = vunpack.c.h.b16 %v812
      %v2107 = vunpack.c.l.b16 %v813
      %v2108 = vunpack.c.h.b16 %v813
      %v2109 = vunpack.c.l.b16 %v814
      %v2110 = vunpack.c.h.b16 %v814
      %v2111 = vunpack.c.l.b16 %v815
      %v2112 = vunpack.c.h.b16 %v815
      %v2113 = vunpack.c.l.b16 %v816
      %v2114 = vunpack.c.h.b16 %v816
      %v2115 = vunpack.c.l.b16 %v817
      %v2116 = vunpack.c.h.b16 %v817
      %v2117 = vunpack.c.l.b16 %v818
      %v2118 = vunpack.c.h.b16 %v818
      %v2119 = vunpack.c.l.b16 %v819
      %v2120 = vunpack.c.h.b16 %v819
      %v2121 = vunpack.c.l.b16 %v820
      %v2122 = vunpack.c.h.b16 %v820
      %v2123 = vunpack.c.l.b16 %v821
      %v2124 = vunpack.c.h.b16 %v821
      %v2125 = vunpack.c.l.b16 %v822
      %v2126 = vunpack.c.h.b16 %v822
      %v2127 = vunpack.c.l.b16 %v823
      %v2128 = vunpack.c.h.b16 %v823
      %v2129 = vunpack.c.l.b16 %v824
      %v2130 = vunpack.c.h.b16 %v824
      %v2131 = vunpack.c.l.b16 %v825
      %v2132 = vunpack.c.h.b16 %v825
      %v2133 = vunpack.c.l.b16 %v826
      %v2134 = vunpack.c.h.b16 %v826
      %v2135 = vunpack.c.l.b16 %v827
      %v2136 = vunpack.c.h.b16 %v827
      %v2137 = vunpack.c.l.b16 %v828
      %v2138 = vunpack.c.h.b16 %v828
      %v2139 = vunpack.c.l.b16 %v829
      %v2140 = vunpack.c.h.b16 %v829
      %v2141 = vunpack.c.l.b16 %v830
      %v2142 = vunpack.c.h.b16 %v830
      %v2143 = vunpack.c.l.b16 %v831
      %v2144 = vunpack.c.h.b16 %v831
      %v2145 = vunpack.c.l.b16 %v832
      %v2146 = vunpack.c.h.b16 %v832
      %v2147 = vunpack.c.l.b16 %v833
      %v2148 = vunpack.c.h.b16 %v833
      %v2149 = vunpack.c.l.b16 %v834
      %v2150 = vunpack.c.h.b16 %v834
      %v2151 = vunpack.c.l.b16 %v835
      %v2152 = vunpack.c.h.b16 %v835
      %v2153 = vunpack.c.l.b16 %v836
      %v2154 = vunpack.c.h.b16 %v836
      %v2155 = vunpack.c.l.b16 %v837
      %v2156 = vunpack.c.h.b16 %v837
      %v2157 = vunpack.c.l.b16 %v838
      %v2158 = vunpack.c.h.b16 %v838
      %v2159 = vunpack.c.l.b16 %v839
      %v2160 = vunpack.c.h.b16 %v839
      %v2161 = vunpack.c.l.b16 %v840
      %v2162 = vunpack.c.h.b16 %v840
      %v2163 = vunpack.c.l.b16 %v841
      %v2164 = vunpack.c.h.b16 %v841
      %v2165 = vunpack.c.l.b16 %v842
      %v2166 = vunpack.c.h.b16 %v842
      %v2167 = vunpack.c.l.b16 %v843
      %v2168 = vunpack.c.h.b16 %v843
      %v2169 = vunpack.c.l.b16 %v844
      %v2170 = vunpack.c.h.b16 %v844
      %v2171 = vunpack.c.l.b16 %v845
      %v2172 = vunpack.c.h.b16 %v845
      %v2173 = vunpack.c.l.b16 %v846
      %v2174 = vunpack.c.h.b16 %v846
      %v2175 = vunpack.c.l.b16 %v847
      %v2176 = vunpack.c.h.b16 %v847
      %v2177 = vunpack.c.l.b16 %v848
      %v2178 = vunpack.c.h.b16 %v848
      %v2179 = vunpack.c.l.b16 %v849
      %v2180 = vunpack.c.h.b16 %v849
      %v2181 = vunpack.c.l.b16 %v850
      %v2182 = vunpack.c.h.b16 %v850
      %v2183 = vunpack.c.l.b16 %v851
      %v2184 = vunpack.c.h.b16 %v851
      %v2185 = vunpack.c.l.b16 %v852
      %v2186 = vunpack.c.h.b16 %v852
      %v2187 = vunpack.c.l.b16 %v853
      %v2188 = vunpack.c.h.b16 %v853
      %v2189 = vunpack.c.l.b16 %v854
      %v2190 = vunpack.c.h.b16 %v854
      %v2191 = vunpack.c.l.b16 %v855
      %v2192 = vunpack.c.h.b16 %v855
      %v2193 = vunpack.c.l.b16 %v856
      %v2194 = vunpack.c.h.b16 %v856
      %v2195 = vunpack.c.l.b16 %v857
      %v2196 = vunpack.c.h.b16 %v857
      %v2197 = vunpack.c.l.b16 %v858
      %v2198 = vunpack.c.h.b16 %v858
      %v2199 = vunpack.c.l.b16 %v859
      %v2200 = vunpack.c.h.b16 %v859
      %v2201 = vunpack.c.l.b16 %v860
      %v2202 = vunpack.c.h.b16 %v860
      %v2203 = vunpack.c.l.b16 %v861
      %v2204 = vunpack.c.h.b16 %v861
      %v2205 = vunpack.c.l.b16 %v862
      %v2206 = vunpack.c.h.b16 %v862
      %v2207 = vunpack.c.l.b16 %v863
      %v2208 = vunpack.c.h.b16 %v863
      %v2209 = vunpack.c.l.b16 %v864
      %v2210 = vunpack.c.h.b16 %v864
      %v2211 = vunpack.c.l.b16 %v865
      %v2212 = vunpack.c.h.b16 %v865
      %v2213 = vunpack.c.l.b16 %v866
      %v2214 = vunpack.c.h.b16 %v866
      %v2215 = vunpack.c.l.b16 %v867
      %v2216 = vunpack.c.h.b16 %v867
      %v2217 = vunpack.c.l.b16 %v868
      %v2218 = vunpack.c.h.b16 %v868
      %v2219 = vunpack.c.l.b16 %v869
      %v2220 = vunpack.c.h.b16 %v869
      %v2221 = vunpack.c.l.b16 %v870
      %v2222 = vunpack.c.h.b16 %v870
      %v2223 = vunpack.c.l.b16 %v871
      %v2224 = vunpack.c.h.b16 %v871
      %v2225 = vunpack.c.l.b16 %v872
      %v2226 = vunpack.c.h.b16 %v872
      %v2227 = vunpack.c.l.b16 %v873
      %v2228 = vunpack.c.h.b16 %v873
      %v2229 = vunpack.c.l.b16 %v874
      %v2230 = vunpack.c.h.b16 %v874
      %v2231 = vunpack.c.l.b16 %v875
      %v2232 = vunpack.c.h.b16 %v875
      %v2233 = vunpack.c.l.b16 %v876
      %v2234 = vunpack.c.h.b16 %v876
      %v2235 = vunpack.c.l.b16 %v877
      %v2236 = vunpack.c.h.b16 %v877
      %v2237 = vunpack.c.l.b16 %v878
      %v2238 = vunpack.c.h.b16 %v878
      %v2239 = vunpack.c.l.b16 %v879
      %v2240 = vunpack.c.h.b16 %v879
      %v2241 = vunpack.c.l.b16 %v880
      %v2242 = vunpack.c.h.b16 %v880
      %v2243 = vunpack.c.l.b16 %v881
      %v2244 = vunpack.c.h.b16 %v881
      %v2245 = vunpack.c.l.b16 %v882
      %v2246 = vunpack.c.h.b16 %v882
      %v2247 = vunpack.c.l.b16 %v883
      %v2248 = vunpack.c.h.b16 %v883
      %v2249 = vunpack.c.l.b16 %v884
      %v2250 = vunpack.c.h.b16 %v884
      %v2251 = vunpack.c.l.b16 %v885
      %v2252 = vunpack.c.h.b16 %v885
      %v2253 = vunpack.c.l.b16 %v886
      %v2254 = vunpack.c.h.b16 %v886
      %v2255 = vunpack.c.l.b16 %v887
      %v2256 = vunpack.c.h.b16 %v887
      %v2257 = vunpack.c.l.b16 %v888
      %v2258 = vunpack.c.h.b16 %v888
      %v2259 = vunpack.c.l.b16 %v889
      %v2260 = vunpack.c.h.b16 %v889
      %v2261 = vunpack.c.l.b16 %v890
      %v2262 = vunpack.c.h.b16 %v890
      %v2263 = vunpack.c.l.b16 %v891
      %v2264 = vunpack.c.h.b16 %v891
      %v2265 = vunpack.c.l.b16 %v892
      %v2266 = vunpack.c.h.b16 %v892
      %v2267 = vunpack.c.l.b16 %v893
      %v2268 = vunpack.c.h.b16 %v893
      %v2269 = vunpack.c.l.b16 %v894
      %v2270 = vunpack.c.h.b16 %v894
      %v2271 = vunpack.c.l.b16 %v895
      %v2272 = vunpack.c.h.b16 %v895
      %v2273 = vunpack.c.l.b16 %v896
      %v2274 = vunpack.c.h.b16 %v896
      %v2275 = vunpack.c.l.b16 %v897
      %v2276 = vunpack.c.h.b16 %v897
      %v2277 = vunpack.c.l.b16 %v898
      %v2278 = vunpack.c.h.b16 %v898
      %v2279 = vunpack.c.l.b16 %v899
      %v2280 = vunpack.c.h.b16 %v899
      %v2281 = vunpack.c.l.b16 %v900
      %v2282 = vunpack.c.h.b16 %v900
      %v2283 = vunpack.c.l.b16 %v901
      %v2284 = vunpack.c.h.b16 %v901
      %v2285 = vunpack.c.l.b16 %v902
      %v2286 = vunpack.c.h.b16 %v902
      %v2287 = vunpack.c.l.b16 %v903
      %v2288 = vunpack.c.h.b16 %v903
      %v2289 = vunpack.c.l.b16 %v904
      %v2290 = vunpack.c.h.b16 %v904
      %v2291 = vunpack.c.l.b16 %v905
      %v2292 = vunpack.c.h.b16 %v905
      %v2293 = vunpack.c.l.b16 %v906
      %v2294 = vunpack.c.h.b16 %v906
      %v2295 = vunpack.c.l.b16 %v907
      %v2296 = vunpack.c.h.b16 %v907
      %v2297 = vunpack.c.l.b16 %v908
      %v2298 = vunpack.c.h.b16 %v908
      %v2299 = vunpack.c.l.b16 %v909
      %v2300 = vunpack.c.h.b16 %v909
      %v2301 = vunpack.c.l.b16 %v910
      %v2302 = vunpack.c.h.b16 %v910
      %v2303 = vunpack.c.l.b16 %v911
      %v2304 = vunpack.c.h.b16 %v911
      %v2305 = vunpack.c.l.b16 %v912
      %v2306 = vunpack.c.h.b16 %v912
      %v2307 = vunpack.c.l.b16 %v913
      %v2308 = vunpack.c.h.b16 %v913
      %v2309 = vunpack.c.l.b16 %v914
      %v2310 = vunpack.c.h.b16 %v914
      %v2311 = vunpack.c.l.b16 %v915
      %v2312 = vunpack.c.h.b16 %v915
      %v2313 = vunpack.c.l.b16 %v916
      %v2314 = vunpack.c.h.b16 %v916
      %v2315 = vunpack.c.l.b16 %v917
      %v2316 = vunpack.c.h.b16 %v917
      %v2317 = vunpack.c.l.b16 %v918
      %v2318 = vunpack.c.h.b16 %v918
      %v2319 = vunpack.c.l.b16 %v919
      %v2320 = vunpack.c.h.b16 %v919
      %v2321 = vunpack.c.l.b16 %v920
      %v2322 = vunpack.c.h.b16 %v920
      %v2323 = vunpack.c.l.b16 %v921
      %v2324 = vunpack.c.h.b16 %v921
      %v2325 = vunpack.c.l.b16 %v922
      %v2326 = vunpack.c.h.b16 %v922
      %v2327 = vunpack.c.l.b16 %v923
      %v2328 = vunpack.c.h.b16 %v923
      %v2329 = vunpack.c.l.b16 %v924
      %v2330 = vunpack.c.h.b16 %v924
      %v2331 = vunpack.c.l.b16 %v925
      %v2332 = vunpack.c.h.b16 %v925
      %v2333 = vunpack.c.l.b16 %v926
      %v2334 = vunpack.c.h.b16 %v926
      %v2335 = vunpack.c.l.b16 %v927
      %v2336 = vunpack.c.h.b16 %v927
      %v2337 = vunpack.c.l.b16 %v928
      %v2338 = vunpack.c.h.b16 %v928
      %v2339 = vunpack.c.l.b16 %v929
      %v2340 = vunpack.c.h.b16 %v929
      %v2341 = vunpack.c.l.b16 %v930
      %v2342 = vunpack.c.h.b16 %v930
      %v2343 = vunpack.c.l.b16 %v931
      %v2344 = vunpack.c.h.b16 %v931
      %v2345 = vunpack.c.l.b16 %v932
      %v2346 = vunpack.c.h.b16 %v932
      %v2347 = vunpack.c.l.b16 %v933
      %v2348 = vunpack.c.h.b16 %v933
      %v2349 = vunpack.c.l.b16 %v934
      %v2350 = vunpack.c.h.b16 %v934
      %v2351 = vunpack.c.l.b16 %v935
      %v2352 = vunpack.c.h.b16 %v935
      %v2353 = vunpack.c.l.b16 %v936
      %v2354 = vunpack.c.h.b16 %v936
      %v2355 = vunpack.c.l.b16 %v937
      %v2356 = vunpack.c.h.b16 %v937
      %v2357 = vunpack.c.l.b16 %v938
      %v2358 = vunpack.c.h.b16 %v938
      %v2359 = vunpack.c.l.b16 %v939
      %v2360 = vunpack.c.h.b16 %v939
      %v2361 = vunpack.c.l.b16 %v940
      %v2362 = vunpack.c.h.b16 %v940
      %v2363 = vunpack.c.l.b16 %v941
      %v2364 = vunpack.c.h.b16 %v941
      %v2365 = vunpack.c.l.b16 %v942
      %v2366 = vunpack.c.h.b16 %v942
      %v2367 = vunpack.c.l.b16 %v943
      %v2368 = vunpack.c.h.b16 %v943
      %v2369 = vunpack.c.l.b16 %v944
      %v2370 = vunpack.c.h.b16 %v944
      %v2371 = vunpack.c.l.b16 %v945
      %v2372 = vunpack.c.h.b16 %v945
      %v2373 = vunpack.c.l.b16 %v946
      %v2374 = vunpack.c.h.b16 %v946
      %v2375 = vunpack.c.l.b16 %v947
      %v2376 = vunpack.c.h.b16 %v947
      %v2377 = vunpack.c.l.b16 %v948
      %v2378 = vunpack.c.h.b16 %v948
      %v2379 = vunpack.c.l.b16 %v949
      %v2380 = vunpack.c.h.b16 %v949
      %v2381 = vunpack.c.l.b16 %v950
      %v2382 = vunpack.c.h.b16 %v950
      %v2383 = vunpack.c.l.b16 %v951
      %v2384 = vunpack.c.h.b16 %v951
      %v2385 = vunpack.c.l.b16 %v952
      %v2386 = vunpack.c.h.b16 %v952
      %v2387 = vunpack.c.l.b16 %v953
      %v2388 = vunpack.c.h.b16 %v953
      %v2389 = vunpack.c.l.b16 %v954
      %v2390 = vunpack.c.h.b16 %v954
      %v2391 = vunpack.c.l.b16 %v955
      %v2392 = vunpack.c.h.b16 %v955
      %v2393 = vunpack.c.l.b16 %v956
      %v2394 = vunpack.c.h.b16 %v956
      %v2395 = vunpack.c.l.b16 %v957
      %v2396 = vunpack.c.h.b16 %v957
      %v2397 = vunpack.c.l.b16 %v958
      %v2398 = vunpack.c.h.b16 %v958
      %v2399 = vunpack.c.l.b16 %v959
      %v2400 = vunpack.c.h.b16 %v959
      %v2401 = vunpack.c.l.b16 %v960
      %v2402 = vunpack.c.h.b16 %v960
      %v2403 = vunpack.c.l.b16 %v961
      %v2404 = vunpack.c.h.b16 %v961
      %v2405 = vunpack.c.l.b16 %v962
      %v2406 = vunpack.c.h.b16 %v962
      %v2407 = vunpack.c.l.b16 %v963
      %v2408 = vunpack.c.h.b16 %v963
      %v2409 = vunpack.c.l.b16 %v964
      %v2410 = vunpack.c.h.b16 %v964
      %v2411 = vunpack.c.l.b16 %v965
      %v2412 = vunpack.c.h.b16 %v965
      %v2413 = vunpack.c.l.b16 %v966
      %v2414 = vunpack.c.h.b16 %v966
      %v2415 = vunpack.c.l.b16 %v967
      %v2416 = vunpack.c.h.b16 %v967
      %v2417 = vunpack.c.l.b16 %v968
      %v2418 = vunpack.c.h.b16 %v968
      %v2419 = vunpack.c.l.b16 %v969
      %v2420 = vunpack.c.h.b16 %v969
      %v2421 = vunpack.c.l.b16 %v970
      %v2422 = vunpack.c.h.b16 %v970
      %v2423 = vunpack.c.l.b16 %v971
      %v2424 = vunpack.c.h.b16 %v971
      %v2425 = vunpack.c.l.b16 %v972
      %v2426 = vunpack.c.h.b16 %v972
      %v2427 = vunpack.c.l.b16 %v973
      %v2428 = vunpack.c.h.b16 %v973
      %v2429 = vunpack.c.l.b16 %v974
      %v2430 = vunpack.c.h.b16 %v974
      %v2431 = vunpack.c.l.b16 %v975
      %v2432 = vunpack.c.h.b16 %v975
      %v2433 = vunpack.c.l.b16 %v976
      %v2434 = vunpack.c.h.b16 %v976
      %v2435 = vunpack.c.l.b16 %v977
      %v2436 = vunpack.c.h.b16 %v977
      %v2437 = vunpack.c.l.b16 %v978
      %v2438 = vunpack.c.h.b16 %v978
      %v2439 = vunpack.c.l.b16 %v979
      %v2440 = vunpack.c.h.b16 %v979
      %v2441 = vunpack.c.l.b16 %v980
      %v2442 = vunpack.c.h.b16 %v980
      %v2443 = vunpack.c.l.b16 %v981
      %v2444 = vunpack.c.h.b16 %v981
      %v2445 = vunpack.c.l.b16 %v982
      %v2446 = vunpack.c.h.b16 %v982
      %v2447 = vunpack.c.l.b16 %v983
      %v2448 = vunpack.c.h.b16 %v983
      %v2449 = vunpack.c.l.b16 %v984
      %v2450 = vunpack.c.h.b16 %v984
      %v2451 = vunpack.c.l.b16 %v985
      %v2452 = vunpack.c.h.b16 %v985
      %v2453 = vunpack.c.l.b16 %v986
      %v2454 = vunpack.c.h.b16 %v986
      %v2455 = vunpack.c.l.b16 %v987
      %v2456 = vunpack.c.h.b16 %v987
      %v2457 = vunpack.c.l.b16 %v988
      %v2458 = vunpack.c.h.b16 %v988
      %v2459 = vunpack.c.l.b16 %v989
      %v2460 = vunpack.c.h.b16 %v989
      %v2461 = vunpack.c.l.b16 %v990
      %v2462 = vunpack.c.h.b16 %v990
      %v2463 = vunpack.c.l.b16 %v991
      %v2464 = vunpack.c.h.b16 %v991
      %v2465 = vunpack.c.l.b16 %v992
      %v2466 = vunpack.c.h.b16 %v992
      %v2467 = vunpack.c.l.b16 %v993
      %v2468 = vunpack.c.h.b16 %v993
      %v2469 = vunpack.c.l.b16 %v994
      %v2470 = vunpack.c.h.b16 %v994
      %v2471 = vunpack.c.l.b16 %v995
      %v2472 = vunpack.c.h.b16 %v995
      %v2473 = vunpack.c.l.b16 %v996
      %v2474 = vunpack.c.h.b16 %v996
      %v2475 = vunpack.c.l.b16 %v997
      %v2476 = vunpack.c.h.b16 %v997
      %v2477 = vunpack.c.l.b16 %v998
      %v2478 = vunpack.c.h.b16 %v998
      %v2479 = vunpack.c.l.b16 %v999
      %v2480 = vunpack.c.h.b16 %v999
      %v2481 = vunpack.c.l.b16 %v1000
      %v2482 = vunpack.c.h.b16 %v1000
      %v2483 = vunpack.c.l.b16 %v1001
      %v2484 = vunpack.c.h.b16 %v1001
      %v2485 = vunpack.c.l.b16 %v1002
      %v2486 = vunpack.c.h.b16 %v1002
      %v2487 = vunpack.c.l.b16 %v1003
      %v2488 = vunpack.c.h.b16 %v1003
      %v2489 = vunpack.c.l.b16 %v1004
      %v2490 = vunpack.c.h.b16 %v1004
      %v2491 = vunpack.c.l.b16 %v1005
      %v2492 = vunpack.c.h.b16 %v1005
      %v2493 = vunpack.c.l.b16 %v1006
      %v2494 = vunpack.c.h.b16 %v1006
      %v2495 = vunpack.c.l.b16 %v1007
      %v2496 = vunpack.c.h.b16 %v1007
      %v2497 = vunpack.c.l.b16 %v1008
      %v2498 = vunpack.c.h.b16 %v1008
      %v2499 = vunpack.c.l.b16 %v1009
      %v2500 = vunpack.c.h.b16 %v1009
      %v2501 = vunpack.c.l.b16 %v1010
      %v2502 = vunpack.c.h.b16 %v1010
      %v2503 = vunpack.c.l.b16 %v1011
      %v2504 = vunpack.c.h.b16 %v1011
      %v2505 = vunpack.c.l.b16 %v1012
      %v2506 = vunpack.c.h.b16 %v1012
      %v2507 = vunpack.c.l.b16 %v1013
      %v2508 = vunpack.c.h.b16 %v1013
      %v2509 = vunpack.c.l.b16 %v1014
      %v2510 = vunpack.c.h.b16 %v1014
      %v2511 = vunpack.c.l.b16 %v1015
      %v2512 = vunpack.c.h.b16 %v1015
      %v2513 = vunpack.c.l.b16 %v1016
      %v2514 = vunpack.c.h.b16 %v1016
      %v2515 = vunpack.c.l.b16 %v1017
      %v2516 = vunpack.c.h.b16 %v1017
      %v2517 = vunpack.c.l.b16 %v1018
      %v2518 = vunpack.c.h.b16 %v1018
      %v2519 = vunpack.c.l.b16 %v1019
      %v2520 = vunpack.c.h.b16 %v1019
      %v2521 = vunpack.c.l.b16 %v1020
      %v2522 = vunpack.c.h.b16 %v1020
      %v2523 = vunpack.c.l.b16 %v1021
      %v2524 = vunpack.c.h.b16 %v1021
      %v2525 = vunpack.c.l.b16 %v1022
      %v2526 = vunpack.c.h.b16 %v1022
      %v2527 = vunpack.c.l.b16 %v1023
      %v2528 = vunpack.c.h.b16 %v1023
      %v2529 = vunpack.c.l.b16 %v1024
      %v2530 = vunpack.c.h.b16 %v1024
      %v2531 = vunpack.c.l.b16 %v1025
      %v2532 = vunpack.c.h.b16 %v1025
      %v2533 = vunpack.c.l.b16 %v1026
      %v2534 = vunpack.c.h.b16 %v1026
      %v2535 = vunpack.c.l.b16 %v1027
      %v2536 = vunpack.c.h.b16 %v1027
      %v2537 = vunpack.c.l.b16 %v1028
      %v2538 = vunpack.c.h.b16 %v1028
      %v2539 = vunpack.c.l.b16 %v1029
      %v2540 = vunpack.c.h.b16 %v1029
      %v2541 = vunpack.c.l.b16 %v1030
      %v2542 = vunpack.c.h.b16 %v1030
      %v2543 = vunpack.c.l.b16 %v1031
      %v2544 = vunpack.c.h.b16 %v1031
      %v2545 = vunpack.c.l.b16 %v1032
      %v2546 = vunpack.c.h.b16 %v1032
      %v2547 = vunpack.c.l.b16 %v1033
      %v2548 = vunpack.c.h.b16 %v1033
      %v2549 = vunpack.c.l.b16 %v1034
      %v2550 = vunpack.c.h.b16 %v1034
      %v2551 = vunpack.c.l.b16 %v1035
      %v2552 = vunpack.c.h.b16 %v1035
      %v2553 = vunpack.c.l.b16 %v1036
      %v2554 = vunpack.c.h.b16 %v1036
      %v2555 = vunpack.c.l.b16 %v1037
      %v2556 = vunpack.c.h.b16 %v1037
      %v2557 = vunpack.c.l.b16 %v1038
      %v2558 = vunpack.c.h.b16 %v1038
      %v2559 = vunpack.c.l.b16 %v1039
      %v2560 = vunpack.c.h.b16 %v1039
      %v2561 = vunpack.c.l.b16 %v1040
      %v2562 = vunpack.c.h.b16 %v1040
      %v2563 = vunpack.c.l.b16 %v1041
      %v2564 = vunpack.c.h.b16 %v1041
      %v2565 = vunpack.c.l.b16 %v1042
      %v2566 = vunpack.c.h.b16 %v1042
      %v2567 = vunpack.c.l.b16 %v1043
      %v2568 = vunpack.c.h.b16 %v1043
      %v2569 = vunpack.c.l.b16 %v1044
      %v2570 = vunpack.c.h.b16 %v1044
      %v2571 = vunpack.c.l.b16 %v1045
      %v2572 = vunpack.c.h.b16 %v1045
      %v2573 = vunpack.c.l.b16 %v1046
      %v2574 = vunpack.c.h.b16 %v1046
      %v2575 = vunpack.c.l.b16 %v1047
      %v2576 = vunpack.c.h.b16 %v1047
      %v2577 = vunpack.c.l.b16 %v1048
      %v2578 = vunpack.c.h.b16 %v1048
      %v2579 = vunpack.c.l.b16 %v1049
      %v2580 = vunpack.c.h.b16 %v1049
      %v2581 = vunpack.c.l.b16 %v1050
      %v2582 = vunpack.c.h.b16 %v1050
      %v2583 = vunpack.c.l.b16 %v1051
      %v2584 = vunpack.c.h.b16 %v1051
      %v2585 = vunpack.c.l.b16 %v1052
      %v2586 = vunpack.c.h.b16 %v1052
      %v2587 = vunpack.c.l.b16 %v1053
      %v2588 = vunpack.c.h.b16 %v1053
      %v2589 = vunpack.c.l.b16 %v1054
      %v2590 = vunpack.c.h.b16 %v1054
      %v2591 = vunpack.c.l.b16 %v1055
      %v2592 = vunpack.c.h.b16 %v1055
      %v2593 = vunpack.c.l.b16 %v1056
      %v2594 = vunpack.c.h.b16 %v1056
      %v2595 = vunpack.c.l.b16 %v1057
      %v2596 = vunpack.c.h.b16 %v1057
      %v2597 = vunpack.c.l.b16 %v1058
      %v2598 = vunpack.c.h.b16 %v1058
      %v2599 = vunpack.c.l.b16 %v1059
      %v2600 = vunpack.c.h.b16 %v1059
      %v2601 = vunpack.c.l.b16 %v1060
      %v2602 = vunpack.c.h.b16 %v1060
      %v2603 = vunpack.c.l.b16 %v1061
      %v2604 = vunpack.c.h.b16 %v1061
      %v2605 = vunpack.c.l.b16 %v1062
      %v2606 = vunpack.c.h.b16 %v1062
      %v2607 = vunpack.c.l.b16 %v1063
      %v2608 = vunpack.c.h.b16 %v1063
      %v2609 = vunpack.c.l.b16 %v1064
      %v2610 = vunpack.c.h.b16 %v1064
      %v2611 = vunpack.c.l.b16 %v1065
      %v2612 = vunpack.c.h.b16 %v1065
      %v2613 = vunpack.c.l.b16 %v1066
      %v2614 = vunpack.c.h.b16 %v1066
      %v2615 = vunpack.c.l.b16 %v1067
      %v2616 = vunpack.c.h.b16 %v1067
      %v2617 = vunpack.c.l.b16 %v1068
      %v2618 = vunpack.c.h.b16 %v1068
      %v2619 = vunpack.c.l.b16 %v1069
      %v2620 = vunpack.c.h.b16 %v1069
      %v2621 = vunpack.c.l.b16 %v1070
      %v2622 = vunpack.c.h.b16 %v1070
      %v2623 = vunpack.c.l.b16 %v1071
      %v2624 = vunpack.c.h.b16 %v1071
      %v2625 = vunpack.c.l.b16 %v1072
      %v2626 = vunpack.c.h.b16 %v1072
      %v2627 = vunpack.c.l.b16 %v1073
      %v2628 = vunpack.c.h.b16 %v1073
      %v2629 = vunpack.c.l.b16 %v1074
      %v2630 = vunpack.c.h.b16 %v1074
      %v2631 = vunpack.c.l.b16 %v1075
      %v2632 = vunpack.c.h.b16 %v1075
      %v2633 = vunpack.c.l.b16 %v1076
      %v2634 = vunpack.c.h.b16 %v1076
      %v2635 = vunpack.c.l.b16 %v1077
      %v2636 = vunpack.c.h.b16 %v1077
      %v2637 = vunpack.c.l.b16 %v1078
      %v2638 = vunpack.c.h.b16 %v1078
      %v2639 = vunpack.c.l.b16 %v1079
      %v2640 = vunpack.c.h.b16 %v1079
      %v2641 = vunpack.c.l.b16 %v1080
      %v2642 = vunpack.c.h.b16 %v1080
      %v2643 = vunpack.c.l.b16 %v1081
      %v2644 = vunpack.c.h.b16 %v1081
      %v2645 = vunpack.c.l.b16 %v1082
      %v2646 = vunpack.c.h.b16 %v1082
      %v2647 = vunpack.c.l.b16 %v1083
      %v2648 = vunpack.c.h.b16 %v1083
      %v2649 = vunpack.c.l.b16 %v1084
      %v2650 = vunpack.c.h.b16 %v1084
      %v2651 = vunpack.c.l.b16 %v1085
      %v2652 = vunpack.c.h.b16 %v1085
      %v2653 = vunpack.c.l.b16 %v1086
      %v2654 = vunpack.c.h.b16 %v1086
      %v2655 = vunpack.c.l.b16 %v1087
      %v2656 = vunpack.c.h.b16 %v1087
      %v2657 = vunpack.c.l.b16 %v1088
      %v2658 = vunpack.c.h.b16 %v1088
      %v2659 = vunpack.c.l.b16 %v1089
      %v2660 = vunpack.c.h.b16 %v1089
      %v2661 = vunpack.c.l.b16 %v1090
      %v2662 = vunpack.c.h.b16 %v1090
      %v2663 = vunpack.c.l.b16 %v1091
      %v2664 = vunpack.c.h.b16 %v1091
      %v2665 = vunpack.c.l.b16 %v1092
      %v2666 = vunpack.c.h.b16 %v1092
      %v2667 = vunpack.c.l.b16 %v1093
      %v2668 = vunpack.c.h.b16 %v1093
      %v2669 = vunpack.c.l.b16 %v1094
      %v2670 = vunpack.c.h.b16 %v1094
      %v2671 = vunpack.c.l.b16 %v1095
      %v2672 = vunpack.c.h.b16 %v1095
      %v2673 = vunpack.c.l.b16 %v1096
      %v2674 = vunpack.c.h.b16 %v1096
      %v2675 = vpack.c.b16 %v1659, %v1651
      %v2676 = vpack.c.b16 %v1660, %v1652
      %v2677 = vpack.c.b16 %v1661, %v1653
      %v2678 = vpack.c.b16 %v1662, %v1654
      %v2679 = vpack.c.b16 %v1663, %v1655
      %v2680 = vpack.c.b16 %v1664, %v1656
      %v2681 = vpack.c.b16 %v1665, %v1657
      %v2682 = vpack.c.b16 %v1666, %v1658
      %v2683 = vpack.c.b16 %v1675, %v1667
      %v2684 = vpack.c.b16 %v1676, %v1668
      %v2685 = vpack.c.b16 %v1677, %v1669
      %v2686 = vpack.c.b16 %v1678, %v1670
      %v2687 = vpack.c.b16 %v1679, %v1671
      %v2688 = vpack.c.b16 %v1680, %v1672
      %v2689 = vpack.c.b16 %v1681, %v1673
      %v2690 = vpack.c.b16 %v1682, %v1674
      %v2691 = vpack.c.b16 %v1691, %v1683
      %v2692 = vpack.c.b16 %v1692, %v1684
      %v2693 = vpack.c.b16 %v1693, %v1685
      %v2694 = vpack.c.b16 %v1694, %v1686
      %v2695 = vpack.c.b16 %v1695, %v1687
      %v2696 = vpack.c.b16 %v1696, %v1688
      %v2697 = vpack.c.b16 %v1697, %v1689
      %v2698 = vpack.c.b16 %v1698, %v1690
      %v2699 = vpack.c.b16 %v1707, %v1699
      %v2700 = vpack.c.b16 %v1708, %v1700
      %v2701 = vpack.c.b16 %v1709, %v1701
      %v2702 = vpack.c.b16 %v1710, %v1702
      %v2703 = vpack.c.b16 %v1711, %v1703
      %v2704 = vpack.c.b16 %v1712, %v1704
      %v2705 = vpack.c.b16 %v1713, %v1705
      %v2706 = vpack.c.b16 %v1714, %v1706
      %v2707 = vpack.c.b16 %v1723, %v1715
      %v2708 = vpack.c.b16 %v1724, %v1716
      %v2709 = vpack.c.b16 %v1725, %v1717
      %v2710 = vpack.c.b16 %v1726, %v1718
      %v2711 = vpack.c.b16 %v1727, %v1719
      %v2712 = vpack.c.b16 %v1728, %v1720
      %v2713 = vpack.c.b16 %v1729, %v1721
      %v2714 = vpack.c.b16 %v1730, %v1722
      %v2715 = vpack.c.b16 %v1739, %v1731
      %v2716 = vpack.c.b16 %v1740, %v1732
      %v2717 = vpack.c.b16 %v1741, %v1733
      %v2718 = vpack.c.b16 %v1742, %v1734
      %v2719 = vpack.c.b16 %v1743, %v1735
      %v2720 = vpack.c.b16 %v1744, %v1736
      %v2721 = vpack.c.b16 %v1745, %v1737
      %v2722 = vpack.c.b16 %v1746, %v1738
      %v2723 = vpack.c.b16 %v1755, %v1747
      %v2724 = vpack.c.b16 %v1756, %v1748
      %v2725 = vpack.c.b16 %v1757, %v1749
      %v2726 = vpack.c.b16 %v1758, %v1750
      %v2727 = vpack.c.b16 %v1759, %v1751
      %v2728 = vpack.c.b16 %v1760, %v1752
      %v2729 = vpack.c.b16 %v1761, %v1753
      %v2730 = vpack.c.b16 %v1762, %v1754
      %v2731 = vpack.c.b16 %v1771, %v1763
      %v2732 = vpack.c.b16 %v1772, %v1764
      %v2733 = vpack.c.b16 %v1773, %v1765
      %v2734 = vpack.c.b16 %v1774, %v1766
      %v2735 = vpack.c.b16 %v1775, %v1767
      %v2736 = vpack.c.b16 %v1776, %v1768
      %v2737 = vpack.c.b16 %v1777, %v1769
      %v2738 = vpack.c.b16 %v1778, %v1770
      %v2739 = vpack.c.b16 %v1787, %v1779
      %v2740 = vpack.c.b16 %v1788, %v1780
      %v2741 = vpack.c.b16 %v1789, %v1781
      %v2742 = vpack.c.b16 %v1790, %v1782
      %v2743 = vpack.c.b16 %v1791, %v1783
      %v2744 = vpack.c.b16 %v1792, %v1784
      %v2745 = vpack.c.b16 %v1793, %v1785
      %v2746 = vpack.c.b16 %v1794, %v1786
      %v2747 = vpack.c.b16 %v1803, %v1795
      %v2748 = vpack.c.b16 %v1804, %v1796
      %v2749 = vpack.c.b16 %v1805, %v1797
      %v2750 = vpack.c.b16 %v1806, %v1798
      %v2751 = vpack.c.b16 %v1807, %v1799
      %v2752 = vpack.c.b16 %v1808, %v1800
      %v2753 = vpack.c.b16 %v1809, %v1801
      %v2754 = vpack.c.b16 %v1810, %v1802
      %v2755 = vpack.c.b16 %v1819, %v1811
      %v2756 = vpack.c.b16 %v1820, %v1812
      %v2757 = vpack.c.b16 %v1821, %v1813
      %v2758 = vpack.c.b16 %v1822, %v1814
      %v2759 = vpack.c.b16 %v1823, %v1815
      %v2760 = vpack.c.b16 %v1824, %v1816
      %v2761 = vpack.c.b16 %v1825, %v1817
      %v2762 = vpack.c.b16 %v1826, %v1818
      %v2763 = vpack.c.b16 %v1835, %v1827
      %v2764 = vpack.c.b16 %v1836, %v1828
      %v2765 = vpack.c.b16 %v1837, %v1829
      %v2766 = vpack.c.b16 %v1838, %v1830
      %v2767 = vpack.c.b16 %v1839, %v1831
      %v2768 = vpack.c.b16 %v1840, %v1832
      %v2769 = vpack.c.b16 %v1841, %v1833
      %v2770 = vpack.c.b16 %v1842, %v1834
      %v2771 = vpack.c.b16 %v1851, %v1843
      %v2772 = vpack.c.b16 %v1852, %v1844
      %v2773 = vpack.c.b16 %v1853, %v1845
      %v2774 = vpack.c.b16 %v1854, %v1846
      %v2775 = vpack.c.b16 %v1855, %v1847
      %v2776 = vpack.c.b16 %v1856, %v1848
      %v2777 = vpack.c.b16 %v1857, %v1849
      %v2778 = vpack.c.b16 %v1858, %v1850
      %v2779 = vpack.c.b16 %v1867, %v1859
      %v2780 = vpack.c.b16 %v1868, %v1860
      %v2781 = vpack.c.b16 %v1869, %v1861
      %v2782 = vpack.c.b16 %v1870, %v1862
      %v2783 = vpack.c.b16 %v1871, %v1863
      %v2784 = vpack.c.b16 %v1872, %v1864
      %v2785 = vpack.c.b16 %v1873, %v1865
      %v2786 = vpack.c.b16 %v1874, %v1866
      %v2787 = vpack.c.b16 %v1883, %v1875
      %v2788 = vpack.c.b16 %v1884, %v1876
      %v2789 = vpack.c.b16 %v1885, %v1877
      %v2790 = vpack.c.b16 %v1886, %v1878
      %v2791 = vpack.c.b16 %v1887, %v1879
      %v2792 = vpack.c.b16 %v1888, %v1880
      %v2793 = vpack.c.b16 %v1889, %v1881
      %v2794 = vpack.c.b16 %v1890, %v1882
      %v2795 = vpack.c.b16 %v1899, %v1891
      %v2796 = vpack.c.b16 %v1900, %v1892
      %v2797 = vpack.c.b16 %v1901, %v1893
      %v2798 = vpack.c.b16 %v1902, %v1894
      %v2799 = vpack.c.b16 %v1903, %v1895
      %v2800 = vpack.c.b16 %v1904, %v1896
      %v2801 = vpack.c.b16 %v1905, %v1897
      %v2802 = vpack.c.b16 %v1906, %v1898
      %v2803 = vpack.c.b16 %v1915, %v1907
      %v2804 = vpack.c.b16 %v1916, %v1908
      %v2805 = vpack.c.b16 %v1917, %v1909
      %v2806 = vpack.c.b16 %v1918, %v1910
      %v2807 = vpack.c.b16 %v1919, %v1911
      %v2808 = vpack.c.b16 %v1920, %v1912
      %v2809 = vpack.c.b16 %v1921, %v1913
      %v2810 = vpack.c.b16 %v1922, %v1914
      %v2811 = vpack.c.b16 %v1931, %v1923
      %v2812 = vpack.c.b16 %v1932, %v1924
      %v2813 = vpack.c.b16 %v1933, %v1925
      %v2814 = vpack.c.b16 %v1934, %v1926
      %v2815 = vpack.c.b16 %v1935, %v1927
      %v2816 = vpack.c.b16 %v1936, %v1928
      %v2817 = vpack.c.b16 %v1937, %v1929
      %v2818 = vpack.c.b16 %v1938, %v1930
      %v2819 = vpack.c.b16 %v1947, %v1939
      %v2820 = vpack.c.b16 %v1948, %v1940
      %v2821 = vpack.c.b16 %v1949, %v1941
      %v2822 = vpack.c.b16 %v1950, %v1942
      %v2823 = vpack.c.b16 %v1951, %v1943
      %v2824 = vpack.c.b16 %v1952, %v1944
      %v2825 = vpack.c.b16 %v1953, %v1945
      %v2826 = vpack.c.b16 %v1954, %v1946
      %v2827 = vpack.c.b16 %v1963, %v1955
      %v2828 = vpack.c.b16 %v1964, %v1956
      %v2829 = vpack.c.b16 %v1965, %v1957
      %v2830 = vpack.c.b16 %v1966, %v1958
      %v2831 = vpack.c.b16 %v1967, %v1959
      %v2832 = vpack.c.b16 %v1968, %v1960
      %v2833 = vpack.c.b16 %v1969, %v1961
      %v2834 = vpack.c.b16 %v1970, %v1962
      %v2835 = vpack.c.b16 %v1979, %v1971
      %v2836 = vpack.c.b16 %v1980, %v1972
      %v2837 = vpack.c.b16 %v1981, %v1973
      %v2838 = vpack.c.b16 %v1982, %v1974
      %v2839 = vpack.c.b16 %v1983, %v1975
      %v2840 = vpack.c.b16 %v1984, %v1976
      %v2841 = vpack.c.b16 %v1985, %v1977
      %v2842 = vpack.c.b16 %v1986, %v1978
      %v2843 = vpack.c.b16 %v1995, %v1987
      %v2844 = vpack.c.b16 %v1996, %v1988
      %v2845 = vpack.c.b16 %v1997, %v1989
      %v2846 = vpack.c.b16 %v1998, %v1990
      %v2847 = vpack.c.b16 %v1999, %v1991
      %v2848 = vpack.c.b16 %v2000, %v1992
      %v2849 = vpack.c.b16 %v2001, %v1993
      %v2850 = vpack.c.b16 %v2002, %v1994
      %v2851 = vpack.c.b16 %v2011, %v2003
      %v2852 = vpack.c.b16 %v2012, %v2004
      %v2853 = vpack.c.b16 %v2013, %v2005
      %v2854 = vpack.c.b16 %v2014, %v2006
      %v2855 = vpack.c.b16 %v2015, %v2007
      %v2856 = vpack.c.b16 %v2016, %v2008
      %v2857 = vpack.c.b16 %v2017, %v2009
      %v2858 = vpack.c.b16 %v2018, %v2010
      %v2859 = vpack.c.b16 %v2027, %v2019
      %v2860 = vpack.c.b16 %v2028, %v2020
      %v2861 = vpack.c.b16 %v2029, %v2021
      %v2862 = vpack.c.b16 %v2030, %v2022
      %v2863 = vpack.c.b16 %v2031, %v2023
      %v2864 = vpack.c.b16 %v2032, %v2024
      %v2865 = vpack.c.b16 %v2033, %v2025
      %v2866 = vpack.c.b16 %v2034, %v2026
      %v2867 = vpack.c.b16 %v2043, %v2035
      %v2868 = vpack.c.b16 %v2044, %v2036
      %v2869 = vpack.c.b16 %v2045, %v2037
      %v2870 = vpack.c.b16 %v2046, %v2038
      %v2871 = vpack.c.b16 %v2047, %v2039
      %v2872 = vpack.c.b16 %v2048, %v2040
      %v2873 = vpack.c.b16 %v2049, %v2041
      %v2874 = vpack.c.b16 %v2050, %v2042
      %v2875 = vpack.c.b16 %v2059, %v2051
      %v2876 = vpack.c.b16 %v2060, %v2052
      %v2877 = vpack.c.b16 %v2061, %v2053
      %v2878 = vpack.c.b16 %v2062, %v2054
      %v2879 = vpack.c.b16 %v2063, %v2055
      %v2880 = vpack.c.b16 %v2064, %v2056
      %v2881 = vpack.c.b16 %v2065, %v2057
      %v2882 = vpack.c.b16 %v2066, %v2058
      %v2883 = vpack.c.b16 %v2075, %v2067
      %v2884 = vpack.c.b16 %v2076, %v2068
      %v2885 = vpack.c.b16 %v2077, %v2069
      %v2886 = vpack.c.b16 %v2078, %v2070
      %v2887 = vpack.c.b16 %v2079, %v2071
      %v2888 = vpack.c.b16 %v2080, %v2072
      %v2889 = vpack.c.b16 %v2081, %v2073
      %v2890 = vpack.c.b16 %v2082, %v2074
      %v2891 = vpack.c.b16 %v2091, %v2083
      %v2892 = vpack.c.b16 %v2092, %v2084
      %v2893 = vpack.c.b16 %v2093, %v2085
      %v2894 = vpack.c.b16 %v2094, %v2086
      %v2895 = vpack.c.b16 %v2095, %v2087
      %v2896 = vpack.c.b16 %v2096, %v2088
      %v2897 = vpack.c.b16 %v2097, %v2089
      %v2898 = vpack.c.b16 %v2098, %v2090
      %v2899 = vpack.c.b16 %v2107, %v2099
      %v2900 = vpack.c.b16 %v2108, %v2100
      %v2901 = vpack.c.b16 %v2109, %v2101
      %v2902 = vpack.c.b16 %v2110, %v2102
      %v2903 = vpack.c.b16 %v2111, %v2103
      %v2904 = vpack.c.b16 %v2112, %v2104
      %v2905 = vpack.c.b16 %v2113, %v2105
      %v2906 = vpack.c.b16 %v2114, %v2106
      %v2907 = vpack.c.b16 %v2123, %v2115
      %v2908 = vpack.c.b16 %v2124, %v2116
      %v2909 = vpack.c.b16 %v2125, %v2117
      %v2910 = vpack.c.b16 %v2126, %v2118
      %v2911 = vpack.c.b16 %v2127, %v2119
      %v2912 = vpack.c.b16 %v2128, %v2120
      %v2913 = vpack.c.b16 %v2129, %v2121
      %v2914 = vpack.c.b16 %v2130, %v2122
      %v2915 = vpack.c.b16 %v2139, %v2131
      %v2916 = vpack.c.b16 %v2140, %v2132
      %v2917 = vpack.c.b16 %v2141, %v2133
      %v2918 = vpack.c.b16 %v2142, %v2134
      %v2919 = vpack.c.b16 %v2143, %v2135
      %v2920 = vpack.c.b16 %v2144, %v2136
      %v2921 = vpack.c.b16 %v2145, %v2137
      %v2922 = vpack.c.b16 %v2146, %v2138
      %v2923 = vpack.c.b16 %v2155, %v2147
      %v2924 = vpack.c.b16 %v2156, %v2148
      %v2925 = vpack.c.b16 %v2157, %v2149
      %v2926 = vpack.c.b16 %v2158, %v2150
      %v2927 = vpack.c.b16 %v2159, %v2151
      %v2928 = vpack.c.b16 %v2160, %v2152
      %v2929 = vpack.c.b16 %v2161, %v2153
      %v2930 = vpack.c.b16 %v2162, %v2154
      %v2931 = vpack.c.b16 %v2171, %v2163
      %v2932 = vpack.c.b16 %v2172, %v2164
      %v2933 = vpack.c.b16 %v2173, %v2165
      %v2934 = vpack.c.b16 %v2174, %v2166
      %v2935 = vpack.c.b16 %v2175, %v2167
      %v2936 = vpack.c.b16 %v2176, %v2168
      %v2937 = vpack.c.b16 %v2177, %v2169
      %v2938 = vpack.c.b16 %v2178, %v2170
      %v2939 = vpack.c.b16 %v2187, %v2179
      %v2940 = vpack.c.b16 %v2188, %v2180
      %v2941 = vpack.c.b16 %v2189, %v2181
      %v2942 = vpack.c.b16 %v2190, %v2182
      %v2943 = vpack.c.b16 %v2191, %v2183
      %v2944 = vpack.c.b16 %v2192, %v2184
      %v2945 = vpack.c.b16 %v2193, %v2185
      %v2946 = vpack.c.b16 %v2194, %v2186
      %v2947 = vpack.c.b16 %v2203, %v2195
      %v2948 = vpack.c.b16 %v2204, %v2196
      %v2949 = vpack.c.b16 %v2205, %v2197
      %v2950 = vpack.c.b16 %v2206, %v2198
      %v2951 = vpack.c.b16 %v2207, %v2199
      %v2952 = vpack.c.b16 %v2208, %v2200
      %v2953 = vpack.c.b16 %v2209, %v2201
      %v2954 = vpack.c.b16 %v2210, %v2202
      %v2955 = vpack.c.b16 %v2219, %v2211
      %v2956 = vpack.c.b16 %v2220, %v2212
      %v2957 = vpack.c.b16 %v2221, %v2213
      %v2958 = vpack.c.b16 %v2222, %v2214
      %v2959 = vpack.c.b16 %v2223, %v2215
      %v2960 = vpack.c.b16 %v2224, %v2216
      %v2961 = vpack.c.b16 %v2225, %v2217
      %v2962 = vpack.c.b16 %v2226, %v2218
      %v2963 = vpack.c.b16 %v2235, %v2227
      %v2964 = vpack.c.b16 %v2236, %v2228
      %v2965 = vpack.c.b16 %v2237, %v2229
      %v2966 = vpack.c.b16 %v2238, %v2230
      %v2967 = vpack.c.b16 %v2239, %v2231
      %v2968 = vpack.c.b16 %v2240, %v2232
      %v2969 = vpack.c.b16 %v2241, %v2233
      %v2970 = vpack.c.b16 %v2242, %v2234
      %v2971 = vpack.c.b16 %v2251, %v2243
      %v2972 = vpack.c.b16 %v2252, %v2244
      %v2973 = vpack.c.b16 %v2253, %v2245
      %v2974 = vpack.c.b16 %v2254, %v2246
      %v2975 = vpack.c.b16 %v2255, %v2247
      %v2976 = vpack.c.b16 %v2256, %v2248
      %v2977 = vpack.c.b16 %v2257, %v2249
      %v2978 = vpack.c.b16 %v2258, %v2250
      %v2979 = vpack.c.b16 %v2267, %v2259
      %v2980 = vpack.c.b16 %v2268, %v2260
      %v2981 = vpack.c.b16 %v2269, %v2261
      %v2982 = vpack.c.b16 %v2270, %v2262
      %v2983 = vpack.c.b16 %v2271, %v2263
      %v2984 = vpack.c.b16 %v2272, %v2264
      %v2985 = vpack.c.b16 %v2273, %v2265
      %v2986 = vpack.c.b16 %v2274, %v2266
      %v2987 = vpack.c.b16 %v2283, %v2275
      %v2988 = vpack.c.b16 %v2284, %v2276
      %v2989 = vpack.c.b16 %v2285, %v2277
      %v2990 = vpack.c.b16 %v2286, %v2278
      %v2991 = vpack.c.b16 %v2287, %v2279
      %v2992 = vpack.c.b16 %v2288, %v2280
      %v2993 = vpack.c.b16 %v2289, %v2281
      %v2994 = vpack.c.b16 %v2290, %v2282
      %v2995 = vpack.c.b16 %v2299, %v2291
      %v2996 = vpack.c.b16 %v2300, %v2292
      %v2997 = vpack.c.b16 %v2301, %v2293
      %v2998 = vpack.c.b16 %v2302, %v2294
      %v2999 = vpack.c.b16 %v2303, %v2295
      %v3000 = vpack.c.b16 %v2304, %v2296
      %v3001 = vpack.c.b16 %v2305, %v2297
      %v3002 = vpack.c.b16 %v2306, %v2298
      %v3003 = vpack.c.b16 %v2315, %v2307
      %v3004 = vpack.c.b16 %v2316, %v2308
      %v3005 = vpack.c.b16 %v2317, %v2309
      %v3006 = vpack.c.b16 %v2318, %v2310
      %v3007 = vpack.c.b16 %v2319, %v2311
      %v3008 = vpack.c.b16 %v2320, %v2312
      %v3009 = vpack.c.b16 %v2321, %v2313
      %v3010 = vpack.c.b16 %v2322, %v2314
      %v3011 = vpack.c.b16 %v2331, %v2323
      %v3012 = vpack.c.b16 %v2332, %v2324
      %v3013 = vpack.c.b16 %v2333, %v2325
      %v3014 = vpack.c.b16 %v2334, %v2326
      %v3015 = vpack.c.b16 %v2335, %v2327
      %v3016 = vpack.c.b16 %v2336, %v2328
      %v3017 = vpack.c.b16 %v2337, %v2329
      %v3018 = vpack.c.b16 %v2338, %v2330
      %v3019 = vpack.c.b16 %v2347, %v2339
      %v3020 = vpack.c.b16 %v2348, %v2340
      %v3021 = vpack.c.b16 %v2349, %v2341
      %v3022 = vpack.c.b16 %v2350, %v2342
      %v3023 = vpack.c.b16 %v2351, %v2343
      %v3024 = vpack.c.b16 %v2352, %v2344
      %v3025 = vpack.c.b16 %v2353, %v2345
      %v3026 = vpack.c.b16 %v2354, %v2346
      %v3027 = vpack.c.b16 %v2363, %v2355
      %v3028 = vpack.c.b16 %v2364, %v2356
      %v3029 = vpack.c.b16 %v2365, %v2357
      %v3030 = vpack.c.b16 %v2366, %v2358
      %v3031 = vpack.c.b16 %v2367, %v2359
      %v3032 = vpack.c.b16 %v2368, %v2360
      %v3033 = vpack.c.b16 %v2369, %v2361
      %v3034 = vpack.c.b16 %v2370, %v2362
      %v3035 = vpack.c.b16 %v2379, %v2371
      %v3036 = vpack.c.b16 %v2380, %v2372
      %v3037 = vpack.c.b16 %v2381, %v2373
      %v3038 = vpack.c.b16 %v2382, %v2374
      %v3039 = vpack.c.b16 %v2383, %v2375
      %v3040 = vpack.c.b16 %v2384, %v2376
      %v3041 = vpack.c.b16 %v2385, %v2377
      %v3042 = vpack.c.b16 %v2386, %v2378
      %v3043 = vpack.c.b16 %v2395, %v2387
      %v3044 = vpack.c.b16 %v2396, %v2388
      %v3045 = vpack.c.b16 %v2397, %v2389
      %v3046 = vpack.c.b16 %v2398, %v2390
      %v3047 = vpack.c.b16 %v2399, %v2391
      %v3048 = vpack.c.b16 %v2400, %v2392
      %v3049 = vpack.c.b16 %v2401, %v2393
      %v3050 = vpack.c.b16 %v2402, %v2394
      %v3051 = vpack.c.b16 %v2411, %v2403
      %v3052 = vpack.c.b16 %v2412, %v2404
      %v3053 = vpack.c.b16 %v2413, %v2405
      %v3054 = vpack.c.b16 %v2414, %v2406
      %v3055 = vpack.c.b16 %v2415, %v2407
      %v3056 = vpack.c.b16 %v2416, %v2408
      %v3057 = vpack.c.b16 %v2417, %v2409
      %v3058 = vpack.c.b16 %v2418, %v2410
      %v3059 = vpack.c.b16 %v2427, %v2419
      %v3060 = vpack.c.b16 %v2428, %v2420
      %v3061 = vpack.c.b16 %v2429, %v2421
      %v3062 = vpack.c.b16 %v2430, %v2422
      %v3063 = vpack.c.b16 %v2431, %v2423
      %v3064 = vpack.c.b16 %v2432, %v2424
      %v3065 = vpack.c.b16 %v2433, %v2425
      %v3066 = vpack.c.b16 %v2434, %v2426
      %v3067 = vpack.c.b16 %v2443, %v2435
      %v3068 = vpack.c.b16 %v2444, %v2436
      %v3069 = vpack.c.b16 %v2445, %v2437
      %v3070 = vpack.c.b16 %v2446, %v2438
      %v3071 = vpack.c.b16 %v2447, %v2439
      %v3072 = vpack.c.b16 %v2448, %v2440
      %v3073 = vpack.c.b16 %v2449, %v2441
      %v3074 = vpack.c.b16 %v2450, %v2442
      %v3075 = vpack.c.b16 %v2459, %v2451
      %v3076 = vpack.c.b16 %v2460, %v2452
      %v3077 = vpack.c.b16 %v2461, %v2453
      %v3078 = vpack.c.b16 %v2462, %v2454
      %v3079 = vpack.c.b16 %v2463, %v2455
      %v3080 = vpack.c.b16 %v2464, %v2456
      %v3081 = vpack.c.b16 %v2465, %v2457
      %v3082 = vpack.c.b16 %v2466, %v2458
      %v3083 = vpack.c.b16 %v2475, %v2467
      %v3084 = vpack.c.b16 %v2476, %v2468
      %v3085 = vpack.c.b16 %v2477, %v2469
      %v3086 = vpack.c.b16 %v2478, %v2470
      %v3087 = vpack.c.b16 %v2479, %v2471
      %v3088 = vpack.c.b16 %v2480, %v2472
      %v3089 = vpack.c.b16 %v2481, %v2473
      %v3090 = vpack.c.b16 %v2482, %v2474
      %v3091 = vpack.c.b16 %v2491, %v2483
      %v3092 = vpack.c.b16 %v2492, %v2484
      %v3093 = vpack.c.b16 %v2493, %v2485
      %v3094 = vpack.c.b16 %v2494, %v2486
      %v3095 = vpack.c.b16 %v2495, %v2487
      %v3096 = vpack.c.b16 %v2496, %v2488
      %v3097 = vpack.c.b16 %v2497, %v2489
      %v3098 = vpack.c.b16 %v2498, %v2490
      %v3099 = vpack.c.b16 %v2507, %v2499
      %v3100 = vpack.c.b16 %v2508, %v2500
      %v3101 = vpack.c.b16 %v2509, %v2501
      %v3102 = vpack.c.b16 %v2510, %v2502
      %v3103 = vpack.c.b16 %v2511, %v2503
      %v3104 = vpack.c.b16 %v2512, %v2504
      %v3105 = vpack.c.b16 %v2513, %v2505
      %v3106 = vpack.c.b16 %v2514, %v2506
      %v3107 = vpack.c.b16 %v2523, %v2515
      %v3108 = vpack.c.b16 %v2524, %v2516
      %v3109 = vpack.c.b16 %v2525, %v2517
      %v3110 = vpack.c.b16 %v2526, %v2518
      %v3111 = vpack.c.b16 %v2527, %v2519
      %v3112 = vpack.c.b16 %v2528, %v2520
      %v3113 = vpack.c.b16 %v2529, %v2521
      %v3114 = vpack.c.b16 %v2530, %v2522
      %v3115 = vpack.c.b16 %v2539, %v2531
      %v3116 = vpack.c.b16 %v2540, %v2532
      %v3117 = vpack.c.b16 %v2541, %v2533
      %v3118 = vpack.c.b16 %v2542, %v2534
      %v3119 = vpack.c.b16 %v2543, %v2535
      %v3120 = vpack.c.b16 %v2544, %v2536
      %v3121 = vpack.c.b16 %v2545, %v2537
      %v3122 = vpack.c.b16 %v2546, %v2538
      %v3123 = vpack.c.b16 %v2555, %v2547
      %v3124 = vpack.c.b16 %v2556, %v2548
      %v3125 = vpack.c.b16 %v2557, %v2549
      %v3126 = vpack.c.b16 %v2558, %v2550
      %v3127 = vpack.c.b16 %v2559, %v2551
      %v3128 = vpack.c.b16 %v2560, %v2552
      %v3129 = vpack.c.b16 %v2561, %v2553
      %v3130 = vpack.c.b16 %v2562, %v2554
      %v3131 = vpack.c.b16 %v2571, %v2563
      %v3132 = vpack.c.b16 %v2572, %v2564
      %v3133 = vpack.c.b16 %v2573, %v2565
      %v3134 = vpack.c.b16 %v2574, %v2566
      %v3135 = vpack.c.b16 %v2575, %v2567
      %v3136 = vpack.c.b16 %v2576, %v2568
      %v3137 = vpack.c.b16 %v2577, %v2569
      %v3138 = vpack.c.b16 %v2578, %v2570
      %v3139 = vpack.c.b16 %v2587, %v2579
      %v3140 = vpack.c.b16 %v2588, %v2580
      %v3141 = vpack.c.b16 %v2589, %v2581
      %v3142 = vpack.c.b16 %v2590, %v2582
      %v3143 = vpack.c.b16 %v2591, %v2583
      %v3144 = vpack.c.b16 %v2592, %v2584
      %v3145 = vpack.c.b16 %v2593, %v2585
      %v3146 = vpack.c.b16 %v2594, %v2586
      %v3147 = vpack.c.b16 %v2603, %v2595
      %v3148 = vpack.c.b16 %v2604, %v2596
      %v3149 = vpack.c.b16 %v2605, %v2597
      %v3150 = vpack.c.b16 %v2606, %v2598
      %v3151 = vpack.c.b16 %v2607, %v2599
      %v3152 = vpack.c.b16 %v2608, %v2600
      %v3153 = vpack.c.b16 %v2609, %v2601
      %v3154 = vpack.c.b16 %v2610, %v2602
      %v3155 = vpack.c.b16 %v2619, %v2611
      %v3156 = vpack.c.b16 %v2620, %v2612
      %v3157 = vpack.c.b16 %v2621, %v2613
      %v3158 = vpack.c.b16 %v2622, %v2614
      %v3159 = vpack.c.b16 %v2623, %v2615
      %v3160 = vpack.c.b16 %v2624, %v2616
      %v3161 = vpack.c.b16 %v2625, %v2617
      %v3162 = vpack.c.b16 %v2626, %v2618
      %v3163 = vpack.c.b16 %v2635, %v2627
      %v3164 = vpack.c.b16 %v2636, %v2628
      %v3165 = vpack.c.b16 %v2637, %v2629
      %v3166 = vpack.c.b16 %v2638, %v2630
      %v3167 = vpack.c.b16 %v2639, %v2631
      %v3168 = vpack.c.b16 %v2640, %v2632
      %v3169 = vpack.c.b16 %v2641, %v2633
      %v3170 = vpack.c.b16 %v2642, %v2634
      %v3171 = vpack.c.b16 %v2651, %v2643
      %v3172 = vpack.c.b16 %v2652, %v2644
      %v3173 = vpack.c.b16 %v2653, %v2645
      %v3174 = vpack.c.b16 %v2654, %v2646
      %v3175 = vpack.c.b16 %v2655, %v2647
      %v3176 = vpack.c.b16 %v2656, %v2648
      %v3177 = vpack.c.b16 %v2657, %v2649
      %v3178 = vpack.c.b16 %v2658, %v2650
      %v3179 = vpack.c.b16 %v2667, %v2659
      %v3180 = vpack.c.b16 %v2668, %v2660
      %v3181 = vpack.c.b16 %v2669, %v2661
      %v3182 = vpack.c.b16 %v2670, %v2662
      %v3183 = vpack.c.b16 %v2671, %v2663
      %v3184 = vpack.c.b16 %v2672, %v2664
      %v3185 = vpack.c.b16 %v2673, %v2665
      %v3186 = vpack.c.b16 %v2674, %v2666
      %3699 = vmatprep.subr.bf16.mxu0 %v2676
      %3700 = vmatpush1.bf16.msra.mxu0 %v2675
      %3701 = vmatprep.subr.bf16.mxu0 %v2684
      %3702 = vmatpush1.bf16.msra.mxu0 %v2683
      %3703 = vmatprep.subr.bf16.mxu0 %v2692
      %3704 = vmatpush1.bf16.msra.mxu0 %v2691
      %3705 = vmatprep.subr.bf16.mxu0 %v2700
      %3706 = vmatpush1.bf16.msra.mxu0 %v2699
      %3707 = vmatprep.subr.bf16.mxu0 %v2708
      %3708 = vmatpush1.bf16.msra.mxu0 %v2707
      %3709 = vmatprep.subr.bf16.mxu0 %v2716
      %3710 = vmatpush1.bf16.msra.mxu0 %v2715
      %3711 = vmatprep.subr.bf16.mxu0 %v2724
      %3712 = vmatpush1.bf16.msra.mxu0 %v2723
      %3713 = vmatprep.subr.bf16.mxu0 %v2732
      %3714 = vmatpush1.bf16.msra.mxu0 %v2731
      %3715 = vmatprep.subr.bf16.mxu0 %v2740
      %3716 = vmatpush1.bf16.msra.mxu0 %v2739
      %3717 = vmatprep.subr.bf16.mxu0 %v2748
      %3718 = vmatpush1.bf16.msra.mxu0 %v2747
      %3719 = vmatprep.subr.bf16.mxu0 %v2756
      %3720 = vmatpush1.bf16.msra.mxu0 %v2755
      %3721 = vmatprep.subr.bf16.mxu0 %v2764
      %3722 = vmatpush1.bf16.msra.mxu0 %v2763
      %3723 = vmatprep.subr.bf16.mxu0 %v2772
      %3724 = vmatpush1.bf16.msra.mxu0 %v2771
      %3725 = vmatprep.subr.bf16.mxu0 %v2780
      %3726 = vmatpush1.bf16.msra.mxu0 %v2779
      %3727 = vmatprep.subr.bf16.mxu0 %v2788
      %3728 = vmatpush1.bf16.msra.mxu0 %v2787
      %3729 = vmatprep.subr.bf16.mxu0 %v2796
      %3730 = vmatpush1.bf16.msra.mxu0 %v2795
      %3731 = vmatprep.mubr.bf16.mxu0 %v578
      %3732 = vmatmul.mubr.bf16.gmra.mrb[0].mxu0 %v577
      %v3733 = vpop.f32.mrb[0].mxu0
      %v3734 = vadd.f32 %v1102, %v3733
      %v3735 = vpop.f32.mrb[0].mxu0
      %v3736 = vadd.f32 %v1106, %v3735
      %v3737 = vpop.f32.mrb[0].mxu0
      %v3738 = vpop.f32.mrb[0].mxu0
      %3739 = vdwg.mxu0
      %3740 = vmatprep.subr.bf16.mxu0 %v2804
      %3741 = vmatpush1.bf16.msra.mxu0 %v2803
      %3742 = vmatprep.subr.bf16.mxu0 %v2812
      %3743 = vmatpush1.bf16.msra.mxu0 %v2811
      %3744 = vmatprep.subr.bf16.mxu0 %v2820
      %3745 = vmatpush1.bf16.msra.mxu0 %v2819
      %3746 = vmatprep.subr.bf16.mxu0 %v2828
      %3747 = vmatpush1.bf16.msra.mxu0 %v2827
      %3748 = vmatprep.subr.bf16.mxu0 %v2836
      %3749 = vmatpush1.bf16.msra.mxu0 %v2835
      %3750 = vmatprep.subr.bf16.mxu0 %v2844
      %3751 = vmatpush1.bf16.msra.mxu0 %v2843
      %3752 = vmatprep.subr.bf16.mxu0 %v2852
      %3753 = vmatpush1.bf16.msra.mxu0 %v2851
      %3754 = vmatprep.subr.bf16.mxu0 %v2860
      %3755 = vmatpush1.bf16.msra.mxu0 %v2859
      %3756 = vmatprep.subr.bf16.mxu0 %v2868
      %3757 = vmatpush1.bf16.msra.mxu0 %v2867
      %3758 = vmatprep.subr.bf16.mxu0 %v2876
      %3759 = vmatpush1.bf16.msra.mxu0 %v2875
      %3760 = vmatprep.subr.bf16.mxu0 %v2884
      %3761 = vmatpush1.bf16.msra.mxu0 %v2883
      %3762 = vmatprep.subr.bf16.mxu0 %v2892
      %3763 = vmatpush1.bf16.msra.mxu0 %v2891
      %3764 = vmatprep.subr.bf16.mxu0 %v2900
      %3765 = vmatpush1.bf16.msra.mxu0 %v2899
      %3766 = vmatprep.subr.bf16.mxu0 %v2908
      %3767 = vmatpush1.bf16.msra.mxu0 %v2907
      %3768 = vmatprep.subr.bf16.mxu0 %v2916
      %3769 = vmatpush1.bf16.msra.mxu0 %v2915
      %3770 = vmatprep.subr.bf16.mxu0 %v2924
      %3771 = vmatpush1.bf16.msra.mxu0 %v2923
      %3772 = vmatprep.mubr.bf16.mxu0 %v580
      %3773 = vmatmul.mubr.bf16.gmra.mrb[0].mxu0 %v579
      %v3774 = vpop.f32.mrb[0].mxu0
      %v3775 = vadd.f32 %v3734, %v3774
      %v3776 = vpop.f32.mrb[0].mxu0
      %v3777 = vadd.f32 %v3736, %v3776
      %v3778 = vpop.f32.mrb[0].mxu0
      %v3779 = vpop.f32.mrb[0].mxu0
      %3780 = vdwg.mxu0
      %3781 = vmatprep.subr.bf16.mxu0 %v2932
      %3782 = vmatpush1.bf16.msra.mxu0 %v2931
      %3783 = vmatprep.subr.bf16.mxu0 %v2940
      %3784 = vmatpush1.bf16.msra.mxu0 %v2939
      %3785 = vmatprep.subr.bf16.mxu0 %v2948
      %3786 = vmatpush1.bf16.msra.mxu0 %v2947
      %3787 = vmatprep.subr.bf16.mxu0 %v2956
      %3788 = vmatpush1.bf16.msra.mxu0 %v2955
      %3789 = vmatprep.subr.bf16.mxu0 %v2964
      %3790 = vmatpush1.bf16.msra.mxu0 %v2963
      %3791 = vmatprep.subr.bf16.mxu0 %v2972
      %3792 = vmatpush1.bf16.msra.mxu0 %v2971
      %3793 = vmatprep.subr.bf16.mxu0 %v2980
      %3794 = vmatpush1.bf16.msra.mxu0 %v2979
      %3795 = vmatprep.subr.bf16.mxu0 %v2988
      %3796 = vmatpush1.bf16.msra.mxu0 %v2987
      %3797 = vmatprep.subr.bf16.mxu0 %v2996
      %3798 = vmatpush1.bf16.msra.mxu0 %v2995
      %3799 = vmatprep.subr.bf16.mxu0 %v3004
      %3800 = vmatpush1.bf16.msra.mxu0 %v3003
      %3801 = vmatprep.subr.bf16.mxu0 %v3012
      %3802 = vmatpush1.bf16.msra.mxu0 %v3011
      %3803 = vmatprep.subr.bf16.mxu0 %v3020
      %3804 = vmatpush1.bf16.msra.mxu0 %v3019
      %3805 = vmatprep.subr.bf16.mxu0 %v3028
      %3806 = vmatpush1.bf16.msra.mxu0 %v3027
      %3807 = vmatprep.subr.bf16.mxu0 %v3036
      %3808 = vmatpush1.bf16.msra.mxu0 %v3035
      %3809 = vmatprep.subr.bf16.mxu0 %v3044
      %3810 = vmatpush1.bf16.msra.mxu0 %v3043
      %3811 = vmatprep.subr.bf16.mxu0 %v3052
      %3812 = vmatpush1.bf16.msra.mxu0 %v3051
      %3813 = vmatprep.mubr.bf16.mxu0 %v582
      %3814 = vmatmul.mubr.bf16.gmra.mrb[0].mxu0 %v581
      %v3815 = vpop.f32.mrb[0].mxu0
      %v3816 = vadd.f32 %v3775, %v3815
      %v3817 = vpop.f32.mrb[0].mxu0
      %v3818 = vadd.f32 %v3777, %v3817
      %v3819 = vpop.f32.mrb[0].mxu0
      %v3820 = vpop.f32.mrb[0].mxu0
      %3821 = vdwg.mxu0
      %3822 = vmatprep.subr.bf16.mxu0 %v3060
      %3823 = vmatpush1.bf16.msra.mxu0 %v3059
      %3824 = vmatprep.subr.bf16.mxu0 %v3068
      %3825 = vmatpush1.bf16.msra.mxu0 %v3067
      %3826 = vmatprep.subr.bf16.mxu0 %v3076
      %3827 = vmatpush1.bf16.msra.mxu0 %v3075
      %3828 = vmatprep.subr.bf16.mxu0 %v3084
      %3829 = vmatpush1.bf16.msra.mxu0 %v3083
      %3830 = vmatprep.subr.bf16.mxu0 %v3092
      %3831 = vmatpush1.bf16.msra.mxu0 %v3091
      %3832 = vmatprep.subr.bf16.mxu0 %v3100
      %3833 = vmatpush1.bf16.msra.mxu0 %v3099
      %3834 = vmatprep.subr.bf16.mxu0 %v3108
      %3835 = vmatpush1.bf16.msra.mxu0 %v3107
      %3836 = vmatprep.subr.bf16.mxu0 %v3116
      %3837 = vmatpush1.bf16.msra.mxu0 %v3115
      %3838 = vmatprep.subr.bf16.mxu0 %v3124
      %3839 = vmatpush1.bf16.msra.mxu0 %v3123
      %3840 = vmatprep.subr.bf16.mxu0 %v3132
      %3841 = vmatpush1.bf16.msra.mxu0 %v3131
      %3842 = vmatprep.subr.bf16.mxu0 %v3140
      %3843 = vmatpush1.bf16.msra.mxu0 %v3139
      %3844 = vmatprep.subr.bf16.mxu0 %v3148
      %3845 = vmatpush1.bf16.msra.mxu0 %v3147
      %3846 = vmatprep.subr.bf16.mxu0 %v3156
      %3847 = vmatpush1.bf16.msra.mxu0 %v3155
      %3848 = vmatprep.subr.bf16.mxu0 %v3164
      %3849 = vmatpush1.bf16.msra.mxu0 %v3163
      %3850 = vmatprep.subr.bf16.mxu0 %v3172
      %3851 = vmatpush1.bf16.msra.mxu0 %v3171
      %3852 = vmatprep.subr.bf16.mxu0 %v3180
      %3853 = vmatpush1.bf16.msra.mxu0 %v3179
      %3854 = vmatprep.mubr.bf16.mxu0 %v584
      %3855 = vmatmul.mubr.bf16.gmra.mrb[0].mxu0 %v583
      %v3856 = vpop.f32.mrb[0].mxu0
      %v3857 = vadd.f32 %v3816, %v3856
      %v3858 = vpop.f32.mrb[0].mxu0
      %v3859 = vadd.f32 %v3818, %v3858
      %v3860 = vpop.f32.mrb[0].mxu0
      %v3861 = vpop.f32.mrb[0].mxu0
      %3862 = vdwg.mxu0
      %3863 = vmatprep.subr.bf16.mxu0 %v2678
      %3864 = vmatpush1.bf16.msra.mxu0 %v2677
      %3865 = vmatprep.subr.bf16.mxu0 %v2686
      %3866 = vmatpush1.bf16.msra.mxu0 %v2685
      %3867 = vmatprep.subr.bf16.mxu0 %v2694
      %3868 = vmatpush1.bf16.msra.mxu0 %v2693
      %3869 = vmatprep.subr.bf16.mxu0 %v2702
      %3870 = vmatpush1.bf16.msra.mxu0 %v2701
      %3871 = vmatprep.subr.bf16.mxu0 %v2710
      %3872 = vmatpush1.bf16.msra.mxu0 %v2709
      %3873 = vmatprep.subr.bf16.mxu0 %v2718
      %3874 = vmatpush1.bf16.msra.mxu0 %v2717
      %3875 = vmatprep.subr.bf16.mxu0 %v2726
      %3876 = vmatpush1.bf16.msra.mxu0 %v2725
      %3877 = vmatprep.subr.bf16.mxu0 %v2734
      %3878 = vmatpush1.bf16.msra.mxu0 %v2733
      %3879 = vmatprep.subr.bf16.mxu0 %v2742
      %3880 = vmatpush1.bf16.msra.mxu0 %v2741
      %3881 = vmatprep.subr.bf16.mxu0 %v2750
      %3882 = vmatpush1.bf16.msra.mxu0 %v2749
      %3883 = vmatprep.subr.bf16.mxu0 %v2758
      %3884 = vmatpush1.bf16.msra.mxu0 %v2757
      %3885 = vmatprep.subr.bf16.mxu0 %v2766
      %3886 = vmatpush1.bf16.msra.mxu0 %v2765
      %3887 = vmatprep.subr.bf16.mxu0 %v2774
      %3888 = vmatpush1.bf16.msra.mxu0 %v2773
      %3889 = vmatprep.subr.bf16.mxu0 %v2782
      %3890 = vmatpush1.bf16.msra.mxu0 %v2781
      %3891 = vmatprep.subr.bf16.mxu0 %v2790
      %3892 = vmatpush1.bf16.msra.mxu0 %v2789
      %3893 = vmatprep.subr.bf16.mxu0 %v2798
      %3894 = vmatpush1.bf16.msra.mxu0 %v2797
      %3895 = vmatprep.mubr.bf16.mxu0 %v578
      %3896 = vmatmul.mubr.bf16.gmra.mrb[0].mxu0 %v577
      %v3897 = vpop.f32.mrb[0].mxu0
      %v3898 = vadd.f32 %v1110, %v3897
      %v3899 = vpop.f32.mrb[0].mxu0
      %v3900 = vadd.f32 %v1114, %v3899
      %v3901 = vpop.f32.mrb[0].mxu0
      %v3902 = vpop.f32.mrb[0].mxu0
      %3903 = vdwg.mxu0
      %3904 = vmatprep.subr.bf16.mxu0 %v2806
      %3905 = vmatpush1.bf16.msra.mxu0 %v2805
      %3906 = vmatprep.subr.bf16.mxu0 %v2814
      %3907 = vmatpush1.bf16.msra.mxu0 %v2813
      %3908 = vmatprep.subr.bf16.mxu0 %v2822
      %3909 = vmatpush1.bf16.msra.mxu0 %v2821
      %3910 = vmatprep.subr.bf16.mxu0 %v2830
      %3911 = vmatpush1.bf16.msra.mxu0 %v2829
      %3912 = vmatprep.subr.bf16.mxu0 %v2838
      %3913 = vmatpush1.bf16.msra.mxu0 %v2837
      %3914 = vmatprep.subr.bf16.mxu0 %v2846
      %3915 = vmatpush1.bf16.msra.mxu0 %v2845
      %3916 = vmatprep.subr.bf16.mxu0 %v2854
      %3917 = vmatpush1.bf16.msra.mxu0 %v2853
      %3918 = vmatprep.subr.bf16.mxu0 %v2862
      %3919 = vmatpush1.bf16.msra.mxu0 %v2861
      %3920 = vmatprep.subr.bf16.mxu0 %v2870
      %3921 = vmatpush1.bf16.msra.mxu0 %v2869
      %3922 = vmatprep.subr.bf16.mxu0 %v2878
      %3923 = vmatpush1.bf16.msra.mxu0 %v2877
      %3924 = vmatprep.subr.bf16.mxu0 %v2886
      %3925 = vmatpush1.bf16.msra.mxu0 %v2885
      %3926 = vmatprep.subr.bf16.mxu0 %v2894
      %3927 = vmatpush1.bf16.msra.mxu0 %v2893
      %3928 = vmatprep.subr.bf16.mxu0 %v2902
      %3929 = vmatpush1.bf16.msra.mxu0 %v2901
      %3930 = vmatprep.subr.bf16.mxu0 %v2910
      %3931 = vmatpush1.bf16.msra.mxu0 %v2909
      %3932 = vmatprep.subr.bf16.mxu0 %v2918
      %3933 = vmatpush1.bf16.msra.mxu0 %v2917
      %3934 = vmatprep.subr.bf16.mxu0 %v2926
      %3935 = vmatpush1.bf16.msra.mxu0 %v2925
      %3936 = vmatprep.mubr.bf16.mxu0 %v580
      %3937 = vmatmul.mubr.bf16.gmra.mrb[0].mxu0 %v579
      %v3938 = vpop.f32.mrb[0].mxu0
      %v3939 = vadd.f32 %v3898, %v3938
      %v3940 = vpop.f32.mrb[0].mxu0
      %v3941 = vadd.f32 %v3900, %v3940
      %v3942 = vpop.f32.mrb[0].mxu0
      %v3943 = vpop.f32.mrb[0].mxu0
      %3944 = vdwg.mxu0
      %3945 = vmatprep.subr.bf16.mxu0 %v2934
      %3946 = vmatpush1.bf16.msra.mxu0 %v2933
      %3947 = vmatprep.subr.bf16.mxu0 %v2942
      %3948 = vmatpush1.bf16.msra.mxu0 %v2941
      %3949 = vmatprep.subr.bf16.mxu0 %v2950
      %3950 = vmatpush1.bf16.msra.mxu0 %v2949
      %3951 = vmatprep.subr.bf16.mxu0 %v2958
      %3952 = vmatpush1.bf16.msra.mxu0 %v2957
      %3953 = vmatprep.subr.bf16.mxu0 %v2966
      %3954 = vmatpush1.bf16.msra.mxu0 %v2965
      %3955 = vmatprep.subr.bf16.mxu0 %v2974
      %3956 = vmatpush1.bf16.msra.mxu0 %v2973
      %3957 = vmatprep.subr.bf16.mxu0 %v2982
      %3958 = vmatpush1.bf16.msra.mxu0 %v2981
      %3959 = vmatprep.subr.bf16.mxu0 %v2990
      %3960 = vmatpush1.bf16.msra.mxu0 %v2989
      %3961 = vmatprep.subr.bf16.mxu0 %v2998
      %3962 = vmatpush1.bf16.msra.mxu0 %v2997
      %3963 = vmatprep.subr.bf16.mxu0 %v3006
      %3964 = vmatpush1.bf16.msra.mxu0 %v3005
      %3965 = vmatprep.subr.bf16.mxu0 %v3014
      %3966 = vmatpush1.bf16.msra.mxu0 %v3013
      %3967 = vmatprep.subr.bf16.mxu0 %v3022
      %3968 = vmatpush1.bf16.msra.mxu0 %v3021
      %3969 = vmatprep.subr.bf16.mxu0 %v3030
      %3970 = vmatpush1.bf16.msra.mxu0 %v3029
      %3971 = vmatprep.subr.bf16.mxu0 %v3038
      %3972 = vmatpush1.bf16.msra.mxu0 %v3037
      %3973 = vmatprep.subr.bf16.mxu0 %v3046
      %3974 = vmatpush1.bf16.msra.mxu0 %v3045
      %3975 = vmatprep.subr.bf16.mxu0 %v3054
      %3976 = vmatpush1.bf16.msra.mxu0 %v3053
      %3977 = vmatprep.mubr.bf16.mxu0 %v582
      %3978 = vmatmul.mubr.bf16.gmra.mrb[0].mxu0 %v581
      %v3979 = vpop.f32.mrb[0].mxu0
      %v3980 = vadd.f32 %v3939, %v3979
      %v3981 = vpop.f32.mrb[0].mxu0
      %v3982 = vadd.f32 %v3941, %v3981
      %v3983 = vpop.f32.mrb[0].mxu0
      %v3984 = vpop.f32.mrb[0].mxu0
      %3985 = vdwg.mxu0
      %3986 = vmatprep.subr.bf16.mxu0 %v3062
      %3987 = vmatpush1.bf16.msra.mxu0 %v3061
      %3988 = vmatprep.subr.bf16.mxu0 %v3070
      %3989 = vmatpush1.bf16.msra.mxu0 %v3069
      %3990 = vmatprep.subr.bf16.mxu0 %v3078
      %3991 = vmatpush1.bf16.msra.mxu0 %v3077
      %3992 = vmatprep.subr.bf16.mxu0 %v3086
      %3993 = vmatpush1.bf16.msra.mxu0 %v3085
      %3994 = vmatprep.subr.bf16.mxu0 %v3094
      %3995 = vmatpush1.bf16.msra.mxu0 %v3093
      %3996 = vmatprep.subr.bf16.mxu0 %v3102
      %3997 = vmatpush1.bf16.msra.mxu0 %v3101
      %3998 = vmatprep.subr.bf16.mxu0 %v3110
      %3999 = vmatpush1.bf16.msra.mxu0 %v3109
      %4000 = vmatprep.subr.bf16.mxu0 %v3118
      %4001 = vmatpush1.bf16.msra.mxu0 %v3117
      %4002 = vmatprep.subr.bf16.mxu0 %v3126
      %4003 = vmatpush1.bf16.msra.mxu0 %v3125
      %4004 = vmatprep.subr.bf16.mxu0 %v3134
      %4005 = vmatpush1.bf16.msra.mxu0 %v3133
      %4006 = vmatprep.subr.bf16.mxu0 %v3142
      %4007 = vmatpush1.bf16.msra.mxu0 %v3141
      %4008 = vmatprep.subr.bf16.mxu0 %v3150
      %4009 = vmatpush1.bf16.msra.mxu0 %v3149
      %4010 = vmatprep.subr.bf16.mxu0 %v3158
      %4011 = vmatpush1.bf16.msra.mxu0 %v3157
      %4012 = vmatprep.subr.bf16.mxu0 %v3166
      %4013 = vmatpush1.bf16.msra.mxu0 %v3165
      %4014 = vmatprep.subr.bf16.mxu0 %v3174
      %4015 = vmatpush1.bf16.msra.mxu0 %v3173
      %4016 = vmatprep.subr.bf16.mxu0 %v3182
      %4017 = vmatpush1.bf16.msra.mxu0 %v3181
      %4018 = vmatprep.mubr.bf16.mxu0 %v584
      %4019 = vmatmul.mubr.bf16.gmra.mrb[0].mxu0 %v583
      %v4020 = vpop.f32.mrb[0].mxu0
      %v4021 = vadd.f32 %v3980, %v4020
      %v4022 = vpop.f32.mrb[0].mxu0
      %v4023 = vadd.f32 %v3982, %v4022
      %v4024 = vpop.f32.mrb[0].mxu0
      %v4025 = vpop.f32.mrb[0].mxu0
      %4026 = vdwg.mxu0
      %4027 = vmatprep.subr.bf16.mxu0 %v2680
      %4028 = vmatpush1.bf16.msra.mxu0 %v2679
      %4029 = vmatprep.subr.bf16.mxu0 %v2688
      %4030 = vmatpush1.bf16.msra.mxu0 %v2687
      %4031 = vmatprep.subr.bf16.mxu0 %v2696
      %4032 = vmatpush1.bf16.msra.mxu0 %v2695
      %4033 = vmatprep.subr.bf16.mxu0 %v2704
      %4034 = vmatpush1.bf16.msra.mxu0 %v2703
      %4035 = vmatprep.subr.bf16.mxu0 %v2712
      %4036 = vmatpush1.bf16.msra.mxu0 %v2711
      %4037 = vmatprep.subr.bf16.mxu0 %v2720
      %4038 = vmatpush1.bf16.msra.mxu0 %v2719
      %4039 = vmatprep.subr.bf16.mxu0 %v2728
      %4040 = vmatpush1.bf16.msra.mxu0 %v2727
      %4041 = vmatprep.subr.bf16.mxu0 %v2736
      %4042 = vmatpush1.bf16.msra.mxu0 %v2735
      %4043 = vmatprep.subr.bf16.mxu0 %v2744
      %4044 = vmatpush1.bf16.msra.mxu0 %v2743
      %4045 = vmatprep.subr.bf16.mxu0 %v2752
      %4046 = vmatpush1.bf16.msra.mxu0 %v2751
      %4047 = vmatprep.subr.bf16.mxu0 %v2760
      %4048 = vmatpush1.bf16.msra.mxu0 %v2759
      %4049 = vmatprep.subr.bf16.mxu0 %v2768
      %4050 = vmatpush1.bf16.msra.mxu0 %v2767
      %4051 = vmatprep.subr.bf16.mxu0 %v2776
      %4052 = vmatpush1.bf16.msra.mxu0 %v2775
      %4053 = vmatprep.subr.bf16.mxu0 %v2784
      %4054 = vmatpush1.bf16.msra.mxu0 %v2783
      %4055 = vmatprep.subr.bf16.mxu0 %v2792
      %4056 = vmatpush1.bf16.msra.mxu0 %v2791
      %4057 = vmatprep.subr.bf16.mxu0 %v2800
      %4058 = vmatpush1.bf16.msra.mxu0 %v2799
      %4059 = vmatprep.mubr.bf16.mxu0 %v578
      %4060 = vmatmul.mubr.bf16.gmra.mrb[0].mxu0 %v577
      %v4061 = vpop.f32.mrb[0].mxu0
      %v4062 = vadd.f32 %v1118, %v4061
      %v4063 = vpop.f32.mrb[0].mxu0
      %v4064 = vadd.f32 %v1122, %v4063
      %v4065 = vpop.f32.mrb[0].mxu0
      %v4066 = vpop.f32.mrb[0].mxu0
      %4067 = vdwg.mxu0
      %4068 = vmatprep.subr.bf16.mxu0 %v2808
      %4069 = vmatpush1.bf16.msra.mxu0 %v2807
      %4070 = vmatprep.subr.bf16.mxu0 %v2816
      %4071 = vmatpush1.bf16.msra.mxu0 %v2815
      %4072 = vmatprep.subr.bf16.mxu0 %v2824
      %4073 = vmatpush1.bf16.msra.mxu0 %v2823
      %4074 = vmatprep.subr.bf16.mxu0 %v2832
      %4075 = vmatpush1.bf16.msra.mxu0 %v2831
      %4076 = vmatprep.subr.bf16.mxu0 %v2840
      %4077 = vmatpush1.bf16.msra.mxu0 %v2839
      %4078 = vmatprep.subr.bf16.mxu0 %v2848
      %4079 = vmatpush1.bf16.msra.mxu0 %v2847
      %4080 = vmatprep.subr.bf16.mxu0 %v2856
      %4081 = vmatpush1.bf16.msra.mxu0 %v2855
      %4082 = vmatprep.subr.bf16.mxu0 %v2864
      %4083 = vmatpush1.bf16.msra.mxu0 %v2863
      %4084 = vmatprep.subr.bf16.mxu0 %v2872
      %4085 = vmatpush1.bf16.msra.mxu0 %v2871
      %4086 = vmatprep.subr.bf16.mxu0 %v2880
      %4087 = vmatpush1.bf16.msra.mxu0 %v2879
      %4088 = vmatprep.subr.bf16.mxu0 %v2888
      %4089 = vmatpush1.bf16.msra.mxu0 %v2887
      %4090 = vmatprep.subr.bf16.mxu0 %v2896
      %4091 = vmatpush1.bf16.msra.mxu0 %v2895
      %4092 = vmatprep.subr.bf16.mxu0 %v2904
      %4093 = vmatpush1.bf16.msra.mxu0 %v2903
      %4094 = vmatprep.subr.bf16.mxu0 %v2912
      %4095 = vmatpush1.bf16.msra.mxu0 %v2911
      %4096 = vmatprep.subr.bf16.mxu0 %v2920
      %4097 = vmatpush1.bf16.msra.mxu0 %v2919
      %4098 = vmatprep.subr.bf16.mxu0 %v2928
      %4099 = vmatpush1.bf16.msra.mxu0 %v2927
      %4100 = vmatprep.mubr.bf16.mxu0 %v580
      %4101 = vmatmul.mubr.bf16.gmra.mrb[0].mxu0 %v579
      %v4102 = vpop.f32.mrb[0].mxu0
      %v4103 = vadd.f32 %v4062, %v4102
      %v4104 = vpop.f32.mrb[0].mxu0
      %v4105 = vadd.f32 %v4064, %v4104
      %v4106 = vpop.f32.mrb[0].mxu0
      %v4107 = vpop.f32.mrb[0].mxu0
      %4108 = vdwg.mxu0
      %4109 = vmatprep.subr.bf16.mxu0 %v2936
      %4110 = vmatpush1.bf16.msra.mxu0 %v2935
      %4111 = vmatprep.subr.bf16.mxu0 %v2944
      %4112 = vmatpush1.bf16.msra.mxu0 %v2943
      %4113 = vmatprep.subr.bf16.mxu0 %v2952
      %4114 = vmatpush1.bf16.msra.mxu0 %v2951
      %4115 = vmatprep.subr.bf16.mxu0 %v2960
      %4116 = vmatpush1.bf16.msra.mxu0 %v2959
      %4117 = vmatprep.subr.bf16.mxu0 %v2968
      %4118 = vmatpush1.bf16.msra.mxu0 %v2967
      %4119 = vmatprep.subr.bf16.mxu0 %v2976
      %4120 = vmatpush1.bf16.msra.mxu0 %v2975
      %4121 = vmatprep.subr.bf16.mxu0 %v2984
      %4122 = vmatpush1.bf16.msra.mxu0 %v2983
      %4123 = vmatprep.subr.bf16.mxu0 %v2992
      %4124 = vmatpush1.bf16.msra.mxu0 %v2991
      %4125 = vmatprep.subr.bf16.mxu0 %v3000
      %4126 = vmatpush1.bf16.msra.mxu0 %v2999
      %4127 = vmatprep.subr.bf16.mxu0 %v3008
      %4128 = vmatpush1.bf16.msra.mxu0 %v3007
      %4129 = vmatprep.subr.bf16.mxu0 %v3016
      %4130 = vmatpush1.bf16.msra.mxu0 %v3015
      %4131 = vmatprep.subr.bf16.mxu0 %v3024
      %4132 = vmatpush1.bf16.msra.mxu0 %v3023
      %4133 = vmatprep.subr.bf16.mxu0 %v3032
      %4134 = vmatpush1.bf16.msra.mxu0 %v3031
      %4135 = vmatprep.subr.bf16.mxu0 %v3040
      %4136 = vmatpush1.bf16.msra.mxu0 %v3039
      %4137 = vmatprep.subr.bf16.mxu0 %v3048
      %4138 = vmatpush1.bf16.msra.mxu0 %v3047
      %4139 = vmatprep.subr.bf16.mxu0 %v3056
      %4140 = vmatpush1.bf16.msra.mxu0 %v3055
      %4141 = vmatprep.mubr.bf16.mxu0 %v582
      %4142 = vmatmul.mubr.bf16.gmra.mrb[0].mxu0 %v581
      %v4143 = vpop.f32.mrb[0].mxu0
      %v4144 = vadd.f32 %v4103, %v4143
      %v4145 = vpop.f32.mrb[0].mxu0
      %v4146 = vadd.f32 %v4105, %v4145
      %v4147 = vpop.f32.mrb[0].mxu0
      %v4148 = vpop.f32.mrb[0].mxu0
      %4149 = vdwg.mxu0
      %4150 = vmatprep.subr.bf16.mxu0 %v3064
      %4151 = vmatpush1.bf16.msra.mxu0 %v3063
      %4152 = vmatprep.subr.bf16.mxu0 %v3072
      %4153 = vmatpush1.bf16.msra.mxu0 %v3071
      %4154 = vmatprep.subr.bf16.mxu0 %v3080
      %4155 = vmatpush1.bf16.msra.mxu0 %v3079
      %4156 = vmatprep.subr.bf16.mxu0 %v3088
      %4157 = vmatpush1.bf16.msra.mxu0 %v3087
      %4158 = vmatprep.subr.bf16.mxu0 %v3096
      %4159 = vmatpush1.bf16.msra.mxu0 %v3095
      %4160 = vmatprep.subr.bf16.mxu0 %v3104
      %4161 = vmatpush1.bf16.msra.mxu0 %v3103
      %4162 = vmatprep.subr.bf16.mxu0 %v3112
      %4163 = vmatpush1.bf16.msra.mxu0 %v3111
      %4164 = vmatprep.subr.bf16.mxu0 %v3120
      %4165 = vmatpush1.bf16.msra.mxu0 %v3119
      %4166 = vmatprep.subr.bf16.mxu0 %v3128
      %4167 = vmatpush1.bf16.msra.mxu0 %v3127
      %4168 = vmatprep.subr.bf16.mxu0 %v3136
      %4169 = vmatpush1.bf16.msra.mxu0 %v3135
      %4170 = vmatprep.subr.bf16.mxu0 %v3144
      %4171 = vmatpush1.bf16.msra.mxu0 %v3143
      %4172 = vmatprep.subr.bf16.mxu0 %v3152
      %4173 = vmatpush1.bf16.msra.mxu0 %v3151
      %4174 = vmatprep.subr.bf16.mxu0 %v3160
      %4175 = vmatpush1.bf16.msra.mxu0 %v3159
      %4176 = vmatprep.subr.bf16.mxu0 %v3168
      %4177 = vmatpush1.bf16.msra.mxu0 %v3167
      %4178 = vmatprep.subr.bf16.mxu0 %v3176
      %4179 = vmatpush1.bf16.msra.mxu0 %v3175
      %4180 = vmatprep.subr.bf16.mxu0 %v3184
      %4181 = vmatpush1.bf16.msra.mxu0 %v3183
      %4182 = vmatprep.mubr.bf16.mxu0 %v584
      %4183 = vmatmul.mubr.bf16.gmra.mrb[0].mxu0 %v583
      %v4184 = vpop.f32.mrb[0].mxu0
      %v4185 = vadd.f32 %v4144, %v4184
      %v4186 = vpop.f32.mrb[0].mxu0
      %v4187 = vadd.f32 %v4146, %v4186
      %v4188 = vpop.f32.mrb[0].mxu0
      %v4189 = vpop.f32.mrb[0].mxu0
      %4190 = vdwg.mxu0
      %4191 = vmatprep.subr.bf16.mxu0 %v2682
      %4192 = vmatpush1.bf16.msra.mxu0 %v2681
      %4193 = vmatprep.subr.bf16.mxu0 %v2690
      %4194 = vmatpush1.bf16.msra.mxu0 %v2689
      %4195 = vmatprep.subr.bf16.mxu0 %v2698
      %4196 = vmatpush1.bf16.msra.mxu0 %v2697
      %4197 = vmatprep.subr.bf16.mxu0 %v2706
      %4198 = vmatpush1.bf16.msra.mxu0 %v2705
      %4199 = vmatprep.subr.bf16.mxu0 %v2714
      %4200 = vmatpush1.bf16.msra.mxu0 %v2713
      %4201 = vmatprep.subr.bf16.mxu0 %v2722
      %4202 = vmatpush1.bf16.msra.mxu0 %v2721
      %4203 = vmatprep.subr.bf16.mxu0 %v2730
      %4204 = vmatpush1.bf16.msra.mxu0 %v2729
      %4205 = vmatprep.subr.bf16.mxu0 %v2738
      %4206 = vmatpush1.bf16.msra.mxu0 %v2737
      %4207 = vmatprep.subr.bf16.mxu0 %v2746
      %4208 = vmatpush1.bf16.msra.mxu0 %v2745
      %4209 = vmatprep.subr.bf16.mxu0 %v2754
      %4210 = vmatpush1.bf16.msra.mxu0 %v2753
      %4211 = vmatprep.subr.bf16.mxu0 %v2762
      %4212 = vmatpush1.bf16.msra.mxu0 %v2761
      %4213 = vmatprep.subr.bf16.mxu0 %v2770
      %4214 = vmatpush1.bf16.msra.mxu0 %v2769
      %4215 = vmatprep.subr.bf16.mxu0 %v2778
      %4216 = vmatpush1.bf16.msra.mxu0 %v2777
      %4217 = vmatprep.subr.bf16.mxu0 %v2786
      %4218 = vmatpush1.bf16.msra.mxu0 %v2785
      %4219 = vmatprep.subr.bf16.mxu0 %v2794
      %4220 = vmatpush1.bf16.msra.mxu0 %v2793
      %4221 = vmatprep.subr.bf16.mxu0 %v2802
      %4222 = vmatpush1.bf16.msra.mxu0 %v2801
      %4223 = vmatprep.mubr.bf16.mxu0 %v578
      %4224 = vmatmul.mubr.bf16.gmra.mrb[0].mxu0 %v577
      %v4225 = vpop.f32.mrb[0].mxu0
      %v4226 = vadd.f32 %v1126, %v4225
      %v4227 = vpop.f32.mrb[0].mxu0
      %v4228 = vadd.f32 %v1130, %v4227
      %v4229 = vpop.f32.mrb[0].mxu0
      %v4230 = vpop.f32.mrb[0].mxu0
      %4231 = vdwg.mxu0
      %4232 = vmatprep.subr.bf16.mxu0 %v2810
      %4233 = vmatpush1.bf16.msra.mxu0 %v2809
      %4234 = vmatprep.subr.bf16.mxu0 %v2818
      %4235 = vmatpush1.bf16.msra.mxu0 %v2817
      %4236 = vmatprep.subr.bf16.mxu0 %v2826
      %4237 = vmatpush1.bf16.msra.mxu0 %v2825
      %4238 = vmatprep.subr.bf16.mxu0 %v2834
      %4239 = vmatpush1.bf16.msra.mxu0 %v2833
      %4240 = vmatprep.subr.bf16.mxu0 %v2842
      %4241 = vmatpush1.bf16.msra.mxu0 %v2841
      %4242 = vmatprep.subr.bf16.mxu0 %v2850
      %4243 = vmatpush1.bf16.msra.mxu0 %v2849
      %4244 = vmatprep.subr.bf16.mxu0 %v2858
      %4245 = vmatpush1.bf16.msra.mxu0 %v2857
      %4246 = vmatprep.subr.bf16.mxu0 %v2866
      %4247 = vmatpush1.bf16.msra.mxu0 %v2865
      %4248 = vmatprep.subr.bf16.mxu0 %v2874
      %4249 = vmatpush1.bf16.msra.mxu0 %v2873
      %4250 = vmatprep.subr.bf16.mxu0 %v2882
      %4251 = vmatpush1.bf16.msra.mxu0 %v2881
      %4252 = vmatprep.subr.bf16.mxu0 %v2890
      %4253 = vmatpush1.bf16.msra.mxu0 %v2889
      %4254 = vmatprep.subr.bf16.mxu0 %v2898
      %4255 = vmatpush1.bf16.msra.mxu0 %v2897
      %4256 = vmatprep.subr.bf16.mxu0 %v2906
      %4257 = vmatpush1.bf16.msra.mxu0 %v2905
      %4258 = vmatprep.subr.bf16.mxu0 %v2914
      %4259 = vmatpush1.bf16.msra.mxu0 %v2913
      %4260 = vmatprep.subr.bf16.mxu0 %v2922
      %4261 = vmatpush1.bf16.msra.mxu0 %v2921
      %4262 = vmatprep.subr.bf16.mxu0 %v2930
      %4263 = vmatpush1.bf16.msra.mxu0 %v2929
      %4264 = vmatprep.mubr.bf16.mxu0 %v580
      %4265 = vmatmul.mubr.bf16.gmra.mrb[0].mxu0 %v579
      %v4266 = vpop.f32.mrb[0].mxu0
      %v4267 = vadd.f32 %v4226, %v4266
      %v4268 = vpop.f32.mrb[0].mxu0
      %v4269 = vadd.f32 %v4228, %v4268
      %v4270 = vpop.f32.mrb[0].mxu0
      %v4271 = vpop.f32.mrb[0].mxu0
      %4272 = vdwg.mxu0
      %4273 = vmatprep.subr.bf16.mxu0 %v2938
      %4274 = vmatpush1.bf16.msra.mxu0 %v2937
      %4275 = vmatprep.subr.bf16.mxu0 %v2946
      %4276 = vmatpush1.bf16.msra.mxu0 %v2945
      %4277 = vmatprep.subr.bf16.mxu0 %v2954
      %4278 = vmatpush1.bf16.msra.mxu0 %v2953
      %4279 = vmatprep.subr.bf16.mxu0 %v2962
      %4280 = vmatpush1.bf16.msra.mxu0 %v2961
      %4281 = vmatprep.subr.bf16.mxu0 %v2970
      %4282 = vmatpush1.bf16.msra.mxu0 %v2969
      %4283 = vmatprep.subr.bf16.mxu0 %v2978
      %4284 = vmatpush1.bf16.msra.mxu0 %v2977
      %4285 = vmatprep.subr.bf16.mxu0 %v2986
      %4286 = vmatpush1.bf16.msra.mxu0 %v2985
      %4287 = vmatprep.subr.bf16.mxu0 %v2994
      %4288 = vmatpush1.bf16.msra.mxu0 %v2993
      %4289 = vmatprep.subr.bf16.mxu0 %v3002
      %4290 = vmatpush1.bf16.msra.mxu0 %v3001
      %4291 = vmatprep.subr.bf16.mxu0 %v3010
      %4292 = vmatpush1.bf16.msra.mxu0 %v3009
      %4293 = vmatprep.subr.bf16.mxu0 %v3018
      %4294 = vmatpush1.bf16.msra.mxu0 %v3017
      %4295 = vmatprep.subr.bf16.mxu0 %v3026
      %4296 = vmatpush1.bf16.msra.mxu0 %v3025
      %4297 = vmatprep.subr.bf16.mxu0 %v3034
      %4298 = vmatpush1.bf16.msra.mxu0 %v3033
      %4299 = vmatprep.subr.bf16.mxu0 %v3042
      %4300 = vmatpush1.bf16.msra.mxu0 %v3041
      %4301 = vmatprep.subr.bf16.mxu0 %v3050
      %4302 = vmatpush1.bf16.msra.mxu0 %v3049
      %4303 = vmatprep.subr.bf16.mxu0 %v3058
      %4304 = vmatpush1.bf16.msra.mxu0 %v3057
      %4305 = vmatprep.mubr.bf16.mxu0 %v582
      %4306 = vmatmul.mubr.bf16.gmra.mrb[0].mxu0 %v581
      %v4307 = vpop.f32.mrb[0].mxu0
      %v4308 = vadd.f32 %v4267, %v4307
      %v4309 = vpop.f32.mrb[0].mxu0
      %v4310 = vadd.f32 %v4269, %v4309
      %v4311 = vpop.f32.mrb[0].mxu0
      %v4312 = vpop.f32.mrb[0].mxu0
      %4313 = vdwg.mxu0
      %4314 = vmatprep.subr.bf16.mxu0 %v3066
      %4315 = vmatpush1.bf16.msra.mxu0 %v3065
      %4316 = vmatprep.subr.bf16.mxu0 %v3074
      %4317 = vmatpush1.bf16.msra.mxu0 %v3073
      %4318 = vmatprep.subr.bf16.mxu0 %v3082
      %4319 = vmatpush1.bf16.msra.mxu0 %v3081
      %4320 = vmatprep.subr.bf16.mxu0 %v3090
      %4321 = vmatpush1.bf16.msra.mxu0 %v3089
      %4322 = vmatprep.subr.bf16.mxu0 %v3098
      %4323 = vmatpush1.bf16.msra.mxu0 %v3097
      %4324 = vmatprep.subr.bf16.mxu0 %v3106
      %4325 = vmatpush1.bf16.msra.mxu0 %v3105
      %4326 = vmatprep.subr.bf16.mxu0 %v3114
      %4327 = vmatpush1.bf16.msra.mxu0 %v3113
      %4328 = vmatprep.subr.bf16.mxu0 %v3122
      %4329 = vmatpush1.bf16.msra.mxu0 %v3121
      %4330 = vmatprep.subr.bf16.mxu0 %v3130
      %4331 = vmatpush1.bf16.msra.mxu0 %v3129
      %4332 = vmatprep.subr.bf16.mxu0 %v3138
      %4333 = vmatpush1.bf16.msra.mxu0 %v3137
      %4334 = vmatprep.subr.bf16.mxu0 %v3146
      %4335 = vmatpush1.bf16.msra.mxu0 %v3145
      %4336 = vmatprep.subr.bf16.mxu0 %v3154
      %4337 = vmatpush1.bf16.msra.mxu0 %v3153
      %4338 = vmatprep.subr.bf16.mxu0 %v3162
      %4339 = vmatpush1.bf16.msra.mxu0 %v3161
      %4340 = vmatprep.subr.bf16.mxu0 %v3170
      %4341 = vmatpush1.bf16.msra.mxu0 %v3169
      %4342 = vmatprep.subr.bf16.mxu0 %v3178
      %4343 = vmatpush1.bf16.msra.mxu0 %v3177
      %4344 = vmatprep.subr.bf16.mxu0 %v3186
      %4345 = vmatpush1.bf16.msra.mxu0 %v3185
      %4346 = vmatprep.mubr.bf16.mxu0 %v584
      %4347 = vmatmul.mubr.bf16.gmra.mrb[0].mxu0 %v583
      %v4348 = vpop.f32.mrb[0].mxu0
      %v4349 = vadd.f32 %v4308, %v4348
      %v4350 = vpop.f32.mrb[0].mxu0
      %v4351 = vadd.f32 %v4310, %v4350
      %v4352 = vpop.f32.mrb[0].mxu0
      %v4353 = vpop.f32.mrb[0].mxu0
      %4354 = vdwg.mxu0
      %v4355 = vrot.slane %v3857, 4
      %v4356 = vmax.f32 %v3857, %v4355
      %v4357 = vrot.slane %v4356, 2
      %v4358 = vmax.f32 %v4356, %v4357
      %v4359 = vrot.slane %v4358, 1
      %v4360 = vmax.f32 %v4358, %v4359
      %v4361 = vrot.slane %v3859, 4
      %v4362 = vmax.f32 %v3859, %v4361
      %v4363 = vrot.slane %v4362, 2
      %v4364 = vmax.f32 %v4362, %v4363
      %v4365 = vrot.slane %v4364, 1
      %v4366 = vmax.f32 %v4364, %v4365
      %v4367 = vrot.slane %v4021, 4
      %v4368 = vmax.f32 %v4021, %v4367
      %v4369 = vrot.slane %v4368, 2
      %v4370 = vmax.f32 %v4368, %v4369
      %v4371 = vrot.slane %v4370, 1
      %v4372 = vmax.f32 %v4370, %v4371
      %v4373 = vrot.slane %v4023, 4
      %v4374 = vmax.f32 %v4023, %v4373
      %v4375 = vrot.slane %v4374, 2
      %v4376 = vmax.f32 %v4374, %v4375
      %v4377 = vrot.slane %v4376, 1
      %v4378 = vmax.f32 %v4376, %v4377
      %v4379 = vrot.slane %v4185, 4
      %v4380 = vmax.f32 %v4185, %v4379
      %v4381 = vrot.slane %v4380, 2
      %v4382 = vmax.f32 %v4380, %v4381
      %v4383 = vrot.slane %v4382, 1
      %v4384 = vmax.f32 %v4382, %v4383
      %v4385 = vrot.slane %v4187, 4
      %v4386 = vmax.f32 %v4187, %v4385
      %v4387 = vrot.slane %v4386, 2
      %v4388 = vmax.f32 %v4386, %v4387
      %v4389 = vrot.slane %v4388, 1
      %v4390 = vmax.f32 %v4388, %v4389
      %v4391 = vrot.slane %v4349, 4
      %v4392 = vmax.f32 %v4349, %v4391
      %v4393 = vrot.slane %v4392, 2
      %v4394 = vmax.f32 %v4392, %v4393
      %v4395 = vrot.slane %v4394, 1
      %v4396 = vmax.f32 %v4394, %v4395
      %v4397 = vrot.slane %v4351, 4
      %v4398 = vmax.f32 %v4351, %v4397
      %v4399 = vrot.slane %v4398, 2
      %v4400 = vmax.f32 %v4398, %v4399
      %v4401 = vrot.slane %v4400, 1
      %v4402 = vmax.f32 %v4400, %v4401
      %v4403 = vpack.c.bf16 %v4360, %v4360
      %v4404 = vpack.c.bf16 %v4366, %v4366
      %v4405 = vpack.c.bf16 %v4372, %v4372
      %v4406 = vpack.c.bf16 %v4378, %v4378
      %v4407 = vpack.c.bf16 %v4384, %v4384
      %v4408 = vpack.c.bf16 %v4390, %v4390
      %v4409 = vpack.c.bf16 %v4396, %v4396
      %v4410 = vpack.c.bf16 %v4402, %v4402
      %v4411 = vld [vmem:[%s5] sm:$0xf]
      %v4412 = vld [vmem:[%s5 + $0x4] sm:$0xf]
      %v4413 = vld [vmem:[%s5 + $0x8] sm:$0xf]
      %v4414 = vld [vmem:[%s5 + $0xc] sm:$0xf]
      %v4415 = vld [vmem:[%s5 + $0x10] sm:$0xf]
      %v4416 = vld [vmem:[%s5 + $0x14] sm:$0xf]
      %v4417 = vld [vmem:[%s5 + $0x18] sm:$0xf]
      %v4418 = vld [vmem:[%s5 + $0x1c] sm:$0xf]
      %v4419 = vld [vmem:[%s5 + $0x20] sm:$0xf]
      %v4420 = vld [vmem:[%s5 + $0x24] sm:$0xf]
      %v4421 = vld [vmem:[%s5 + $0x28] sm:$0xf]
      %v4422 = vld [vmem:[%s5 + $0x2c] sm:$0xf]
      %v4423 = vld [vmem:[%s5 + $0x30] sm:$0xf]
      %v4424 = vld [vmem:[%s5 + $0x34] sm:$0xf]
      %v4425 = vld [vmem:[%s5 + $0x38] sm:$0xf]
      %v4426 = vld [vmem:[%s5 + $0x3c] sm:$0xf]
      %v4427 = vld [vmem:[%s5 + $0x40] sm:$0xf]
      %v4428 = vld [vmem:[%s5 + $0x44] sm:$0xf]
      %v4429 = vld [vmem:[%s5 + $0x48] sm:$0xf]
      %v4430 = vld [vmem:[%s5 + $0x4c] sm:$0xf]
      %v4431 = vld [vmem:[%s5 + $0x50] sm:$0xf]
      %v4432 = vld [vmem:[%s5 + $0x54] sm:$0xf]
      %v4433 = vld [vmem:[%s5 + $0x58] sm:$0xf]
      %v4434 = vld [vmem:[%s5 + $0x5c] sm:$0xf]
      %v4435 = vld [vmem:[%s5 + $0x60] sm:$0xf]
      %v4436 = vld [vmem:[%s5 + $0x64] sm:$0xf]
      %v4437 = vld [vmem:[%s5 + $0x68] sm:$0xf]
      %v4438 = vld [vmem:[%s5 + $0x6c] sm:$0xf]
      %v4439 = vld [vmem:[%s5 + $0x70] sm:$0xf]
      %v4440 = vld [vmem:[%s5 + $0x74] sm:$0xf]
      %v4441 = vld [vmem:[%s5 + $0x78] sm:$0xf]
      %v4442 = vld [vmem:[%s5 + $0x7c] sm:$0xf]
      %v4443 = vld [vmem:[%s5 + $0x80] sm:$0xf]
      %v4444 = vld [vmem:[%s5 + $0x84] sm:$0xf]
      %v4445 = vld [vmem:[%s5 + $0x88] sm:$0xf]
      %v4446 = vld [vmem:[%s5 + $0x8c] sm:$0xf]
      %v4447 = vld [vmem:[%s5 + $0x90] sm:$0xf]
      %v4448 = vld [vmem:[%s5 + $0x94] sm:$0xf]
      %v4449 = vld [vmem:[%s5 + $0x98] sm:$0xf]
      %v4450 = vld [vmem:[%s5 + $0x9c] sm:$0xf]
      %v4451 = vld [vmem:[%s5 + $0xa0] sm:$0xf]
      %v4452 = vld [vmem:[%s5 + $0xa4] sm:$0xf]
      %v4453 = vld [vmem:[%s5 + $0xa8] sm:$0xf]
      %v4454 = vld [vmem:[%s5 + $0xac] sm:$0xf]
      %v4455 = vld [vmem:[%s5 + $0xb0] sm:$0xf]
      %v4456 = vld [vmem:[%s5 + $0xb4] sm:$0xf]
      %v4457 = vld [vmem:[%s5 + $0xb8] sm:$0xf]
      %v4458 = vld [vmem:[%s5 + $0xbc] sm:$0xf]
      %v4459 = vld [vmem:[%s5 + $0xc0] sm:$0xf]
      %v4460 = vld [vmem:[%s5 + $0xc4] sm:$0xf]
      %v4461 = vld [vmem:[%s5 + $0xc8] sm:$0xf]
      %v4462 = vld [vmem:[%s5 + $0xcc] sm:$0xf]
      %v4463 = vld [vmem:[%s5 + $0xd0] sm:$0xf]
      %v4464 = vld [vmem:[%s5 + $0xd4] sm:$0xf]
      %v4465 = vld [vmem:[%s5 + $0xd8] sm:$0xf]
      %v4466 = vld [vmem:[%s5 + $0xdc] sm:$0xf]
      %v4467 = vld [vmem:[%s5 + $0xe0] sm:$0xf]
      %v4468 = vld [vmem:[%s5 + $0xe4] sm:$0xf]
      %v4469 = vld [vmem:[%s5 + $0xe8] sm:$0xf]
      %v4470 = vld [vmem:[%s5 + $0xec] sm:$0xf]
      %v4471 = vld [vmem:[%s5 + $0xf0] sm:$0xf]
      %v4472 = vld [vmem:[%s5 + $0xf4] sm:$0xf]
      %v4473 = vld [vmem:[%s5 + $0xf8] sm:$0xf]
      %v4474 = vld [vmem:[%s5 + $0xfc] sm:$0xf]
      %v4475 = vld [vmem:[%s5 + $0x100] sm:$0xf]
      %v4476 = vld [vmem:[%s5 + $0x104] sm:$0xf]
      %v4477 = vld [vmem:[%s5 + $0x108] sm:$0xf]
      %v4478 = vld [vmem:[%s5 + $0x10c] sm:$0xf]
      %v4479 = vld [vmem:[%s5 + $0x110] sm:$0xf]
      %v4480 = vld [vmem:[%s5 + $0x114] sm:$0xf]
      %v4481 = vld [vmem:[%s5 + $0x118] sm:$0xf]
      %v4482 = vld [vmem:[%s5 + $0x11c] sm:$0xf]
      %v4483 = vld [vmem:[%s5 + $0x120] sm:$0xf]
      %v4484 = vld [vmem:[%s5 + $0x124] sm:$0xf]
      %v4485 = vld [vmem:[%s5 + $0x128] sm:$0xf]
      %v4486 = vld [vmem:[%s5 + $0x12c] sm:$0xf]
      %v4487 = vld [vmem:[%s5 + $0x130] sm:$0xf]
      %v4488 = vld [vmem:[%s5 + $0x134] sm:$0xf]
      %v4489 = vld [vmem:[%s5 + $0x138] sm:$0xf]
      %v4490 = vld [vmem:[%s5 + $0x13c] sm:$0xf]
      %v4491 = vld [vmem:[%s5 + $0x140] sm:$0xf]
      %v4492 = vld [vmem:[%s5 + $0x144] sm:$0xf]
      %v4493 = vld [vmem:[%s5 + $0x148] sm:$0xf]
      %v4494 = vld [vmem:[%s5 + $0x14c] sm:$0xf]
      %v4495 = vld [vmem:[%s5 + $0x150] sm:$0xf]
      %v4496 = vld [vmem:[%s5 + $0x154] sm:$0xf]
      %v4497 = vld [vmem:[%s5 + $0x158] sm:$0xf]
      %v4498 = vld [vmem:[%s5 + $0x15c] sm:$0xf]
      %v4499 = vld [vmem:[%s5 + $0x160] sm:$0xf]
      %v4500 = vld [vmem:[%s5 + $0x164] sm:$0xf]
      %v4501 = vld [vmem:[%s5 + $0x168] sm:$0xf]
      %v4502 = vld [vmem:[%s5 + $0x16c] sm:$0xf]
      %v4503 = vld [vmem:[%s5 + $0x170] sm:$0xf]
      %v4504 = vld [vmem:[%s5 + $0x174] sm:$0xf]
      %v4505 = vld [vmem:[%s5 + $0x178] sm:$0xf]
      %v4506 = vld [vmem:[%s5 + $0x17c] sm:$0xf]
      %v4507 = vld [vmem:[%s5 + $0x180] sm:$0xf]
      %v4508 = vld [vmem:[%s5 + $0x184] sm:$0xf]
      %v4509 = vld [vmem:[%s5 + $0x188] sm:$0xf]
      %v4510 = vld [vmem:[%s5 + $0x18c] sm:$0xf]
      %v4511 = vld [vmem:[%s5 + $0x190] sm:$0xf]
      %v4512 = vld [vmem:[%s5 + $0x194] sm:$0xf]
      %v4513 = vld [vmem:[%s5 + $0x198] sm:$0xf]
      %v4514 = vld [vmem:[%s5 + $0x19c] sm:$0xf]
      %v4515 = vld [vmem:[%s5 + $0x1a0] sm:$0xf]
      %v4516 = vld [vmem:[%s5 + $0x1a4] sm:$0xf]
      %v4517 = vld [vmem:[%s5 + $0x1a8] sm:$0xf]
      %v4518 = vld [vmem:[%s5 + $0x1ac] sm:$0xf]
      %v4519 = vld [vmem:[%s5 + $0x1b0] sm:$0xf]
      %v4520 = vld [vmem:[%s5 + $0x1b4] sm:$0xf]
      %v4521 = vld [vmem:[%s5 + $0x1b8] sm:$0xf]
      %v4522 = vld [vmem:[%s5 + $0x1bc] sm:$0xf]
      %v4523 = vld [vmem:[%s5 + $0x1c0] sm:$0xf]
      %v4524 = vld [vmem:[%s5 + $0x1c4] sm:$0xf]
      %v4525 = vld [vmem:[%s5 + $0x1c8] sm:$0xf]
      %v4526 = vld [vmem:[%s5 + $0x1cc] sm:$0xf]
      %v4527 = vld [vmem:[%s5 + $0x1d0] sm:$0xf]
      %v4528 = vld [vmem:[%s5 + $0x1d4] sm:$0xf]
      %v4529 = vld [vmem:[%s5 + $0x1d8] sm:$0xf]
      %v4530 = vld [vmem:[%s5 + $0x1dc] sm:$0xf]
      %v4531 = vld [vmem:[%s5 + $0x1e0] sm:$0xf]
      %v4532 = vld [vmem:[%s5 + $0x1e4] sm:$0xf]
      %v4533 = vld [vmem:[%s5 + $0x1e8] sm:$0xf]
      %v4534 = vld [vmem:[%s5 + $0x1ec] sm:$0xf]
      %v4535 = vld [vmem:[%s5 + $0x1f0] sm:$0xf]
      %v4536 = vld [vmem:[%s5 + $0x1f4] sm:$0xf]
      %v4537 = vld [vmem:[%s5 + $0x1f8] sm:$0xf]
      %v4538 = vld [vmem:[%s5 + $0x1fc] sm:$0xf]
      %v4667 = vunpack.c.l.b16 %v4411
      %v4668 = vunpack.c.l.b16 %v4412
      %v4669 = vunpack.c.l.b16 %v4413
      %v4670 = vunpack.c.l.b16 %v4414
      %v4671 = vunpack.c.l.b16 %v4415
      %v4672 = vunpack.c.l.b16 %v4416
      %v4673 = vunpack.c.l.b16 %v4417
      %v4674 = vunpack.c.l.b16 %v4418
      %v4675 = vunpack.c.l.b16 %v4419
      %v4676 = vunpack.c.l.b16 %v4420
      %v4677 = vunpack.c.l.b16 %v4421
      %v4678 = vunpack.c.l.b16 %v4422
      %v4679 = vunpack.c.l.b16 %v4423
      %v4680 = vunpack.c.l.b16 %v4424
      %v4681 = vunpack.c.l.b16 %v4425
      %v4682 = vunpack.c.l.b16 %v4426
      %v4683 = vunpack.c.l.b16 %v4427
      %v4684 = vunpack.c.l.b16 %v4428
      %v4685 = vunpack.c.l.b16 %v4429
      %v4686 = vunpack.c.l.b16 %v4430
      %v4687 = vunpack.c.l.b16 %v4431
      %v4688 = vunpack.c.l.b16 %v4432
      %v4689 = vunpack.c.l.b16 %v4433
      %v4690 = vunpack.c.l.b16 %v4434
      %v4691 = vunpack.c.l.b16 %v4435
      %v4692 = vunpack.c.l.b16 %v4436
      %v4693 = vunpack.c.l.b16 %v4437
      %v4694 = vunpack.c.l.b16 %v4438
      %v4695 = vunpack.c.l.b16 %v4439
      %v4696 = vunpack.c.l.b16 %v4440
      %v4697 = vunpack.c.l.b16 %v4441
      %v4698 = vunpack.c.l.b16 %v4442
      %v4699 = vunpack.c.l.b16 %v4443
      %v4700 = vunpack.c.l.b16 %v4444
      %v4701 = vunpack.c.l.b16 %v4445
      %v4702 = vunpack.c.l.b16 %v4446
      %v4703 = vunpack.c.l.b16 %v4447
      %v4704 = vunpack.c.l.b16 %v4448
      %v4705 = vunpack.c.l.b16 %v4449
      %v4706 = vunpack.c.l.b16 %v4450
      %v4707 = vunpack.c.l.b16 %v4451
      %v4708 = vunpack.c.l.b16 %v4452
      %v4709 = vunpack.c.l.b16 %v4453
      %v4710 = vunpack.c.l.b16 %v4454
      %v4711 = vunpack.c.l.b16 %v4455
      %v4712 = vunpack.c.l.b16 %v4456
      %v4713 = vunpack.c.l.b16 %v4457
      %v4714 = vunpack.c.l.b16 %v4458
      %v4715 = vunpack.c.l.b16 %v4459
      %v4716 = vunpack.c.l.b16 %v4460
      %v4717 = vunpack.c.l.b16 %v4461
      %v4718 = vunpack.c.l.b16 %v4462
      %v4719 = vunpack.c.l.b16 %v4463
      %v4720 = vunpack.c.l.b16 %v4464
      %v4721 = vunpack.c.l.b16 %v4465
      %v4722 = vunpack.c.l.b16 %v4466
      %v4723 = vunpack.c.l.b16 %v4467
      %v4724 = vunpack.c.l.b16 %v4468
      %v4725 = vunpack.c.l.b16 %v4469
      %v4726 = vunpack.c.l.b16 %v4470
      %v4727 = vunpack.c.l.b16 %v4471
      %v4728 = vunpack.c.l.b16 %v4472
      %v4729 = vunpack.c.l.b16 %v4473
      %v4730 = vunpack.c.l.b16 %v4474
      %v4731 = vunpack.c.l.b16 %v4475
      %v4732 = vunpack.c.l.b16 %v4476
      %v4733 = vunpack.c.l.b16 %v4477
      %v4734 = vunpack.c.l.b16 %v4478
      %v4735 = vunpack.c.l.b16 %v4479
      %v4736 = vunpack.c.l.b16 %v4480
      %v4737 = vunpack.c.l.b16 %v4481
      %v4738 = vunpack.c.l.b16 %v4482
      %v4739 = vunpack.c.l.b16 %v4483
      %v4740 = vunpack.c.l.b16 %v4484
      %v4741 = vunpack.c.l.b16 %v4485
      %v4742 = vunpack.c.l.b16 %v4486
      %v4743 = vunpack.c.l.b16 %v4487
      %v4744 = vunpack.c.l.b16 %v4488
      %v4745 = vunpack.c.l.b16 %v4489
      %v4746 = vunpack.c.l.b16 %v4490
      %v4747 = vunpack.c.l.b16 %v4491
      %v4748 = vunpack.c.l.b16 %v4492
      %v4749 = vunpack.c.l.b16 %v4493
      %v4750 = vunpack.c.l.b16 %v4494
      %v4751 = vunpack.c.l.b16 %v4495
      %v4752 = vunpack.c.l.b16 %v4496
      %v4753 = vunpack.c.l.b16 %v4497
      %v4754 = vunpack.c.l.b16 %v4498
      %v4755 = vunpack.c.l.b16 %v4499
      %v4756 = vunpack.c.l.b16 %v4500
      %v4757 = vunpack.c.l.b16 %v4501
      %v4758 = vunpack.c.l.b16 %v4502
      %v4759 = vunpack.c.l.b16 %v4503
      %v4760 = vunpack.c.l.b16 %v4504
      %v4761 = vunpack.c.l.b16 %v4505
      %v4762 = vunpack.c.l.b16 %v4506
      %v4763 = vunpack.c.l.b16 %v4507
      %v4764 = vunpack.c.l.b16 %v4508
      %v4765 = vunpack.c.l.b16 %v4509
      %v4766 = vunpack.c.l.b16 %v4510
      %v4767 = vunpack.c.l.b16 %v4511
      %v4768 = vunpack.c.l.b16 %v4512
      %v4769 = vunpack.c.l.b16 %v4513
      %v4770 = vunpack.c.l.b16 %v4514
      %v4771 = vunpack.c.l.b16 %v4515
      %v4772 = vunpack.c.l.b16 %v4516
      %v4773 = vunpack.c.l.b16 %v4517
      %v4774 = vunpack.c.l.b16 %v4518
      %v4775 = vunpack.c.l.b16 %v4519
      %v4776 = vunpack.c.l.b16 %v4520
      %v4777 = vunpack.c.l.b16 %v4521
      %v4778 = vunpack.c.l.b16 %v4522
      %v4779 = vunpack.c.l.b16 %v4523
      %v4780 = vunpack.c.l.b16 %v4524
      %v4781 = vunpack.c.l.b16 %v4525
      %v4782 = vunpack.c.l.b16 %v4526
      %v4783 = vunpack.c.l.b16 %v4527
      %v4784 = vunpack.c.l.b16 %v4528
      %v4785 = vunpack.c.l.b16 %v4529
      %v4786 = vunpack.c.l.b16 %v4530
      %v4787 = vunpack.c.l.b16 %v4531
      %v4788 = vunpack.c.l.b16 %v4532
      %v4789 = vunpack.c.l.b16 %v4533
      %v4790 = vunpack.c.l.b16 %v4534
      %v4791 = vunpack.c.l.b16 %v4535
      %v4792 = vunpack.c.l.b16 %v4536
      %v4793 = vunpack.c.l.b16 %v4537
      %v4794 = vunpack.c.l.b16 %v4538
      %v4795 = vpack.c.b16 %v4668, %v4667
      %v4796 = vpack.c.b16 %v4670, %v4669
      %v4797 = vpack.c.b16 %v4672, %v4671
      %v4798 = vpack.c.b16 %v4674, %v4673
      %v4799 = vpack.c.b16 %v4676, %v4675
      %v4800 = vpack.c.b16 %v4678, %v4677
      %v4801 = vpack.c.b16 %v4680, %v4679
      %v4802 = vpack.c.b16 %v4682, %v4681
      %v4803 = vpack.c.b16 %v4684, %v4683
      %v4804 = vpack.c.b16 %v4686, %v4685
      %v4805 = vpack.c.b16 %v4688, %v4687
      %v4806 = vpack.c.b16 %v4690, %v4689
      %v4807 = vpack.c.b16 %v4692, %v4691
      %v4808 = vpack.c.b16 %v4694, %v4693
      %v4809 = vpack.c.b16 %v4696, %v4695
      %v4810 = vpack.c.b16 %v4698, %v4697
      %v4811 = vpack.c.b16 %v4700, %v4699
      %v4812 = vpack.c.b16 %v4702, %v4701
      %v4813 = vpack.c.b16 %v4704, %v4703
      %v4814 = vpack.c.b16 %v4706, %v4705
      %v4815 = vpack.c.b16 %v4708, %v4707
      %v4816 = vpack.c.b16 %v4710, %v4709
      %v4817 = vpack.c.b16 %v4712, %v4711
      %v4818 = vpack.c.b16 %v4714, %v4713
      %v4819 = vpack.c.b16 %v4716, %v4715
      %v4820 = vpack.c.b16 %v4718, %v4717
      %v4821 = vpack.c.b16 %v4720, %v4719
      %v4822 = vpack.c.b16 %v4722, %v4721
      %v4823 = vpack.c.b16 %v4724, %v4723
      %v4824 = vpack.c.b16 %v4726, %v4725
      %v4825 = vpack.c.b16 %v4728, %v4727
      %v4826 = vpack.c.b16 %v4730, %v4729
      %v4827 = vpack.c.b16 %v4732, %v4731
      %v4828 = vpack.c.b16 %v4734, %v4733
      %v4829 = vpack.c.b16 %v4736, %v4735
      %v4830 = vpack.c.b16 %v4738, %v4737
      %v4831 = vpack.c.b16 %v4740, %v4739
      %v4832 = vpack.c.b16 %v4742, %v4741
      %v4833 = vpack.c.b16 %v4744, %v4743
      %v4834 = vpack.c.b16 %v4746, %v4745
      %v4835 = vpack.c.b16 %v4748, %v4747
      %v4836 = vpack.c.b16 %v4750, %v4749
      %v4837 = vpack.c.b16 %v4752, %v4751
      %v4838 = vpack.c.b16 %v4754, %v4753
      %v4839 = vpack.c.b16 %v4756, %v4755
      %v4840 = vpack.c.b16 %v4758, %v4757
      %v4841 = vpack.c.b16 %v4760, %v4759
      %v4842 = vpack.c.b16 %v4762, %v4761
      %v4843 = vpack.c.b16 %v4764, %v4763
      %v4844 = vpack.c.b16 %v4766, %v4765
      %v4845 = vpack.c.b16 %v4768, %v4767
      %v4846 = vpack.c.b16 %v4770, %v4769
      %v4847 = vpack.c.b16 %v4772, %v4771
      %v4848 = vpack.c.b16 %v4774, %v4773
      %v4849 = vpack.c.b16 %v4776, %v4775
      %v4850 = vpack.c.b16 %v4778, %v4777
      %v4851 = vpack.c.b16 %v4780, %v4779
      %v4852 = vpack.c.b16 %v4782, %v4781
      %v4853 = vpack.c.b16 %v4784, %v4783
      %v4854 = vpack.c.b16 %v4786, %v4785
      %v4855 = vpack.c.b16 %v4788, %v4787
      %v4856 = vpack.c.b16 %v4790, %v4789
      %v4857 = vpack.c.b16 %v4792, %v4791
      %v4858 = vpack.c.b16 %v4794, %v4793
      %4923 = vmatprep.subr.bf16.mxu0 0
      %4924 = vmatpush1.bf16.msra.mxu0 %v4795
      %4925 = vmatprep.subr.bf16.mxu0 0
      %4926 = vmatpush1.bf16.msra.mxu0 %v4796
      %4927 = vmatprep.subr.bf16.mxu0 0
      %4928 = vmatpush1.bf16.msra.mxu0 %v4797
      %4929 = vmatprep.subr.bf16.mxu0 0
      %4930 = vmatpush1.bf16.msra.mxu0 %v4798
      %4931 = vmatprep.subr.bf16.mxu0 0
      %4932 = vmatpush1.bf16.msra.mxu0 %v4799
      %4933 = vmatprep.subr.bf16.mxu0 0
      %4934 = vmatpush1.bf16.msra.mxu0 %v4800
      %4935 = vmatprep.subr.bf16.mxu0 0
      %4936 = vmatpush1.bf16.msra.mxu0 %v4801
      %4937 = vmatprep.subr.bf16.mxu0 0
      %4938 = vmatpush1.bf16.msra.mxu0 %v4802
      %4939 = vmatprep.subr.bf16.mxu0 0
      %4940 = vmatpush1.bf16.msra.mxu0 %v4803
      %4941 = vmatprep.subr.bf16.mxu0 0
      %4942 = vmatpush1.bf16.msra.mxu0 %v4804
      %4943 = vmatprep.subr.bf16.mxu0 0
      %4944 = vmatpush1.bf16.msra.mxu0 %v4805
      %4945 = vmatprep.subr.bf16.mxu0 0
      %4946 = vmatpush1.bf16.msra.mxu0 %v4806
      %4947 = vmatprep.subr.bf16.mxu0 0
      %4948 = vmatpush1.bf16.msra.mxu0 %v4807
      %4949 = vmatprep.subr.bf16.mxu0 0
      %4950 = vmatpush1.bf16.msra.mxu0 %v4808
      %4951 = vmatprep.subr.bf16.mxu0 0
      %4952 = vmatpush1.bf16.msra.mxu0 %v4809
      %4953 = vmatprep.subr.bf16.mxu0 0
      %4954 = vmatpush1.bf16.msra.mxu0 %v4810
      %4955 = vmatprep.mubr.bf16.mxu0 %v4404
      %4956 = vmatmul.mubr.bf16.gmra.mrb[0].mxu0 %v4403
      %v4957 = vpop.f32.mrb[0].mxu0
      %v4958 = vadd.f32 0.0, %v4957
      %v4959 = vpop.f32.mrb[0].mxu0
      %v4960 = vpop.f32.mrb[0].mxu0
      %v4961 = vpop.f32.mrb[0].mxu0
      %4962 = vdwg.mxu0
      %4963 = vmatprep.subr.bf16.mxu0 0
      %4964 = vmatpush1.bf16.msra.mxu0 %v4811
      %4965 = vmatprep.subr.bf16.mxu0 0
      %4966 = vmatpush1.bf16.msra.mxu0 %v4812
      %4967 = vmatprep.subr.bf16.mxu0 0
      %4968 = vmatpush1.bf16.msra.mxu0 %v4813
      %4969 = vmatprep.subr.bf16.mxu0 0
      %4970 = vmatpush1.bf16.msra.mxu0 %v4814
      %4971 = vmatprep.subr.bf16.mxu0 0
      %4972 = vmatpush1.bf16.msra.mxu0 %v4815
      %4973 = vmatprep.subr.bf16.mxu0 0
      %4974 = vmatpush1.bf16.msra.mxu0 %v4816
      %4975 = vmatprep.subr.bf16.mxu0 0
      %4976 = vmatpush1.bf16.msra.mxu0 %v4817
      %4977 = vmatprep.subr.bf16.mxu0 0
      %4978 = vmatpush1.bf16.msra.mxu0 %v4818
      %4979 = vmatprep.subr.bf16.mxu0 0
      %4980 = vmatpush1.bf16.msra.mxu0 %v4819
      %4981 = vmatprep.subr.bf16.mxu0 0
      %4982 = vmatpush1.bf16.msra.mxu0 %v4820
      %4983 = vmatprep.subr.bf16.mxu0 0
      %4984 = vmatpush1.bf16.msra.mxu0 %v4821
      %4985 = vmatprep.subr.bf16.mxu0 0
      %4986 = vmatpush1.bf16.msra.mxu0 %v4822
      %4987 = vmatprep.subr.bf16.mxu0 0
      %4988 = vmatpush1.bf16.msra.mxu0 %v4823
      %4989 = vmatprep.subr.bf16.mxu0 0
      %4990 = vmatpush1.bf16.msra.mxu0 %v4824
      %4991 = vmatprep.subr.bf16.mxu0 0
      %4992 = vmatpush1.bf16.msra.mxu0 %v4825
      %4993 = vmatprep.subr.bf16.mxu0 0
      %4994 = vmatpush1.bf16.msra.mxu0 %v4826
      %4995 = vmatprep.mubr.bf16.mxu0 %v4406
      %4996 = vmatmul.mubr.bf16.gmra.mrb[0].mxu0 %v4405
      %v4997 = vpop.f32.mrb[0].mxu0
      %v4998 = vadd.f32 %v4958, %v4997
      %v4999 = vpop.f32.mrb[0].mxu0
      %v5000 = vpop.f32.mrb[0].mxu0
      %v5001 = vpop.f32.mrb[0].mxu0
      %5002 = vdwg.mxu0
      %5003 = vmatprep.subr.bf16.mxu0 0
      %5004 = vmatpush1.bf16.msra.mxu0 %v4827
      %5005 = vmatprep.subr.bf16.mxu0 0
      %5006 = vmatpush1.bf16.msra.mxu0 %v4828
      %5007 = vmatprep.subr.bf16.mxu0 0
      %5008 = vmatpush1.bf16.msra.mxu0 %v4829
      %5009 = vmatprep.subr.bf16.mxu0 0
      %5010 = vmatpush1.bf16.msra.mxu0 %v4830
      %5011 = vmatprep.subr.bf16.mxu0 0
      %5012 = vmatpush1.bf16.msra.mxu0 %v4831
      %5013 = vmatprep.subr.bf16.mxu0 0
      %5014 = vmatpush1.bf16.msra.mxu0 %v4832
      %5015 = vmatprep.subr.bf16.mxu0 0
      %5016 = vmatpush1.bf16.msra.mxu0 %v4833
      %5017 = vmatprep.subr.bf16.mxu0 0
      %5018 = vmatpush1.bf16.msra.mxu0 %v4834
      %5019 = vmatprep.subr.bf16.mxu0 0
      %5020 = vmatpush1.bf16.msra.mxu0 %v4835
      %5021 = vmatprep.subr.bf16.mxu0 0
      %5022 = vmatpush1.bf16.msra.mxu0 %v4836
      %5023 = vmatprep.subr.bf16.mxu0 0
      %5024 = vmatpush1.bf16.msra.mxu0 %v4837
      %5025 = vmatprep.subr.bf16.mxu0 0
      %5026 = vmatpush1.bf16.msra.mxu0 %v4838
      %5027 = vmatprep.subr.bf16.mxu0 0
      %5028 = vmatpush1.bf16.msra.mxu0 %v4839
      %5029 = vmatprep.subr.bf16.mxu0 0
      %5030 = vmatpush1.bf16.msra.mxu0 %v4840
      %5031 = vmatprep.subr.bf16.mxu0 0
      %5032 = vmatpush1.bf16.msra.mxu0 %v4841
      %5033 = vmatprep.subr.bf16.mxu0 0
      %5034 = vmatpush1.bf16.msra.mxu0 %v4842
      %5035 = vmatprep.mubr.bf16.mxu0 %v4408
      %5036 = vmatmul.mubr.bf16.gmra.mrb[0].mxu0 %v4407
      %v5037 = vpop.f32.mrb[0].mxu0
      %v5038 = vadd.f32 %v4998, %v5037
      %v5039 = vpop.f32.mrb[0].mxu0
      %v5040 = vpop.f32.mrb[0].mxu0
      %v5041 = vpop.f32.mrb[0].mxu0
      %5042 = vdwg.mxu0
      %5043 = vmatprep.subr.bf16.mxu0 0
      %5044 = vmatpush1.bf16.msra.mxu0 %v4843
      %5045 = vmatprep.subr.bf16.mxu0 0
      %5046 = vmatpush1.bf16.msra.mxu0 %v4844
      %5047 = vmatprep.subr.bf16.mxu0 0
      %5048 = vmatpush1.bf16.msra.mxu0 %v4845
      %5049 = vmatprep.subr.bf16.mxu0 0
      %5050 = vmatpush1.bf16.msra.mxu0 %v4846
      %5051 = vmatprep.subr.bf16.mxu0 0
      %5052 = vmatpush1.bf16.msra.mxu0 %v4847
      %5053 = vmatprep.subr.bf16.mxu0 0
      %5054 = vmatpush1.bf16.msra.mxu0 %v4848
      %5055 = vmatprep.subr.bf16.mxu0 0
      %5056 = vmatpush1.bf16.msra.mxu0 %v4849
      %5057 = vmatprep.subr.bf16.mxu0 0
      %5058 = vmatpush1.bf16.msra.mxu0 %v4850
      %5059 = vmatprep.subr.bf16.mxu0 0
      %5060 = vmatpush1.bf16.msra.mxu0 %v4851
      %5061 = vmatprep.subr.bf16.mxu0 0
      %5062 = vmatpush1.bf16.msra.mxu0 %v4852
      %5063 = vmatprep.subr.bf16.mxu0 0
      %5064 = vmatpush1.bf16.msra.mxu0 %v4853
      %5065 = vmatprep.subr.bf16.mxu0 0
      %5066 = vmatpush1.bf16.msra.mxu0 %v4854
      %5067 = vmatprep.subr.bf16.mxu0 0
      %5068 = vmatpush1.bf16.msra.mxu0 %v4855
      %5069 = vmatprep.subr.bf16.mxu0 0
      %5070 = vmatpush1.bf16.msra.mxu0 %v4856
      %5071 = vmatprep.subr.bf16.mxu0 0
      %5072 = vmatpush1.bf16.msra.mxu0 %v4857
      %5073 = vmatprep.subr.bf16.mxu0 0
      %5074 = vmatpush1.bf16.msra.mxu0 %v4858
      %5075 = vmatprep.mubr.bf16.mxu0 %v4410
      %5076 = vmatmul.mubr.bf16.gmra.mrb[0].mxu0 %v4409
      %v5077 = vpop.f32.mrb[0].mxu0
      %v5078 = vadd.f32 %v5038, %v5077
      %v5079 = vpop.f32.mrb[0].mxu0
      %v5080 = vpop.f32.mrb[0].mxu0
      %v5081 = vpop.f32.mrb[0].mxu0
      %5082 = vdwg.mxu0
      %vm5083 = vcmask 253952
      %5084 = vst.msk [vmem:[%s244] sm:$0x1] %vm5083, %v5078
      %p5085 = scmp.lt.s32.totalorder %s17, 1
      %s5086 = scalar_select %p5085, %s17, 1
      %s5087 = scalar_lea.vmem %s6, %s5086
      // Predicated region
      $region45: #{pointr_forward.5} parent=43 // pred_check
        %p5088 = pneg %p166
      $region46: #{pointr_forward.5} parent=43 // pred_check_branch
        %5090 = sbr.rel (%p5088) target = $region48
      $region47: #{pointr_forward.5} parent=43 // pred_region
        _
      $region48: #{pointr_forward.5} parent=43 // pred_fallthru
        _
    $region44: #{pointr_forward.5} parent=5 // pred_fallthru
      _
    %p5091 = scmp.le.s32.totalorder 2, %s12
    // Predicated region
    $region49: #{pointr_forward.5} parent=5 // pred_check
      %p5092 = pneg %p5091
    $region50: #{pointr_forward.5} parent=5 // pred_check_branch
      %5094 = sbr.rel (%p5092) target = $region52
    $region51: #{pointr_forward.5} parent=5 // pred_region
      %s5095 = ssub.s32 %s12, 2
      // Predicated region
      $region53: #{pointr_forward.5} parent=51 // pred_check
        %p5096 = pneg %p172
      $region54: #{pointr_forward.5} parent=51 // pred_check_branch
        %5098 = sbr.rel (%p5096) target = $region56
      $region55: #{pointr_forward.5} parent=51 // pred_region
        %p5099 = scmp.lt.s32.totalorder %s18, 1
        %s5100 = scalar_select %p5099, %s18, 1
        %s5101 = scalar_lea.vmem %s6, %s5100
      $region56: #{pointr_forward.5} parent=51 // pred_fallthru
        _
    $region52: #{pointr_forward.5} parent=5 // pred_fallthru
      _
  $region6: #{pointr_forward.5} parent=0 // loop_footer
    %s16 = sadd.s32 1, %s12
  $region7: #{pointr_forward.5} parent=0 // loop_footer_branch
    %11 = sbr.rel target = $region3
  $region8: #{pointr_forward.5} parent=0 // loop_exit
    _

</llo_original>
